<compile_context>
chip_gen: v5e
topology: v5e:2x2
jax: 0.10.0
libtpu: 0.0.40
codegen_flags: <defaults>
</compile_context>

<pallas_src>
import functools

import jax
import jax.numpy as jnp
from jax import lax
from jax.experimental import pallas as pl
from jax.experimental.pallas import tpu as pltpu


def _round_up(x, m):
    return (x + m - 1) // m * m


def _bilstm_tag_kernel(L, Bp,
                       x_ref,
                       wih_f_ref, whh_f_ref, b_f_ref,
                       wih_b_ref, whh_b_ref, b_b_ref,
                       wo_f_ref, wo_b_ref, bo_ref,
                       out_ref,
                       gx_f_ref, gx_b_ref, hf_ref, hb_ref):
    Hp = whh_f_ref.shape[0]

    # ---- phase 1: input projection hoisted out of the recurrence -----------
    # x already has the mask folded in and is bf16 (done in the wrapper).
    xm = x_ref[...]                                                   # (L*Bp, E) bf16
    gx_f_ref[...] = (jnp.dot(xm, wih_f_ref[...],
                             preferred_element_type=jnp.float32)
                     + b_f_ref[...]).astype(jnp.bfloat16)
    gx_b_ref[...] = (jnp.dot(xm, wih_b_ref[...],
                             preferred_element_type=jnp.float32)
                     + b_b_ref[...]).astype(jnp.bfloat16)

    # Loop-invariant recurrent weights (bf16).
    whh_f = whh_f_ref[...]                                            # (Hp, 4Hp)
    whh_b = whh_b_ref[...]

    def sigmoid(v):
        # sigmoid(v) == 0.5*(tanh(0.5*v)+1): one EUP push instead of exp+recip.
        return 0.5 * (jnp.tanh(0.5 * v) + 1.0)

    def gates_to_hc(g, c):
        # Gate blocks live at 128-aligned lane offsets (Hp is a multiple of 128).
        i = sigmoid(g[:, 0 * Hp:1 * Hp])
        f = sigmoid(g[:, 1 * Hp:2 * Hp])
        gg = jnp.tanh(g[:, 2 * Hp:3 * Hp])
        o = sigmoid(g[:, 3 * Hp:4 * Hp])
        c_new = f * c + i * gg
        h_new = o * jnp.tanh(c_new)
        # Cast h once; the bf16 value is reused for both the store and the
        # next-step recurrent matmul.
        return h_new.astype(jnp.bfloat16), c_new

    h0 = jnp.zeros((Bp, Hp), jnp.bfloat16)
    c0 = jnp.zeros((Bp, Hp), jnp.float32)

    # ---- phase 2: recurrence, fwd and bwd interleaved in ONE unrolled loop --
    def body(s, carry):
        hf, cf, hb, cb = carry
        rf = pl.multiple_of(s * Bp, Bp)                # fwd step t = s
        rb = pl.multiple_of((L - 1 - s) * Bp, Bp)      # bwd step t = L-1-s
        gf = (gx_f_ref[pl.ds(rf, Bp), :].astype(jnp.float32)
              + jnp.dot(hf, whh_f, preferred_element_type=jnp.float32))
        gb = (gx_b_ref[pl.ds(rb, Bp), :].astype(jnp.float32)
              + jnp.dot(hb, whh_b, preferred_element_type=jnp.float32))
        hf, cf = gates_to_hc(gf, cf)
        hb, cb = gates_to_hc(gb, cb)
        hf_ref[pl.ds(rf, Bp), :] = hf
        hb_ref[pl.ds(rb, Bp), :] = hb
        return (hf, cf, hb, cb)

    unroll = L if L <= 16 else 4
    lax.fori_loop(0, L, body, (h0, c0, h0, c0), unroll=unroll)

    # ---- phase 3: hidden2tag projection into a lane-dense padded slab -------
    out_ref[...] = (jnp.dot(hf_ref[...], wo_f_ref[...],
                            preferred_element_type=jnp.float32)
                    + jnp.dot(hb_ref[...], wo_b_ref[...],
                              preferred_element_type=jnp.float32)
                    + bo_ref[...])


def _pad_gate_cols(w, H, Hp):
    """(R, 4H) -> (R, 4Hp); gate k occupies lane columns [k*Hp, k*Hp+H)."""
    R = w.shape[0]
    out = jnp.zeros((R, 4 * Hp), w.dtype)
    for k in range(4):
        out = out.at[:, k * Hp:k * Hp + H].set(w[:, k * H:(k + 1) * H])
    return out


def _pad2(w, Rp, Np):
    out = jnp.zeros((Rp, Np), w.dtype)
    return out.at[:w.shape[0], :w.shape[1]].set(w)


def _pack_params(params, Hp, Cp):
    """Pad / transpose / cast PyTorch-equivalent params into the kernel layout."""
    H = params["whh_f"].shape[0]
    packed = {}
    for d in ("f", "b"):
        packed[f"wih_{d}"] = _pad_gate_cols(params[f"wih_{d}"], H, Hp).astype(jnp.bfloat16)
        packed[f"whh_{d}"] = _pad2(_pad_gate_cols(params[f"whh_{d}"], H, Hp),
                                   Hp, 4 * Hp).astype(jnp.bfloat16)
        packed[f"b_{d}"] = _pad_gate_cols(params[f"b_{d}"], H, Hp).astype(jnp.float32)
        packed[f"wo_{d}"] = _pad2(params[f"wo_{d}"], Hp, Cp).astype(jnp.bfloat16)
    packed["bo"] = _pad2(params["bo"], 1, Cp).astype(jnp.float32)
    return packed


def _vmem_budget_bytes(L, Bp, E, Hp, Cp):
    f32, bf16 = 4, 2
    b = L * Bp * E * bf16                                        # masked x (bf16)
    b += 2 * (E * 4 * Hp + Hp * 4 * Hp + Hp * Cp) * bf16        # wih, whh, wo (both dirs)
    b += 2 * 4 * Hp * f32 + Cp * f32                            # biases
    b += L * Bp * Cp * f32                                      # padded output slab
    b += 2 * L * Bp * 4 * Hp * bf16 + 2 * L * Bp * Hp * bf16    # gx + hidden scratch (bf16)
    return b


def _vmem_limit_bytes(budget):
    phys = 64 << 20                      # conservative default (v7x per-TC VMEM)
    try:
        info = pltpu.get_tpu_info()
        phys = int(getattr(info, "vmem_capacity_bytes", phys))
    except Exception:
        pass
    cap = int(phys * 0.85)               # leave headroom for Mosaic internal scratch
    return min(max(budget + (8 << 20), 16 << 20), cap)


def bilstm_mtl_forward(word_input, input_mask, params):
    """word_input: int32 (B, L), input_mask: int/float (B, L) -> logits (B, L, C)."""
    B, L = word_input.shape
    E = params["emb_cyber"].shape[1]
    H = params["whh_f"].shape[0]
    C = params["bo"].shape[1]

    # NOTE: for throughput on v6e/v7x batch enough sequences that Bp >= 256.
    Bp = _round_up(B, 16)      # 16 keeps dynamic sublane offsets bf16-vreg aligned
    Hp = _round_up(H, 128)
    Cp = _round_up(C, 128)

    packed = _pack_params(params, Hp, Cp)

    # Pad batch (padded rows carry mask=0 -> zeroed LSTM input).
    wi = jnp.zeros((Bp, L), word_input.dtype).at[:B].set(word_input)
    mk = jnp.zeros((Bp, L), jnp.float32).at[:B].set(input_mask.astype(jnp.float32))

    # WordRep: embedding gather directly in time-major flat layout, with the
    # input mask folded in here (rides on the gather) and the result cast to
    # bf16 (it only feeds bf16 MXU matmuls).  Dropout = identity at inference.
    emb = params["emb_cyber"].astype(jnp.float32)
    x = (emb[wi.T] * mk.T[:, :, None]).astype(jnp.bfloat16).reshape(L * Bp, E)

    budget = _vmem_budget_bytes(L, Bp, E, Hp, Cp)
    vmem_limit = _vmem_limit_bytes(budget)

    vmem = lambda: pl.BlockSpec(memory_space=pltpu.MemorySpace.VMEM)
    out = pl.pallas_call(
        functools.partial(_bilstm_tag_kernel, L, Bp),
        out_shape=jax.ShapeDtypeStruct((L * Bp, Cp), jnp.float32),
        in_specs=[vmem() for _ in range(10)],
        out_specs=vmem(),
        scratch_shapes=[
            pltpu.VMEM((L * Bp, 4 * Hp), jnp.bfloat16),   # gx_f
            pltpu.VMEM((L * Bp, 4 * Hp), jnp.bfloat16),   # gx_b
            pltpu.VMEM((L * Bp, Hp), jnp.bfloat16),       # hf
            pltpu.VMEM((L * Bp, Hp), jnp.bfloat16),       # hb
        ],
        compiler_params=pltpu.CompilerParams(vmem_limit_bytes=vmem_limit),
    )(x,
      packed["wih_f"], packed["whh_f"], packed["b_f"],
      packed["wih_b"], packed["whh_b"], packed["b_b"],
      packed["wo_f"], packed["wo_b"], packed["bo"])

    logits = out.reshape(L, Bp, Cp)[:, :B, :C]
    return jnp.transpose(logits, (1, 0, 2))               # (B, L, C)


def reference_forward(word_input, input_mask, params):
    """Pure-JAX f32 reference of the same forward pass (for verification)."""
    emb = params["emb_cyber"][word_input].astype(jnp.float32)
    x = jnp.transpose(emb, (1, 0, 2))
    mask = jnp.transpose(input_mask.astype(jnp.float32), (1, 0))[:, :, None]
    xm = x * mask
    B = x.shape[1]
    H = params["whh_f"].shape[0]

    def make_step(wih, whh, b):
        def step(carry, xt):
            h, c = carry
            g = xt @ wih + h @ whh + b
            i, f, gg, o = jnp.split(g, 4, axis=-1)
            c = jax.nn.sigmoid(f) * c + jax.nn.sigmoid(i) * jnp.tanh(gg)
            h = jax.nn.sigmoid(o) * jnp.tanh(c)
            return (h, c), h
        return step

    init = (jnp.zeros((B, H), jnp.float32), jnp.zeros((B, H), jnp.float32))
    _, hf = lax.scan(make_step(params["wih_f"], params["whh_f"], params["b_f"]), init, xm)
    _, hb = lax.scan(make_step(params["wih_b"], params["whh_b"], params["b_b"]), init, xm[::-1])
    hb = hb[::-1]
    logits = hf @ params["wo_f"] + hb @ params["wo_b"] + params["bo"]
    return jnp.transpose(logits, (1, 0, 2))


def init_params(key, vocab, E, H, C):
    ks = jax.random.split(key, 12)
    u = lambda k, shape, s=0.1: jax.random.uniform(k, shape, jnp.float32, -s, s)
    return {
        "emb_cyber": u(ks[0], (vocab, E), 0.5),
        # PyTorch LSTM weights (4H, E)/(4H, H) stored pre-transposed; biases
        # b_ih + b_hh folded into a single (1, 4H) term (identical math).
        "wih_f": u(ks[1], (E, 4 * H)), "whh_f": u(ks[2], (H, 4 * H)), "b_f": u(ks[3], (1, 4 * H)),
        "wih_b": u(ks[4], (E, 4 * H)), "whh_b": u(ks[5], (H, 4 * H)), "b_b": u(ks[6], (1, 4 * H)),
        # hidden2tag_cyber: nn.Linear(2H, C); W.T split into fwd/bwd halves.
        "wo_f": u(ks[7], (H, C)), "wo_b": u(ks[8], (H, C)), "bo": u(ks[9], (1, C)),
    }


if __name__ == "__main__":
    B, L, V, E, H, C = 2, 8, 50, 32, 32, 8   # batch, seq, vocab, emb, rnn_hidden, label_size

    key = jax.random.PRNGKey(0)
    k_param, k_words = jax.random.split(key)
    params = init_params(k_param, V, E, H, C)

    word_input = jax.random.randint(k_words, (B, L), 0, V, dtype=jnp.int32)
    lengths = jnp.array([[L], [L - 3]], dtype=jnp.int32)
    input_mask = (jnp.arange(L, dtype=jnp.int32)[None, :] < lengths).astype(jnp.int32)

    out = bilstm_mtl_forward(word_input, input_mask, params)
    out = jax.block_until_ready(out)

    ref = reference_forward(word_input, input_mask, params)
    assert out.shape == (B, L, C), out.shape
    # bf16 matmuls / bf16 gx-h storage with f32 accumulation vs. pure-f32 reference.
    err = float(jnp.max(jnp.abs(out - ref)))
    assert err < 5e-2, err

    print("KERNEL_OK")
</pallas_src>

<mosaic_0001>
module attributes {stable_mosaic.version = 11 : i64} {
  func.func @_bilstm_tag_kernel(%arg0: memref<128x32xbf16, #tpu.memory_space<vmem>>, %arg1: memref<32x512xbf16, #tpu.memory_space<vmem>>, %arg2: memref<128x512xbf16, #tpu.memory_space<vmem>>, %arg3: memref<1x512xf32, #tpu.memory_space<vmem>>, %arg4: memref<32x512xbf16, #tpu.memory_space<vmem>>, %arg5: memref<128x512xbf16, #tpu.memory_space<vmem>>, %arg6: memref<1x512xf32, #tpu.memory_space<vmem>>, %arg7: memref<128x128xbf16, #tpu.memory_space<vmem>>, %arg8: memref<128x128xbf16, #tpu.memory_space<vmem>>, %arg9: memref<1x128xf32, #tpu.memory_space<vmem>>, %arg10: memref<128x128xf32, #tpu.memory_space<vmem>>, %arg11: memref<128x512xbf16, #tpu.memory_space<vmem>>, %arg12: memref<128x512xbf16, #tpu.memory_space<vmem>>, %arg13: memref<128x128xbf16, #tpu.memory_space<vmem>>, %arg14: memref<128x128xbf16, #tpu.memory_space<vmem>>) attributes {dimension_semantics = [], scalar_prefetch = 0 : i64, scratch_operands = 4 : i64, tpu.core_type = #tpu.core_type<tc>} {
    %c0 = arith.constant 0 : index
    %c0_0 = arith.constant 0 : index
    %0 = vector.load %arg0[%c0, %c0_0] : memref<128x32xbf16, #tpu.memory_space<vmem>>, vector<128x32xbf16>
    %c0_1 = arith.constant 0 : index
    %c0_2 = arith.constant 0 : index
    %1 = vector.load %arg1[%c0_1, %c0_2] : memref<32x512xbf16, #tpu.memory_space<vmem>>, vector<32x512xbf16>
    %cst = arith.constant dense<0.000000e+00> : vector<128x512xf32>
    %2 = tpu.matmul %0, %1, %cst {dimension_numbers = #tpu.dot_dimension_numbers<[1], [0], [0], [1], [0, 0, 1, 1], [], []>} : vector<128x32xbf16>, vector<32x512xbf16>, vector<128x512xf32> -> vector<128x512xf32>
    %c0_3 = arith.constant 0 : index
    %c0_4 = arith.constant 0 : index
    %3 = vector.load %arg3[%c0_3, %c0_4] : memref<1x512xf32, #tpu.memory_space<vmem>>, vector<1x512xf32>
    %4 = vector.broadcast %3 : vector<1x512xf32> to vector<128x512xf32>
    %5 = arith.addf %2, %4 : vector<128x512xf32>
    %6 = arith.truncf %5 : vector<128x512xf32> to vector<128x512xbf16>
    %c0_5 = arith.constant 0 : index
    %c0_6 = arith.constant 0 : index
    %7 = vector.load %arg11[%c0_5, %c0_6] : memref<128x512xbf16, #tpu.memory_space<vmem>>, vector<128x512xbf16>
    tpu.vector_store %arg11[%c0_5, %c0_6], %6 {strides = array<i32>} : memref<128x512xbf16, #tpu.memory_space<vmem>>, vector<128x512xbf16>,
    %c0_7 = arith.constant 0 : index
    %c0_8 = arith.constant 0 : index
    %8 = vector.load %arg4[%c0_7, %c0_8] : memref<32x512xbf16, #tpu.memory_space<vmem>>, vector<32x512xbf16>
    %cst_9 = arith.constant dense<0.000000e+00> : vector<128x512xf32>
    %9 = tpu.matmul %0, %8, %cst_9 {dimension_numbers = #tpu.dot_dimension_numbers<[1], [0], [0], [1], [0, 0, 1, 1], [], []>} : vector<128x32xbf16>, vector<32x512xbf16>, vector<128x512xf32> -> vector<128x512xf32>
    %c0_10 = arith.constant 0 : index
    %c0_11 = arith.constant 0 : index
    %10 = vector.load %arg6[%c0_10, %c0_11] : memref<1x512xf32, #tpu.memory_space<vmem>>, vector<1x512xf32>
    %11 = vector.broadcast %10 : vector<1x512xf32> to vector<128x512xf32>
    %12 = arith.addf %9, %11 : vector<128x512xf32>
    %13 = arith.truncf %12 : vector<128x512xf32> to vector<128x512xbf16>
    %c0_12 = arith.constant 0 : index
    %c0_13 = arith.constant 0 : index
    %14 = vector.load %arg12[%c0_12, %c0_13] : memref<128x512xbf16, #tpu.memory_space<vmem>>, vector<128x512xbf16>
    tpu.vector_store %arg12[%c0_12, %c0_13], %13 {strides = array<i32>} : memref<128x512xbf16, #tpu.memory_space<vmem>>, vector<128x512xbf16>,
    %c0_14 = arith.constant 0 : index
    %c0_15 = arith.constant 0 : index
    %15 = vector.load %arg2[%c0_14, %c0_15] : memref<128x512xbf16, #tpu.memory_space<vmem>>, vector<128x512xbf16>
    %c0_16 = arith.constant 0 : index
    %c0_17 = arith.constant 0 : index
    %16 = vector.load %arg5[%c0_16, %c0_17] : memref<128x512xbf16, #tpu.memory_space<vmem>>, vector<128x512xbf16>
    %cst_18 = arith.constant 0.000000e+00 : bf16
    %17 = vector.broadcast %cst_18 : bf16 to vector<16x128xbf16>
    %cst_19 = arith.constant 0.000000e+00 : f32
    %18 = vector.broadcast %cst_19 : f32 to vector<16x128xf32>
    %c0_i32 = arith.constant 0 : i32
    %c16_i32 = arith.constant 16 : i32
    %19 = arith.muli %c0_i32, %c16_i32 : i32
    %20 = tpu.assume_multiple %19, 16 : i32
    %c7_i32 = arith.constant 7 : i32
    %21 = arith.subi %c7_i32, %c0_i32 : i32
    %c16_i32_20 = arith.constant 16 : i32
    %22 = arith.muli %21, %c16_i32_20 : i32
    %23 = tpu.assume_multiple %22, 16 : i32
    %24 = arith.index_cast %20 : i32 to index
    %c0_21 = arith.constant 0 : index
    %25 = vector.load %arg11[%24, %c0_21] : memref<128x512xbf16, #tpu.memory_space<vmem>>, vector<16x512xbf16>
    %26 = arith.extf %25 : vector<16x512xbf16> to vector<16x512xf32>
    %cst_22 = arith.constant dense<0.000000e+00> : vector<16x512xf32>
    %27 = tpu.matmul %17, %15, %cst_22 {dimension_numbers = #tpu.dot_dimension_numbers<[1], [0], [0], [1], [0, 0, 1, 1], [], []>} : vector<16x128xbf16>, vector<128x512xbf16>, vector<16x512xf32> -> vector<16x512xf32>
    %28 = arith.addf %26, %27 : vector<16x512xf32>
    %29 = arith.index_cast %23 : i32 to index
    %c0_23 = arith.constant 0 : index
    %30 = vector.load %arg12[%29, %c0_23] : memref<128x512xbf16, #tpu.memory_space<vmem>>, vector<16x512xbf16>
    %31 = arith.extf %30 : vector<16x512xbf16> to vector<16x512xf32>
    %cst_24 = arith.constant dense<0.000000e+00> : vector<16x512xf32>
    %32 = tpu.matmul %17, %16, %cst_24 {dimension_numbers = #tpu.dot_dimension_numbers<[1], [0], [0], [1], [0, 0, 1, 1], [], []>} : vector<16x128xbf16>, vector<128x512xbf16>, vector<16x512xf32> -> vector<16x512xf32>
    %33 = arith.addf %31, %32 : vector<16x512xf32>
    %34 = vector.extract_strided_slice %28 {offsets = [0, 0], sizes = [16, 128], strides = [1, 1]} : vector<16x512xf32> to vector<16x128xf32>
    %cst_25 = arith.constant 5.000000e-01 : f32
    %35 = vector.broadcast %cst_25 : f32 to vector<16x128xf32>
    %36 = arith.mulf %35, %34 : vector<16x128xf32>
    %37 = math.tanh %36 : vector<16x128xf32>
    %cst_26 = arith.constant 1.000000e+00 : f32
    %38 = vector.broadcast %cst_26 : f32 to vector<16x128xf32>
    %39 = arith.addf %37, %38 : vector<16x128xf32>
    %cst_27 = arith.constant 5.000000e-01 : f32
    %40 = vector.broadcast %cst_27 : f32 to vector<16x128xf32>
    %41 = arith.mulf %40, %39 : vector<16x128xf32>
    %42 = vector.extract_strided_slice %28 {offsets = [0, 128], sizes = [16, 128], strides = [1, 1]} : vector<16x512xf32> to vector<16x128xf32>
    %cst_28 = arith.constant 5.000000e-01 : f32
    %43 = vector.broadcast %cst_28 : f32 to vector<16x128xf32>
    %44 = arith.mulf %43, %42 : vector<16x128xf32>
    %45 = math.tanh %44 : vector<16x128xf32>
    %cst_29 = arith.constant 1.000000e+00 : f32
    %46 = vector.broadcast %cst_29 : f32 to vector<16x128xf32>
    %47 = arith.addf %45, %46 : vector<16x128xf32>
    %cst_30 = arith.constant 5.000000e-01 : f32
    %48 = vector.broadcast %cst_30 : f32 to vector<16x128xf32>
    %49 = arith.mulf %48, %47 : vector<16x128xf32>
    %50 = vector.extract_strided_slice %28 {offsets = [0, 256], sizes = [16, 128], strides = [1, 1]} : vector<16x512xf32> to vector<16x128xf32>
    %51 = math.tanh %50 : vector<16x128xf32>
    %52 = vector.extract_strided_slice %28 {offsets = [0, 384], sizes = [16, 128], strides = [1, 1]} : vector<16x512xf32> to vector<16x128xf32>
    %cst_31 = arith.constant 5.000000e-01 : f32
    %53 = vector.broadcast %cst_31 : f32 to vector<16x128xf32>
    %54 = arith.mulf %53, %52 : vector<16x128xf32>
    %55 = math.tanh %54 : vector<16x128xf32>
    %cst_32 = arith.constant 1.000000e+00 : f32
    %56 = vector.broadcast %cst_32 : f32 to vector<16x128xf32>
    %57 = arith.addf %55, %56 : vector<16x128xf32>
    %cst_33 = arith.constant 5.000000e-01 : f32
    %58 = vector.broadcast %cst_33 : f32 to vector<16x128xf32>
    %59 = arith.mulf %58, %57 : vector<16x128xf32>
    %60 = arith.mulf %49, %18 : vector<16x128xf32>
    %61 = arith.mulf %41, %51 : vector<16x128xf32>
    %62 = arith.addf %60, %61 : vector<16x128xf32>
    %63 = math.tanh %62 : vector<16x128xf32>
    %64 = arith.mulf %59, %63 : vector<16x128xf32>
    %65 = arith.truncf %64 : vector<16x128xf32> to vector<16x128xbf16>
    %66 = vector.extract_strided_slice %33 {offsets = [0, 0], sizes = [16, 128], strides = [1, 1]} : vector<16x512xf32> to vector<16x128xf32>
    %cst_34 = arith.constant 5.000000e-01 : f32
    %67 = vector.broadcast %cst_34 : f32 to vector<16x128xf32>
    %68 = arith.mulf %67, %66 : vector<16x128xf32>
    %69 = math.tanh %68 : vector<16x128xf32>
    %cst_35 = arith.constant 1.000000e+00 : f32
    %70 = vector.broadcast %cst_35 : f32 to vector<16x128xf32>
    %71 = arith.addf %69, %70 : vector<16x128xf32>
    %cst_36 = arith.constant 5.000000e-01 : f32
    %72 = vector.broadcast %cst_36 : f32 to vector<16x128xf32>
    %73 = arith.mulf %72, %71 : vector<16x128xf32>
    %74 = vector.extract_strided_slice %33 {offsets = [0, 128], sizes = [16, 128], strides = [1, 1]} : vector<16x512xf32> to vector<16x128xf32>
    %cst_37 = arith.constant 5.000000e-01 : f32
    %75 = vector.broadcast %cst_37 : f32 to vector<16x128xf32>
    %76 = arith.mulf %75, %74 : vector<16x128xf32>
    %77 = math.tanh %76 : vector<16x128xf32>
    %cst_38 = arith.constant 1.000000e+00 : f32
    %78 = vector.broadcast %cst_38 : f32 to vector<16x128xf32>
    %79 = arith.addf %77, %78 : vector<16x128xf32>
    %cst_39 = arith.constant 5.000000e-01 : f32
    %80 = vector.broadcast %cst_39 : f32 to vector<16x128xf32>
    %81 = arith.mulf %80, %79 : vector<16x128xf32>
    %82 = vector.extract_strided_slice %33 {offsets = [0, 256], sizes = [16, 128], strides = [1, 1]} : vector<16x512xf32> to vector<16x128xf32>
    %83 = math.tanh %82 : vector<16x128xf32>
    %84 = vector.extract_strided_slice %33 {offsets = [0, 384], sizes = [16, 128], strides = [1, 1]} : vector<16x512xf32> to vector<16x128xf32>
    %cst_40 = arith.constant 5.000000e-01 : f32
    %85 = vector.broadcast %cst_40 : f32 to vector<16x128xf32>
    %86 = arith.mulf %85, %84 : vector<16x128xf32>
    %87 = math.tanh %86 : vector<16x128xf32>
    %cst_41 = arith.constant 1.000000e+00 : f32
    %88 = vector.broadcast %cst_41 : f32 to vector<16x128xf32>
    %89 = arith.addf %87, %88 : vector<16x128xf32>
    %cst_42 = arith.constant 5.000000e-01 : f32
    %90 = vector.broadcast %cst_42 : f32 to vector<16x128xf32>
    %91 = arith.mulf %90, %89 : vector<16x128xf32>
    %92 = arith.mulf %81, %18 : vector<16x128xf32>
    %93 = arith.mulf %73, %83 : vector<16x128xf32>
    %94 = arith.addf %92, %93 : vector<16x128xf32>
    %95 = math.tanh %94 : vector<16x128xf32>
    %96 = arith.mulf %91, %95 : vector<16x128xf32>
    %97 = arith.truncf %96 : vector<16x128xf32> to vector<16x128xbf16>
    %98 = arith.index_cast %20 : i32 to index
    %c0_43 = arith.constant 0 : index
    %99 = vector.load %arg13[%98, %c0_43] : memref<128x128xbf16, #tpu.memory_space<vmem>>, vector<16x128xbf16>
    tpu.vector_store %arg13[%98, %c0_43], %65 {strides = array<i32>} : memref<128x128xbf16, #tpu.memory_space<vmem>>, vector<16x128xbf16>,
    %100 = arith.index_cast %23 : i32 to index
    %c0_44 = arith.constant 0 : index
    %101 = vector.load %arg14[%100, %c0_44] : memref<128x128xbf16, #tpu.memory_space<vmem>>, vector<16x128xbf16>
    tpu.vector_store %arg14[%100, %c0_44], %97 {strides = array<i32>} : memref<128x128xbf16, #tpu.memory_space<vmem>>, vector<16x128xbf16>,
    %c1_i32 = arith.constant 1 : i32
    %c16_i32_45 = arith.constant 16 : i32
    %102 = arith.muli %c1_i32, %c16_i32_45 : i32
    %103 = tpu.assume_multiple %102, 16 : i32
    %c7_i32_46 = arith.constant 7 : i32
    %104 = arith.subi %c7_i32_46, %c1_i32 : i32
    %c16_i32_47 = arith.constant 16 : i32
    %105 = arith.muli %104, %c16_i32_47 : i32
    %106 = tpu.assume_multiple %105, 16 : i32
    %107 = arith.index_cast %103 : i32 to index
    %c0_48 = arith.constant 0 : index
    %108 = vector.load %arg11[%107, %c0_48] : memref<128x512xbf16, #tpu.memory_space<vmem>>, vector<16x512xbf16>
    %109 = arith.extf %108 : vector<16x512xbf16> to vector<16x512xf32>
    %cst_49 = arith.constant dense<0.000000e+00> : vector<16x512xf32>
    %110 = tpu.matmul %65, %15, %cst_49 {dimension_numbers = #tpu.dot_dimension_numbers<[1], [0], [0], [1], [0, 0, 1, 1], [], []>} : vector<16x128xbf16>, vector<128x512xbf16>, vector<16x512xf32> -> vector<16x512xf32>
    %111 = arith.addf %109, %110 : vector<16x512xf32>
    %112 = arith.index_cast %106 : i32 to index
    %c0_50 = arith.constant 0 : index
    %113 = vector.load %arg12[%112, %c0_50] : memref<128x512xbf16, #tpu.memory_space<vmem>>, vector<16x512xbf16>
    %114 = arith.extf %113 : vector<16x512xbf16> to vector<16x512xf32>
    %cst_51 = arith.constant dense<0.000000e+00> : vector<16x512xf32>
    %115 = tpu.matmul %97, %16, %cst_51 {dimension_numbers = #tpu.dot_dimension_numbers<[1], [0], [0], [1], [0, 0, 1, 1], [], []>} : vector<16x128xbf16>, vector<128x512xbf16>, vector<16x512xf32> -> vector<16x512xf32>
    %116 = arith.addf %114, %115 : vector<16x512xf32>
    %117 = vector.extract_strided_slice %111 {offsets = [0, 0], sizes = [16, 128], strides = [1, 1]} : vector<16x512xf32> to vector<16x128xf32>
    %cst_52 = arith.constant 5.000000e-01 : f32
    %118 = vector.broadcast %cst_52 : f32 to vector<16x128xf32>
    %119 = arith.mulf %118, %117 : vector<16x128xf32>
    %120 = math.tanh %119 : vector<16x128xf32>
    %cst_53 = arith.constant 1.000000e+00 : f32
    %121 = vector.broadcast %cst_53 : f32 to vector<16x128xf32>
    %122 = arith.addf %120, %121 : vector<16x128xf32>
    %cst_54 = arith.constant 5.000000e-01 : f32
    %123 = vector.broadcast %cst_54 : f32 to vector<16x128xf32>
    %124 = arith.mulf %123, %122 : vector<16x128xf32>
    %125 = vector.extract_strided_slice %111 {offsets = [0, 128], sizes = [16, 128], strides = [1, 1]} : vector<16x512xf32> to vector<16x128xf32>
    %cst_55 = arith.constant 5.000000e-01 : f32
    %126 = vector.broadcast %cst_55 : f32 to vector<16x128xf32>
    %127 = arith.mulf %126, %125 : vector<16x128xf32>
    %128 = math.tanh %127 : vector<16x128xf32>
    %cst_56 = arith.constant 1.000000e+00 : f32
    %129 = vector.broadcast %cst_56 : f32 to vector<16x128xf32>
    %130 = arith.addf %128, %129 : vector<16x128xf32>
    %cst_57 = arith.constant 5.000000e-01 : f32
    %131 = vector.broadcast %cst_57 : f32 to vector<16x128xf32>
    %132 = arith.mulf %131, %130 : vector<16x128xf32>
    %133 = vector.extract_strided_slice %111 {offsets = [0, 256], sizes = [16, 128], strides = [1, 1]} : vector<16x512xf32> to vector<16x128xf32>
    %134 = math.tanh %133 : vector<16x128xf32>
    %135 = vector.extract_strided_slice %111 {offsets = [0, 384], sizes = [16, 128], strides = [1, 1]} : vector<16x512xf32> to vector<16x128xf32>
    %cst_58 = arith.constant 5.000000e-01 : f32
    %136 = vector.broadcast %cst_58 : f32 to vector<16x128xf32>
    %137 = arith.mulf %136, %135 : vector<16x128xf32>
    %138 = math.tanh %137 : vector<16x128xf32>
    %cst_59 = arith.constant 1.000000e+00 : f32
    %139 = vector.broadcast %cst_59 : f32 to vector<16x128xf32>
    %140 = arith.addf %138, %139 : vector<16x128xf32>
    %cst_60 = arith.constant 5.000000e-01 : f32
    %141 = vector.broadcast %cst_60 : f32 to vector<16x128xf32>
    %142 = arith.mulf %141, %140 : vector<16x128xf32>
    %143 = arith.mulf %132, %62 : vector<16x128xf32>
    %144 = arith.mulf %124, %134 : vector<16x128xf32>
    %145 = arith.addf %143, %144 : vector<16x128xf32>
    %146 = math.tanh %145 : vector<16x128xf32>
    %147 = arith.mulf %142, %146 : vector<16x128xf32>
    %148 = arith.truncf %147 : vector<16x128xf32> to vector<16x128xbf16>
    %149 = vector.extract_strided_slice %116 {offsets = [0, 0], sizes = [16, 128], strides = [1, 1]} : vector<16x512xf32> to vector<16x128xf32>
    %cst_61 = arith.constant 5.000000e-01 : f32
    %150 = vector.broadcast %cst_61 : f32 to vector<16x128xf32>
    %151 = arith.mulf %150, %149 : vector<16x128xf32>
    %152 = math.tanh %151 : vector<16x128xf32>
    %cst_62 = arith.constant 1.000000e+00 : f32
    %153 = vector.broadcast %cst_62 : f32 to vector<16x128xf32>
    %154 = arith.addf %152, %153 : vector<16x128xf32>
    %cst_63 = arith.constant 5.000000e-01 : f32
    %155 = vector.broadcast %cst_63 : f32 to vector<16x128xf32>
    %156 = arith.mulf %155, %154 : vector<16x128xf32>
    %157 = vector.extract_strided_slice %116 {offsets = [0, 128], sizes = [16, 128], strides = [1, 1]} : vector<16x512xf32> to vector<16x128xf32>
    %cst_64 = arith.constant 5.000000e-01 : f32
    %158 = vector.broadcast %cst_64 : f32 to vector<16x128xf32>
    %159 = arith.mulf %158, %157 : vector<16x128xf32>
    %160 = math.tanh %159 : vector<16x128xf32>
    %cst_65 = arith.constant 1.000000e+00 : f32
    %161 = vector.broadcast %cst_65 : f32 to vector<16x128xf32>
    %162 = arith.addf %160, %161 : vector<16x128xf32>
    %cst_66 = arith.constant 5.000000e-01 : f32
    %163 = vector.broadcast %cst_66 : f32 to vector<16x128xf32>
    %164 = arith.mulf %163, %162 : vector<16x128xf32>
    %165 = vector.extract_strided_slice %116 {offsets = [0, 256], sizes = [16, 128], strides = [1, 1]} : vector<16x512xf32> to vector<16x128xf32>
    %166 = math.tanh %165 : vector<16x128xf32>
    %167 = vector.extract_strided_slice %116 {offsets = [0, 384], sizes = [16, 128], strides = [1, 1]} : vector<16x512xf32> to vector<16x128xf32>
    %cst_67 = arith.constant 5.000000e-01 : f32
    %168 = vector.broadcast %cst_67 : f32 to vector<16x128xf32>
    %169 = arith.mulf %168, %167 : vector<16x128xf32>
    %170 = math.tanh %169 : vector<16x128xf32>
    %cst_68 = arith.constant 1.000000e+00 : f32
    %171 = vector.broadcast %cst_68 : f32 to vector<16x128xf32>
    %172 = arith.addf %170, %171 : vector<16x128xf32>
    %cst_69 = arith.constant 5.000000e-01 : f32
    %173 = vector.broadcast %cst_69 : f32 to vector<16x128xf32>
    %174 = arith.mulf %173, %172 : vector<16x128xf32>
    %175 = arith.mulf %164, %94 : vector<16x128xf32>
    %176 = arith.mulf %156, %166 : vector<16x128xf32>
    %177 = arith.addf %175, %176 : vector<16x128xf32>
    %178 = math.tanh %177 : vector<16x128xf32>
    %179 = arith.mulf %174, %178 : vector<16x128xf32>
    %180 = arith.truncf %179 : vector<16x128xf32> to vector<16x128xbf16>
    %181 = arith.index_cast %103 : i32 to index
    %c0_70 = arith.constant 0 : index
    %182 = vector.load %arg13[%181, %c0_70] : memref<128x128xbf16, #tpu.memory_space<vmem>>, vector<16x128xbf16>
    tpu.vector_store %arg13[%181, %c0_70], %148 {strides = array<i32>} : memref<128x128xbf16, #tpu.memory_space<vmem>>, vector<16x128xbf16>,
    %183 = arith.index_cast %106 : i32 to index
    %c0_71 = arith.constant 0 : index
    %184 = vector.load %arg14[%183, %c0_71] : memref<128x128xbf16, #tpu.memory_space<vmem>>, vector<16x128xbf16>
    tpu.vector_store %arg14[%183, %c0_71], %180 {strides = array<i32>} : memref<128x128xbf16, #tpu.memory_space<vmem>>, vector<16x128xbf16>,
    %c2_i32 = arith.constant 2 : i32
    %c16_i32_72 = arith.constant 16 : i32
    %185 = arith.muli %c2_i32, %c16_i32_72 : i32
    %186 = tpu.assume_multiple %185, 16 : i32
    %c7_i32_73 = arith.constant 7 : i32
    %187 = arith.subi %c7_i32_73, %c2_i32 : i32
    %c16_i32_74 = arith.constant 16 : i32
    %188 = arith.muli %187, %c16_i32_74 : i32
    %189 = tpu.assume_multiple %188, 16 : i32
    %190 = arith.index_cast %186 : i32 to index
    %c0_75 = arith.constant 0 : index
    %191 = vector.load %arg11[%190, %c0_75] : memref<128x512xbf16, #tpu.memory_space<vmem>>, vector<16x512xbf16>
    %192 = arith.extf %191 : vector<16x512xbf16> to vector<16x512xf32>
    %cst_76 = arith.constant dense<0.000000e+00> : vector<16x512xf32>
    %193 = tpu.matmul %148, %15, %cst_76 {dimension_numbers = #tpu.dot_dimension_numbers<[1], [0], [0], [1], [0, 0, 1, 1], [], []>} : vector<16x128xbf16>, vector<128x512xbf16>, vector<16x512xf32> -> vector<16x512xf32>
    %194 = arith.addf %192, %193 : vector<16x512xf32>
    %195 = arith.index_cast %189 : i32 to index
    %c0_77 = arith.constant 0 : index
    %196 = vector.load %arg12[%195, %c0_77] : memref<128x512xbf16, #tpu.memory_space<vmem>>, vector<16x512xbf16>
    %197 = arith.extf %196 : vector<16x512xbf16> to vector<16x512xf32>
    %cst_78 = arith.constant dense<0.000000e+00> : vector<16x512xf32>
    %198 = tpu.matmul %180, %16, %cst_78 {dimension_numbers = #tpu.dot_dimension_numbers<[1], [0], [0], [1], [0, 0, 1, 1], [], []>} : vector<16x128xbf16>, vector<128x512xbf16>, vector<16x512xf32> -> vector<16x512xf32>
    %199 = arith.addf %197, %198 : vector<16x512xf32>
    %200 = vector.extract_strided_slice %194 {offsets = [0, 0], sizes = [16, 128], strides = [1, 1]} : vector<16x512xf32> to vector<16x128xf32>
    %cst_79 = arith.constant 5.000000e-01 : f32
    %201 = vector.broadcast %cst_79 : f32 to vector<16x128xf32>
    %202 = arith.mulf %201, %200 : vector<16x128xf32>
    %203 = math.tanh %202 : vector<16x128xf32>
    %cst_80 = arith.constant 1.000000e+00 : f32
    %204 = vector.broadcast %cst_80 : f32 to vector<16x128xf32>
    %205 = arith.addf %203, %204 : vector<16x128xf32>
    %cst_81 = arith.constant 5.000000e-01 : f32
    %206 = vector.broadcast %cst_81 : f32 to vector<16x128xf32>
    %207 = arith.mulf %206, %205 : vector<16x128xf32>
    %208 = vector.extract_strided_slice %194 {offsets = [0, 128], sizes = [16, 128], strides = [1, 1]} : vector<16x512xf32> to vector<16x128xf32>
    %cst_82 = arith.constant 5.000000e-01 : f32
    %209 = vector.broadcast %cst_82 : f32 to vector<16x128xf32>
    %210 = arith.mulf %209, %208 : vector<16x128xf32>
    %211 = math.tanh %210 : vector<16x128xf32>
    %cst_83 = arith.constant 1.000000e+00 : f32
    %212 = vector.broadcast %cst_83 : f32 to vector<16x128xf32>
    %213 = arith.addf %211, %212 : vector<16x128xf32>
    %cst_84 = arith.constant 5.000000e-01 : f32
    %214 = vector.broadcast %cst_84 : f32 to vector<16x128xf32>
    %215 = arith.mulf %214, %213 : vector<16x128xf32>
    %216 = vector.extract_strided_slice %194 {offsets = [0, 256], sizes = [16, 128], strides = [1, 1]} : vector<16x512xf32> to vector<16x128xf32>
    %217 = math.tanh %216 : vector<16x128xf32>
    %218 = vector.extract_strided_slice %194 {offsets = [0, 384], sizes = [16, 128], strides = [1, 1]} : vector<16x512xf32> to vector<16x128xf32>
    %cst_85 = arith.constant 5.000000e-01 : f32
    %219 = vector.broadcast %cst_85 : f32 to vector<16x128xf32>
    %220 = arith.mulf %219, %218 : vector<16x128xf32>
    %221 = math.tanh %220 : vector<16x128xf32>
    %cst_86 = arith.constant 1.000000e+00 : f32
    %222 = vector.broadcast %cst_86 : f32 to vector<16x128xf32>
    %223 = arith.addf %221, %222 : vector<16x128xf32>
    %cst_87 = arith.constant 5.000000e-01 : f32
    %224 = vector.broadcast %cst_87 : f32 to vector<16x128xf32>
    %225 = arith.mulf %224, %223 : vector<16x128xf32>
    %226 = arith.mulf %215, %145 : vector<16x128xf32>
    %227 = arith.mulf %207, %217 : vector<16x128xf32>
    %228 = arith.addf %226, %227 : vector<16x128xf32>
    %229 = math.tanh %228 : vector<16x128xf32>
    %230 = arith.mulf %225, %229 : vector<16x128xf32>
    %231 = arith.truncf %230 : vector<16x128xf32> to vector<16x128xbf16>
    %232 = vector.extract_strided_slice %199 {offsets = [0, 0], sizes = [16, 128], strides = [1, 1]} : vector<16x512xf32> to vector<16x128xf32>
    %cst_88 = arith.constant 5.000000e-01 : f32
    %233 = vector.broadcast %cst_88 : f32 to vector<16x128xf32>
    %234 = arith.mulf %233, %232 : vector<16x128xf32>
    %235 = math.tanh %234 : vector<16x128xf32>
    %cst_89 = arith.constant 1.000000e+00 : f32
    %236 = vector.broadcast %cst_89 : f32 to vector<16x128xf32>
    %237 = arith.addf %235, %236 : vector<16x128xf32>
    %cst_90 = arith.constant 5.000000e-01 : f32
    %238 = vector.broadcast %cst_90 : f32 to vector<16x128xf32>
    %239 = arith.mulf %238, %237 : vector<16x128xf32>
    %240 = vector.extract_strided_slice %199 {offsets = [0, 128], sizes = [16, 128], strides = [1, 1]} : vector<16x512xf32> to vector<16x128xf32>
    %cst_91 = arith.constant 5.000000e-01 : f32
    %241 = vector.broadcast %cst_91 : f32 to vector<16x128xf32>
    %242 = arith.mulf %241, %240 : vector<16x128xf32>
    %243 = math.tanh %242 : vector<16x128xf32>
    %cst_92 = arith.constant 1.000000e+00 : f32
    %244 = vector.broadcast %cst_92 : f32 to vector<16x128xf32>
    %245 = arith.addf %243, %244 : vector<16x128xf32>
    %cst_93 = arith.constant 5.000000e-01 : f32
    %246 = vector.broadcast %cst_93 : f32 to vector<16x128xf32>
    %247 = arith.mulf %246, %245 : vector<16x128xf32>
    %248 = vector.extract_strided_slice %199 {offsets = [0, 256], sizes = [16, 128], strides = [1, 1]} : vector<16x512xf32> to vector<16x128xf32>
    %249 = math.tanh %248 : vector<16x128xf32>
    %250 = vector.extract_strided_slice %199 {offsets = [0, 384], sizes = [16, 128], strides = [1, 1]} : vector<16x512xf32> to vector<16x128xf32>
    %cst_94 = arith.constant 5.000000e-01 : f32
    %251 = vector.broadcast %cst_94 : f32 to vector<16x128xf32>
    %252 = arith.mulf %251, %250 : vector<16x128xf32>
    %253 = math.tanh %252 : vector<16x128xf32>
    %cst_95 = arith.constant 1.000000e+00 : f32
    %254 = vector.broadcast %cst_95 : f32 to vector<16x128xf32>
    %255 = arith.addf %253, %254 : vector<16x128xf32>
    %cst_96 = arith.constant 5.000000e-01 : f32
    %256 = vector.broadcast %cst_96 : f32 to vector<16x128xf32>
    %257 = arith.mulf %256, %255 : vector<16x128xf32>
    %258 = arith.mulf %247, %177 : vector<16x128xf32>
    %259 = arith.mulf %239, %249 : vector<16x128xf32>
    %260 = arith.addf %258, %259 : vector<16x128xf32>
    %261 = math.tanh %260 : vector<16x128xf32>
    %262 = arith.mulf %257, %261 : vector<16x128xf32>
    %263 = arith.truncf %262 : vector<16x128xf32> to vector<16x128xbf16>
    %264 = arith.index_cast %186 : i32 to index
    %c0_97 = arith.constant 0 : index
    %265 = vector.load %arg13[%264, %c0_97] : memref<128x128xbf16, #tpu.memory_space<vmem>>, vector<16x128xbf16>
    tpu.vector_store %arg13[%264, %c0_97], %231 {strides = array<i32>} : memref<128x128xbf16, #tpu.memory_space<vmem>>, vector<16x128xbf16>,
    %266 = arith.index_cast %189 : i32 to index
    %c0_98 = arith.constant 0 : index
    %267 = vector.load %arg14[%266, %c0_98] : memref<128x128xbf16, #tpu.memory_space<vmem>>, vector<16x128xbf16>
    tpu.vector_store %arg14[%266, %c0_98], %263 {strides = array<i32>} : memref<128x128xbf16, #tpu.memory_space<vmem>>, vector<16x128xbf16>,
    %c3_i32 = arith.constant 3 : i32
    %c16_i32_99 = arith.constant 16 : i32
    %268 = arith.muli %c3_i32, %c16_i32_99 : i32
    %269 = tpu.assume_multiple %268, 16 : i32
    %c7_i32_100 = arith.constant 7 : i32
    %270 = arith.subi %c7_i32_100, %c3_i32 : i32
    %c16_i32_101 = arith.constant 16 : i32
    %271 = arith.muli %270, %c16_i32_101 : i32
    %272 = tpu.assume_multiple %271, 16 : i32
    %273 = arith.index_cast %269 : i32 to index
    %c0_102 = arith.constant 0 : index
    %274 = vector.load %arg11[%273, %c0_102] : memref<128x512xbf16, #tpu.memory_space<vmem>>, vector<16x512xbf16>
    %275 = arith.extf %274 : vector<16x512xbf16> to vector<16x512xf32>
    %cst_103 = arith.constant dense<0.000000e+00> : vector<16x512xf32>
    %276 = tpu.matmul %231, %15, %cst_103 {dimension_numbers = #tpu.dot_dimension_numbers<[1], [0], [0], [1], [0, 0, 1, 1], [], []>} : vector<16x128xbf16>, vector<128x512xbf16>, vector<16x512xf32> -> vector<16x512xf32>
    %277 = arith.addf %275, %276 : vector<16x512xf32>
    %278 = arith.index_cast %272 : i32 to index
    %c0_104 = arith.constant 0 : index
    %279 = vector.load %arg12[%278, %c0_104] : memref<128x512xbf16, #tpu.memory_space<vmem>>, vector<16x512xbf16>
    %280 = arith.extf %279 : vector<16x512xbf16> to vector<16x512xf32>
    %cst_105 = arith.constant dense<0.000000e+00> : vector<16x512xf32>
    %281 = tpu.matmul %263, %16, %cst_105 {dimension_numbers = #tpu.dot_dimension_numbers<[1], [0], [0], [1], [0, 0, 1, 1], [], []>} : vector<16x128xbf16>, vector<128x512xbf16>, vector<16x512xf32> -> vector<16x512xf32>
    %282 = arith.addf %280, %281 : vector<16x512xf32>
    %283 = vector.extract_strided_slice %277 {offsets = [0, 0], sizes = [16, 128], strides = [1, 1]} : vector<16x512xf32> to vector<16x128xf32>
    %cst_106 = arith.constant 5.000000e-01 : f32
    %284 = vector.broadcast %cst_106 : f32 to vector<16x128xf32>
    %285 = arith.mulf %284, %283 : vector<16x128xf32>
    %286 = math.tanh %285 : vector<16x128xf32>
    %cst_107 = arith.constant 1.000000e+00 : f32
    %287 = vector.broadcast %cst_107 : f32 to vector<16x128xf32>
    %288 = arith.addf %286, %287 : vector<16x128xf32>
    %cst_108 = arith.constant 5.000000e-01 : f32
    %289 = vector.broadcast %cst_108 : f32 to vector<16x128xf32>
    %290 = arith.mulf %289, %288 : vector<16x128xf32>
    %291 = vector.extract_strided_slice %277 {offsets = [0, 128], sizes = [16, 128], strides = [1, 1]} : vector<16x512xf32> to vector<16x128xf32>
    %cst_109 = arith.constant 5.000000e-01 : f32
    %292 = vector.broadcast %cst_109 : f32 to vector<16x128xf32>
    %293 = arith.mulf %292, %291 : vector<16x128xf32>
    %294 = math.tanh %293 : vector<16x128xf32>
    %cst_110 = arith.constant 1.000000e+00 : f32
    %295 = vector.broadcast %cst_110 : f32 to vector<16x128xf32>
    %296 = arith.addf %294, %295 : vector<16x128xf32>
    %cst_111 = arith.constant 5.000000e-01 : f32
    %297 = vector.broadcast %cst_111 : f32 to vector<16x128xf32>
    %298 = arith.mulf %297, %296 : vector<16x128xf32>
    %299 = vector.extract_strided_slice %277 {offsets = [0, 256], sizes = [16, 128], strides = [1, 1]} : vector<16x512xf32> to vector<16x128xf32>
    %300 = math.tanh %299 : vector<16x128xf32>
    %301 = vector.extract_strided_slice %277 {offsets = [0, 384], sizes = [16, 128], strides = [1, 1]} : vector<16x512xf32> to vector<16x128xf32>
    %cst_112 = arith.constant 5.000000e-01 : f32
    %302 = vector.broadcast %cst_112 : f32 to vector<16x128xf32>
    %303 = arith.mulf %302, %301 : vector<16x128xf32>
    %304 = math.tanh %303 : vector<16x128xf32>
    %cst_113 = arith.constant 1.000000e+00 : f32
    %305 = vector.broadcast %cst_113 : f32 to vector<16x128xf32>
    %306 = arith.addf %304, %305 : vector<16x128xf32>
    %cst_114 = arith.constant 5.000000e-01 : f32
    %307 = vector.broadcast %cst_114 : f32 to vector<16x128xf32>
    %308 = arith.mulf %307, %306 : vector<16x128xf32>
    %309 = arith.mulf %298, %228 : vector<16x128xf32>
    %310 = arith.mulf %290, %300 : vector<16x128xf32>
    %311 = arith.addf %309, %310 : vector<16x128xf32>
    %312 = math.tanh %311 : vector<16x128xf32>
    %313 = arith.mulf %308, %312 : vector<16x128xf32>
    %314 = arith.truncf %313 : vector<16x128xf32> to vector<16x128xbf16>
    %315 = vector.extract_strided_slice %282 {offsets = [0, 0], sizes = [16, 128], strides = [1, 1]} : vector<16x512xf32> to vector<16x128xf32>
    %cst_115 = arith.constant 5.000000e-01 : f32
    %316 = vector.broadcast %cst_115 : f32 to vector<16x128xf32>
    %317 = arith.mulf %316, %315 : vector<16x128xf32>
    %318 = math.tanh %317 : vector<16x128xf32>
    %cst_116 = arith.constant 1.000000e+00 : f32
    %319 = vector.broadcast %cst_116 : f32 to vector<16x128xf32>
    %320 = arith.addf %318, %319 : vector<16x128xf32>
    %cst_117 = arith.constant 5.000000e-01 : f32
    %321 = vector.broadcast %cst_117 : f32 to vector<16x128xf32>
    %322 = arith.mulf %321, %320 : vector<16x128xf32>
    %323 = vector.extract_strided_slice %282 {offsets = [0, 128], sizes = [16, 128], strides = [1, 1]} : vector<16x512xf32> to vector<16x128xf32>
    %cst_118 = arith.constant 5.000000e-01 : f32
    %324 = vector.broadcast %cst_118 : f32 to vector<16x128xf32>
    %325 = arith.mulf %324, %323 : vector<16x128xf32>
    %326 = math.tanh %325 : vector<16x128xf32>
    %cst_119 = arith.constant 1.000000e+00 : f32
    %327 = vector.broadcast %cst_119 : f32 to vector<16x128xf32>
    %328 = arith.addf %326, %327 : vector<16x128xf32>
    %cst_120 = arith.constant 5.000000e-01 : f32
    %329 = vector.broadcast %cst_120 : f32 to vector<16x128xf32>
    %330 = arith.mulf %329, %328 : vector<16x128xf32>
    %331 = vector.extract_strided_slice %282 {offsets = [0, 256], sizes = [16, 128], strides = [1, 1]} : vector<16x512xf32> to vector<16x128xf32>
    %332 = math.tanh %331 : vector<16x128xf32>
    %333 = vector.extract_strided_slice %282 {offsets = [0, 384], sizes = [16, 128], strides = [1, 1]} : vector<16x512xf32> to vector<16x128xf32>
    %cst_121 = arith.constant 5.000000e-01 : f32
    %334 = vector.broadcast %cst_121 : f32 to vector<16x128xf32>
    %335 = arith.mulf %334, %333 : vector<16x128xf32>
    %336 = math.tanh %335 : vector<16x128xf32>
    %cst_122 = arith.constant 1.000000e+00 : f32
    %337 = vector.broadcast %cst_122 : f32 to vector<16x128xf32>
    %338 = arith.addf %336, %337 : vector<16x128xf32>
    %cst_123 = arith.constant 5.000000e-01 : f32
    %339 = vector.broadcast %cst_123 : f32 to vector<16x128xf32>
    %340 = arith.mulf %339, %338 : vector<16x128xf32>
    %341 = arith.mulf %330, %260 : vector<16x128xf32>
    %342 = arith.mulf %322, %332 : vector<16x128xf32>
    %343 = arith.addf %341, %342 : vector<16x128xf32>
    %344 = math.tanh %343 : vector<16x128xf32>
    %345 = arith.mulf %340, %344 : vector<16x128xf32>
    %346 = arith.truncf %345 : vector<16x128xf32> to vector<16x128xbf16>
    %347 = arith.index_cast %269 : i32 to index
    %c0_124 = arith.constant 0 : index
    %348 = vector.load %arg13[%347, %c0_124] : memref<128x128xbf16, #tpu.memory_space<vmem>>, vector<16x128xbf16>
    tpu.vector_store %arg13[%347, %c0_124], %314 {strides = array<i32>} : memref<128x128xbf16, #tpu.memory_space<vmem>>, vector<16x128xbf16>,
    %349 = arith.index_cast %272 : i32 to index
    %c0_125 = arith.constant 0 : index
    %350 = vector.load %arg14[%349, %c0_125] : memref<128x128xbf16, #tpu.memory_space<vmem>>, vector<16x128xbf16>
    tpu.vector_store %arg14[%349, %c0_125], %346 {strides = array<i32>} : memref<128x128xbf16, #tpu.memory_space<vmem>>, vector<16x128xbf16>,
    %c4_i32 = arith.constant 4 : i32
    %c16_i32_126 = arith.constant 16 : i32
    %351 = arith.muli %c4_i32, %c16_i32_126 : i32
    %352 = tpu.assume_multiple %351, 16 : i32
    %c7_i32_127 = arith.constant 7 : i32
    %353 = arith.subi %c7_i32_127, %c4_i32 : i32
    %c16_i32_128 = arith.constant 16 : i32
    %354 = arith.muli %353, %c16_i32_128 : i32
    %355 = tpu.assume_multiple %354, 16 : i32
    %356 = arith.index_cast %352 : i32 to index
    %c0_129 = arith.constant 0 : index
    %357 = vector.load %arg11[%356, %c0_129] : memref<128x512xbf16, #tpu.memory_space<vmem>>, vector<16x512xbf16>
    %358 = arith.extf %357 : vector<16x512xbf16> to vector<16x512xf32>
    %cst_130 = arith.constant dense<0.000000e+00> : vector<16x512xf32>
    %359 = tpu.matmul %314, %15, %cst_130 {dimension_numbers = #tpu.dot_dimension_numbers<[1], [0], [0], [1], [0, 0, 1, 1], [], []>} : vector<16x128xbf16>, vector<128x512xbf16>, vector<16x512xf32> -> vector<16x512xf32>
    %360 = arith.addf %358, %359 : vector<16x512xf32>
    %361 = arith.index_cast %355 : i32 to index
    %c0_131 = arith.constant 0 : index
    %362 = vector.load %arg12[%361, %c0_131] : memref<128x512xbf16, #tpu.memory_space<vmem>>, vector<16x512xbf16>
    %363 = arith.extf %362 : vector<16x512xbf16> to vector<16x512xf32>
    %cst_132 = arith.constant dense<0.000000e+00> : vector<16x512xf32>
    %364 = tpu.matmul %346, %16, %cst_132 {dimension_numbers = #tpu.dot_dimension_numbers<[1], [0], [0], [1], [0, 0, 1, 1], [], []>} : vector<16x128xbf16>, vector<128x512xbf16>, vector<16x512xf32> -> vector<16x512xf32>
    %365 = arith.addf %363, %364 : vector<16x512xf32>
    %366 = vector.extract_strided_slice %360 {offsets = [0, 0], sizes = [16, 128], strides = [1, 1]} : vector<16x512xf32> to vector<16x128xf32>
    %cst_133 = arith.constant 5.000000e-01 : f32
    %367 = vector.broadcast %cst_133 : f32 to vector<16x128xf32>
    %368 = arith.mulf %367, %366 : vector<16x128xf32>
    %369 = math.tanh %368 : vector<16x128xf32>
    %cst_134 = arith.constant 1.000000e+00 : f32
    %370 = vector.broadcast %cst_134 : f32 to vector<16x128xf32>
    %371 = arith.addf %369, %370 : vector<16x128xf32>
    %cst_135 = arith.constant 5.000000e-01 : f32
    %372 = vector.broadcast %cst_135 : f32 to vector<16x128xf32>
    %373 = arith.mulf %372, %371 : vector<16x128xf32>
    %374 = vector.extract_strided_slice %360 {offsets = [0, 128], sizes = [16, 128], strides = [1, 1]} : vector<16x512xf32> to vector<16x128xf32>
    %cst_136 = arith.constant 5.000000e-01 : f32
    %375 = vector.broadcast %cst_136 : f32 to vector<16x128xf32>
    %376 = arith.mulf %375, %374 : vector<16x128xf32>
    %377 = math.tanh %376 : vector<16x128xf32>
    %cst_137 = arith.constant 1.000000e+00 : f32
    %378 = vector.broadcast %cst_137 : f32 to vector<16x128xf32>
    %379 = arith.addf %377, %378 : vector<16x128xf32>
    %cst_138 = arith.constant 5.000000e-01 : f32
    %380 = vector.broadcast %cst_138 : f32 to vector<16x128xf32>
    %381 = arith.mulf %380, %379 : vector<16x128xf32>
    %382 = vector.extract_strided_slice %360 {offsets = [0, 256], sizes = [16, 128], strides = [1, 1]} : vector<16x512xf32> to vector<16x128xf32>
    %383 = math.tanh %382 : vector<16x128xf32>
    %384 = vector.extract_strided_slice %360 {offsets = [0, 384], sizes = [16, 128], strides = [1, 1]} : vector<16x512xf32> to vector<16x128xf32>
    %cst_139 = arith.constant 5.000000e-01 : f32
    %385 = vector.broadcast %cst_139 : f32 to vector<16x128xf32>
    %386 = arith.mulf %385, %384 : vector<16x128xf32>
    %387 = math.tanh %386 : vector<16x128xf32>
    %cst_140 = arith.constant 1.000000e+00 : f32
    %388 = vector.broadcast %cst_140 : f32 to vector<16x128xf32>
    %389 = arith.addf %387, %388 : vector<16x128xf32>
    %cst_141 = arith.constant 5.000000e-01 : f32
    %390 = vector.broadcast %cst_141 : f32 to vector<16x128xf32>
    %391 = arith.mulf %390, %389 : vector<16x128xf32>
    %392 = arith.mulf %381, %311 : vector<16x128xf32>
    %393 = arith.mulf %373, %383 : vector<16x128xf32>
    %394 = arith.addf %392, %393 : vector<16x128xf32>
    %395 = math.tanh %394 : vector<16x128xf32>
    %396 = arith.mulf %391, %395 : vector<16x128xf32>
    %397 = arith.truncf %396 : vector<16x128xf32> to vector<16x128xbf16>
    %398 = vector.extract_strided_slice %365 {offsets = [0, 0], sizes = [16, 128], strides = [1, 1]} : vector<16x512xf32> to vector<16x128xf32>
    %cst_142 = arith.constant 5.000000e-01 : f32
    %399 = vector.broadcast %cst_142 : f32 to vector<16x128xf32>
    %400 = arith.mulf %399, %398 : vector<16x128xf32>
    %401 = math.tanh %400 : vector<16x128xf32>
    %cst_143 = arith.constant 1.000000e+00 : f32
    %402 = vector.broadcast %cst_143 : f32 to vector<16x128xf32>
    %403 = arith.addf %401, %402 : vector<16x128xf32>
    %cst_144 = arith.constant 5.000000e-01 : f32
    %404 = vector.broadcast %cst_144 : f32 to vector<16x128xf32>
    %405 = arith.mulf %404, %403 : vector<16x128xf32>
    %406 = vector.extract_strided_slice %365 {offsets = [0, 128], sizes = [16, 128], strides = [1, 1]} : vector<16x512xf32> to vector<16x128xf32>
    %cst_145 = arith.constant 5.000000e-01 : f32
    %407 = vector.broadcast %cst_145 : f32 to vector<16x128xf32>
    %408 = arith.mulf %407, %406 : vector<16x128xf32>
    %409 = math.tanh %408 : vector<16x128xf32>
    %cst_146 = arith.constant 1.000000e+00 : f32
    %410 = vector.broadcast %cst_146 : f32 to vector<16x128xf32>
    %411 = arith.addf %409, %410 : vector<16x128xf32>
    %cst_147 = arith.constant 5.000000e-01 : f32
    %412 = vector.broadcast %cst_147 : f32 to vector<16x128xf32>
    %413 = arith.mulf %412, %411 : vector<16x128xf32>
    %414 = vector.extract_strided_slice %365 {offsets = [0, 256], sizes = [16, 128], strides = [1, 1]} : vector<16x512xf32> to vector<16x128xf32>
    %415 = math.tanh %414 : vector<16x128xf32>
    %416 = vector.extract_strided_slice %365 {offsets = [0, 384], sizes = [16, 128], strides = [1, 1]} : vector<16x512xf32> to vector<16x128xf32>
    %cst_148 = arith.constant 5.000000e-01 : f32
    %417 = vector.broadcast %cst_148 : f32 to vector<16x128xf32>
    %418 = arith.mulf %417, %416 : vector<16x128xf32>
    %419 = math.tanh %418 : vector<16x128xf32>
    %cst_149 = arith.constant 1.000000e+00 : f32
    %420 = vector.broadcast %cst_149 : f32 to vector<16x128xf32>
    %421 = arith.addf %419, %420 : vector<16x128xf32>
    %cst_150 = arith.constant 5.000000e-01 : f32
    %422 = vector.broadcast %cst_150 : f32 to vector<16x128xf32>
    %423 = arith.mulf %422, %421 : vector<16x128xf32>
    %424 = arith.mulf %413, %343 : vector<16x128xf32>
    %425 = arith.mulf %405, %415 : vector<16x128xf32>
    %426 = arith.addf %424, %425 : vector<16x128xf32>
    %427 = math.tanh %426 : vector<16x128xf32>
    %428 = arith.mulf %423, %427 : vector<16x128xf32>
    %429 = arith.truncf %428 : vector<16x128xf32> to vector<16x128xbf16>
    %430 = arith.index_cast %352 : i32 to index
    %c0_151 = arith.constant 0 : index
    %431 = vector.load %arg13[%430, %c0_151] : memref<128x128xbf16, #tpu.memory_space<vmem>>, vector<16x128xbf16>
    tpu.vector_store %arg13[%430, %c0_151], %397 {strides = array<i32>} : memref<128x128xbf16, #tpu.memory_space<vmem>>, vector<16x128xbf16>,
    %432 = arith.index_cast %355 : i32 to index
    %c0_152 = arith.constant 0 : index
    %433 = vector.load %arg14[%432, %c0_152] : memref<128x128xbf16, #tpu.memory_space<vmem>>, vector<16x128xbf16>
    tpu.vector_store %arg14[%432, %c0_152], %429 {strides = array<i32>} : memref<128x128xbf16, #tpu.memory_space<vmem>>, vector<16x128xbf16>,
    %c5_i32 = arith.constant 5 : i32
    %c16_i32_153 = arith.constant 16 : i32
    %434 = arith.muli %c5_i32, %c16_i32_153 : i32
    %435 = tpu.assume_multiple %434, 16 : i32
    %c7_i32_154 = arith.constant 7 : i32
    %436 = arith.subi %c7_i32_154, %c5_i32 : i32
    %c16_i32_155 = arith.constant 16 : i32
    %437 = arith.muli %436, %c16_i32_155 : i32
    %438 = tpu.assume_multiple %437, 16 : i32
    %439 = arith.index_cast %435 : i32 to index
    %c0_156 = arith.constant 0 : index
    %440 = vector.load %arg11[%439, %c0_156] : memref<128x512xbf16, #tpu.memory_space<vmem>>, vector<16x512xbf16>
    %441 = arith.extf %440 : vector<16x512xbf16> to vector<16x512xf32>
    %cst_157 = arith.constant dense<0.000000e+00> : vector<16x512xf32>
    %442 = tpu.matmul %397, %15, %cst_157 {dimension_numbers = #tpu.dot_dimension_numbers<[1], [0], [0], [1], [0, 0, 1, 1], [], []>} : vector<16x128xbf16>, vector<128x512xbf16>, vector<16x512xf32> -> vector<16x512xf32>
    %443 = arith.addf %441, %442 : vector<16x512xf32>
    %444 = arith.index_cast %438 : i32 to index
    %c0_158 = arith.constant 0 : index
    %445 = vector.load %arg12[%444, %c0_158] : memref<128x512xbf16, #tpu.memory_space<vmem>>, vector<16x512xbf16>
    %446 = arith.extf %445 : vector<16x512xbf16> to vector<16x512xf32>
    %cst_159 = arith.constant dense<0.000000e+00> : vector<16x512xf32>
    %447 = tpu.matmul %429, %16, %cst_159 {dimension_numbers = #tpu.dot_dimension_numbers<[1], [0], [0], [1], [0, 0, 1, 1], [], []>} : vector<16x128xbf16>, vector<128x512xbf16>, vector<16x512xf32> -> vector<16x512xf32>
    %448 = arith.addf %446, %447 : vector<16x512xf32>
    %449 = vector.extract_strided_slice %443 {offsets = [0, 0], sizes = [16, 128], strides = [1, 1]} : vector<16x512xf32> to vector<16x128xf32>
    %cst_160 = arith.constant 5.000000e-01 : f32
    %450 = vector.broadcast %cst_160 : f32 to vector<16x128xf32>
    %451 = arith.mulf %450, %449 : vector<16x128xf32>
    %452 = math.tanh %451 : vector<16x128xf32>
    %cst_161 = arith.constant 1.000000e+00 : f32
    %453 = vector.broadcast %cst_161 : f32 to vector<16x128xf32>
    %454 = arith.addf %452, %453 : vector<16x128xf32>
    %cst_162 = arith.constant 5.000000e-01 : f32
    %455 = vector.broadcast %cst_162 : f32 to vector<16x128xf32>
    %456 = arith.mulf %455, %454 : vector<16x128xf32>
    %457 = vector.extract_strided_slice %443 {offsets = [0, 128], sizes = [16, 128], strides = [1, 1]} : vector<16x512xf32> to vector<16x128xf32>
    %cst_163 = arith.constant 5.000000e-01 : f32
    %458 = vector.broadcast %cst_163 : f32 to vector<16x128xf32>
    %459 = arith.mulf %458, %457 : vector<16x128xf32>
    %460 = math.tanh %459 : vector<16x128xf32>
    %cst_164 = arith.constant 1.000000e+00 : f32
    %461 = vector.broadcast %cst_164 : f32 to vector<16x128xf32>
    %462 = arith.addf %460, %461 : vector<16x128xf32>
    %cst_165 = arith.constant 5.000000e-01 : f32
    %463 = vector.broadcast %cst_165 : f32 to vector<16x128xf32>
    %464 = arith.mulf %463, %462 : vector<16x128xf32>
    %465 = vector.extract_strided_slice %443 {offsets = [0, 256], sizes = [16, 128], strides = [1, 1]} : vector<16x512xf32> to vector<16x128xf32>
    %466 = math.tanh %465 : vector<16x128xf32>
    %467 = vector.extract_strided_slice %443 {offsets = [0, 384], sizes = [16, 128], strides = [1, 1]} : vector<16x512xf32> to vector<16x128xf32>
    %cst_166 = arith.constant 5.000000e-01 : f32
    %468 = vector.broadcast %cst_166 : f32 to vector<16x128xf32>
    %469 = arith.mulf %468, %467 : vector<16x128xf32>
    %470 = math.tanh %469 : vector<16x128xf32>
    %cst_167 = arith.constant 1.000000e+00 : f32
    %471 = vector.broadcast %cst_167 : f32 to vector<16x128xf32>
    %472 = arith.addf %470, %471 : vector<16x128xf32>
    %cst_168 = arith.constant 5.000000e-01 : f32
    %473 = vector.broadcast %cst_168 : f32 to vector<16x128xf32>
    %474 = arith.mulf %473, %472 : vector<16x128xf32>
    %475 = arith.mulf %464, %394 : vector<16x128xf32>
    %476 = arith.mulf %456, %466 : vector<16x128xf32>
    %477 = arith.addf %475, %476 : vector<16x128xf32>
    %478 = math.tanh %477 : vector<16x128xf32>
    %479 = arith.mulf %474, %478 : vector<16x128xf32>
    %480 = arith.truncf %479 : vector<16x128xf32> to vector<16x128xbf16>
    %481 = vector.extract_strided_slice %448 {offsets = [0, 0], sizes = [16, 128], strides = [1, 1]} : vector<16x512xf32> to vector<16x128xf32>
    %cst_169 = arith.constant 5.000000e-01 : f32
    %482 = vector.broadcast %cst_169 : f32 to vector<16x128xf32>
    %483 = arith.mulf %482, %481 : vector<16x128xf32>
    %484 = math.tanh %483 : vector<16x128xf32>
    %cst_170 = arith.constant 1.000000e+00 : f32
    %485 = vector.broadcast %cst_170 : f32 to vector<16x128xf32>
    %486 = arith.addf %484, %485 : vector<16x128xf32>
    %cst_171 = arith.constant 5.000000e-01 : f32
    %487 = vector.broadcast %cst_171 : f32 to vector<16x128xf32>
    %488 = arith.mulf %487, %486 : vector<16x128xf32>
    %489 = vector.extract_strided_slice %448 {offsets = [0, 128], sizes = [16, 128], strides = [1, 1]} : vector<16x512xf32> to vector<16x128xf32>
    %cst_172 = arith.constant 5.000000e-01 : f32
    %490 = vector.broadcast %cst_172 : f32 to vector<16x128xf32>
    %491 = arith.mulf %490, %489 : vector<16x128xf32>
    %492 = math.tanh %491 : vector<16x128xf32>
    %cst_173 = arith.constant 1.000000e+00 : f32
    %493 = vector.broadcast %cst_173 : f32 to vector<16x128xf32>
    %494 = arith.addf %492, %493 : vector<16x128xf32>
    %cst_174 = arith.constant 5.000000e-01 : f32
    %495 = vector.broadcast %cst_174 : f32 to vector<16x128xf32>
    %496 = arith.mulf %495, %494 : vector<16x128xf32>
    %497 = vector.extract_strided_slice %448 {offsets = [0, 256], sizes = [16, 128], strides = [1, 1]} : vector<16x512xf32> to vector<16x128xf32>
    %498 = math.tanh %497 : vector<16x128xf32>
    %499 = vector.extract_strided_slice %448 {offsets = [0, 384], sizes = [16, 128], strides = [1, 1]} : vector<16x512xf32> to vector<16x128xf32>
    %cst_175 = arith.constant 5.000000e-01 : f32
    %500 = vector.broadcast %cst_175 : f32 to vector<16x128xf32>
    %501 = arith.mulf %500, %499 : vector<16x128xf32>
    %502 = math.tanh %501 : vector<16x128xf32>
    %cst_176 = arith.constant 1.000000e+00 : f32
    %503 = vector.broadcast %cst_176 : f32 to vector<16x128xf32>
    %504 = arith.addf %502, %503 : vector<16x128xf32>
    %cst_177 = arith.constant 5.000000e-01 : f32
    %505 = vector.broadcast %cst_177 : f32 to vector<16x128xf32>
    %506 = arith.mulf %505, %504 : vector<16x128xf32>
    %507 = arith.mulf %496, %426 : vector<16x128xf32>
    %508 = arith.mulf %488, %498 : vector<16x128xf32>
    %509 = arith.addf %507, %508 : vector<16x128xf32>
    %510 = math.tanh %509 : vector<16x128xf32>
    %511 = arith.mulf %506, %510 : vector<16x128xf32>
    %512 = arith.truncf %511 : vector<16x128xf32> to vector<16x128xbf16>
    %513 = arith.index_cast %435 : i32 to index
    %c0_178 = arith.constant 0 : index
    %514 = vector.load %arg13[%513, %c0_178] : memref<128x128xbf16, #tpu.memory_space<vmem>>, vector<16x128xbf16>
    tpu.vector_store %arg13[%513, %c0_178], %480 {strides = array<i32>} : memref<128x128xbf16, #tpu.memory_space<vmem>>, vector<16x128xbf16>,
    %515 = arith.index_cast %438 : i32 to index
    %c0_179 = arith.constant 0 : index
    %516 = vector.load %arg14[%515, %c0_179] : memref<128x128xbf16, #tpu.memory_space<vmem>>, vector<16x128xbf16>
    tpu.vector_store %arg14[%515, %c0_179], %512 {strides = array<i32>} : memref<128x128xbf16, #tpu.memory_space<vmem>>, vector<16x128xbf16>,
    %c6_i32 = arith.constant 6 : i32
    %c16_i32_180 = arith.constant 16 : i32
    %517 = arith.muli %c6_i32, %c16_i32_180 : i32
    %518 = tpu.assume_multiple %517, 16 : i32
    %c7_i32_181 = arith.constant 7 : i32
    %519 = arith.subi %c7_i32_181, %c6_i32 : i32
    %c16_i32_182 = arith.constant 16 : i32
    %520 = arith.muli %519, %c16_i32_182 : i32
    %521 = tpu.assume_multiple %520, 16 : i32
    %522 = arith.index_cast %518 : i32 to index
    %c0_183 = arith.constant 0 : index
    %523 = vector.load %arg11[%522, %c0_183] : memref<128x512xbf16, #tpu.memory_space<vmem>>, vector<16x512xbf16>
    %524 = arith.extf %523 : vector<16x512xbf16> to vector<16x512xf32>
    %cst_184 = arith.constant dense<0.000000e+00> : vector<16x512xf32>
    %525 = tpu.matmul %480, %15, %cst_184 {dimension_numbers = #tpu.dot_dimension_numbers<[1], [0], [0], [1], [0, 0, 1, 1], [], []>} : vector<16x128xbf16>, vector<128x512xbf16>, vector<16x512xf32> -> vector<16x512xf32>
    %526 = arith.addf %524, %525 : vector<16x512xf32>
    %527 = arith.index_cast %521 : i32 to index
    %c0_185 = arith.constant 0 : index
    %528 = vector.load %arg12[%527, %c0_185] : memref<128x512xbf16, #tpu.memory_space<vmem>>, vector<16x512xbf16>
    %529 = arith.extf %528 : vector<16x512xbf16> to vector<16x512xf32>
    %cst_186 = arith.constant dense<0.000000e+00> : vector<16x512xf32>
    %530 = tpu.matmul %512, %16, %cst_186 {dimension_numbers = #tpu.dot_dimension_numbers<[1], [0], [0], [1], [0, 0, 1, 1], [], []>} : vector<16x128xbf16>, vector<128x512xbf16>, vector<16x512xf32> -> vector<16x512xf32>
    %531 = arith.addf %529, %530 : vector<16x512xf32>
    %532 = vector.extract_strided_slice %526 {offsets = [0, 0], sizes = [16, 128], strides = [1, 1]} : vector<16x512xf32> to vector<16x128xf32>
    %cst_187 = arith.constant 5.000000e-01 : f32
    %533 = vector.broadcast %cst_187 : f32 to vector<16x128xf32>
    %534 = arith.mulf %533, %532 : vector<16x128xf32>
    %535 = math.tanh %534 : vector<16x128xf32>
    %cst_188 = arith.constant 1.000000e+00 : f32
    %536 = vector.broadcast %cst_188 : f32 to vector<16x128xf32>
    %537 = arith.addf %535, %536 : vector<16x128xf32>
    %cst_189 = arith.constant 5.000000e-01 : f32
    %538 = vector.broadcast %cst_189 : f32 to vector<16x128xf32>
    %539 = arith.mulf %538, %537 : vector<16x128xf32>
    %540 = vector.extract_strided_slice %526 {offsets = [0, 128], sizes = [16, 128], strides = [1, 1]} : vector<16x512xf32> to vector<16x128xf32>
    %cst_190 = arith.constant 5.000000e-01 : f32
    %541 = vector.broadcast %cst_190 : f32 to vector<16x128xf32>
    %542 = arith.mulf %541, %540 : vector<16x128xf32>
    %543 = math.tanh %542 : vector<16x128xf32>
    %cst_191 = arith.constant 1.000000e+00 : f32
    %544 = vector.broadcast %cst_191 : f32 to vector<16x128xf32>
    %545 = arith.addf %543, %544 : vector<16x128xf32>
    %cst_192 = arith.constant 5.000000e-01 : f32
    %546 = vector.broadcast %cst_192 : f32 to vector<16x128xf32>
    %547 = arith.mulf %546, %545 : vector<16x128xf32>
    %548 = vector.extract_strided_slice %526 {offsets = [0, 256], sizes = [16, 128], strides = [1, 1]} : vector<16x512xf32> to vector<16x128xf32>
    %549 = math.tanh %548 : vector<16x128xf32>
    %550 = vector.extract_strided_slice %526 {offsets = [0, 384], sizes = [16, 128], strides = [1, 1]} : vector<16x512xf32> to vector<16x128xf32>
    %cst_193 = arith.constant 5.000000e-01 : f32
    %551 = vector.broadcast %cst_193 : f32 to vector<16x128xf32>
    %552 = arith.mulf %551, %550 : vector<16x128xf32>
    %553 = math.tanh %552 : vector<16x128xf32>
    %cst_194 = arith.constant 1.000000e+00 : f32
    %554 = vector.broadcast %cst_194 : f32 to vector<16x128xf32>
    %555 = arith.addf %553, %554 : vector<16x128xf32>
    %cst_195 = arith.constant 5.000000e-01 : f32
    %556 = vector.broadcast %cst_195 : f32 to vector<16x128xf32>
    %557 = arith.mulf %556, %555 : vector<16x128xf32>
    %558 = arith.mulf %547, %477 : vector<16x128xf32>
    %559 = arith.mulf %539, %549 : vector<16x128xf32>
    %560 = arith.addf %558, %559 : vector<16x128xf32>
    %561 = math.tanh %560 : vector<16x128xf32>
    %562 = arith.mulf %557, %561 : vector<16x128xf32>
    %563 = arith.truncf %562 : vector<16x128xf32> to vector<16x128xbf16>
    %564 = vector.extract_strided_slice %531 {offsets = [0, 0], sizes = [16, 128], strides = [1, 1]} : vector<16x512xf32> to vector<16x128xf32>
    %cst_196 = arith.constant 5.000000e-01 : f32
    %565 = vector.broadcast %cst_196 : f32 to vector<16x128xf32>
    %566 = arith.mulf %565, %564 : vector<16x128xf32>
    %567 = math.tanh %566 : vector<16x128xf32>
    %cst_197 = arith.constant 1.000000e+00 : f32
    %568 = vector.broadcast %cst_197 : f32 to vector<16x128xf32>
    %569 = arith.addf %567, %568 : vector<16x128xf32>
    %cst_198 = arith.constant 5.000000e-01 : f32
    %570 = vector.broadcast %cst_198 : f32 to vector<16x128xf32>
    %571 = arith.mulf %570, %569 : vector<16x128xf32>
    %572 = vector.extract_strided_slice %531 {offsets = [0, 128], sizes = [16, 128], strides = [1, 1]} : vector<16x512xf32> to vector<16x128xf32>
    %cst_199 = arith.constant 5.000000e-01 : f32
    %573 = vector.broadcast %cst_199 : f32 to vector<16x128xf32>
    %574 = arith.mulf %573, %572 : vector<16x128xf32>
    %575 = math.tanh %574 : vector<16x128xf32>
    %cst_200 = arith.constant 1.000000e+00 : f32
    %576 = vector.broadcast %cst_200 : f32 to vector<16x128xf32>
    %577 = arith.addf %575, %576 : vector<16x128xf32>
    %cst_201 = arith.constant 5.000000e-01 : f32
    %578 = vector.broadcast %cst_201 : f32 to vector<16x128xf32>
    %579 = arith.mulf %578, %577 : vector<16x128xf32>
    %580 = vector.extract_strided_slice %531 {offsets = [0, 256], sizes = [16, 128], strides = [1, 1]} : vector<16x512xf32> to vector<16x128xf32>
    %581 = math.tanh %580 : vector<16x128xf32>
    %582 = vector.extract_strided_slice %531 {offsets = [0, 384], sizes = [16, 128], strides = [1, 1]} : vector<16x512xf32> to vector<16x128xf32>
    %cst_202 = arith.constant 5.000000e-01 : f32
    %583 = vector.broadcast %cst_202 : f32 to vector<16x128xf32>
    %584 = arith.mulf %583, %582 : vector<16x128xf32>
    %585 = math.tanh %584 : vector<16x128xf32>
    %cst_203 = arith.constant 1.000000e+00 : f32
    %586 = vector.broadcast %cst_203 : f32 to vector<16x128xf32>
    %587 = arith.addf %585, %586 : vector<16x128xf32>
    %cst_204 = arith.constant 5.000000e-01 : f32
    %588 = vector.broadcast %cst_204 : f32 to vector<16x128xf32>
    %589 = arith.mulf %588, %587 : vector<16x128xf32>
    %590 = arith.mulf %579, %509 : vector<16x128xf32>
    %591 = arith.mulf %571, %581 : vector<16x128xf32>
    %592 = arith.addf %590, %591 : vector<16x128xf32>
    %593 = math.tanh %592 : vector<16x128xf32>
    %594 = arith.mulf %589, %593 : vector<16x128xf32>
    %595 = arith.truncf %594 : vector<16x128xf32> to vector<16x128xbf16>
    %596 = arith.index_cast %518 : i32 to index
    %c0_205 = arith.constant 0 : index
    %597 = vector.load %arg13[%596, %c0_205] : memref<128x128xbf16, #tpu.memory_space<vmem>>, vector<16x128xbf16>
    tpu.vector_store %arg13[%596, %c0_205], %563 {strides = array<i32>} : memref<128x128xbf16, #tpu.memory_space<vmem>>, vector<16x128xbf16>,
    %598 = arith.index_cast %521 : i32 to index
    %c0_206 = arith.constant 0 : index
    %599 = vector.load %arg14[%598, %c0_206] : memref<128x128xbf16, #tpu.memory_space<vmem>>, vector<16x128xbf16>
    tpu.vector_store %arg14[%598, %c0_206], %595 {strides = array<i32>} : memref<128x128xbf16, #tpu.memory_space<vmem>>, vector<16x128xbf16>,
    %c7_i32_207 = arith.constant 7 : i32
    %c16_i32_208 = arith.constant 16 : i32
    %600 = arith.muli %c7_i32_207, %c16_i32_208 : i32
    %601 = tpu.assume_multiple %600, 16 : i32
    %c7_i32_209 = arith.constant 7 : i32
    %602 = arith.subi %c7_i32_209, %c7_i32_207 : i32
    %c16_i32_210 = arith.constant 16 : i32
    %603 = arith.muli %602, %c16_i32_210 : i32
    %604 = tpu.assume_multiple %603, 16 : i32
    %605 = arith.index_cast %601 : i32 to index
    %c0_211 = arith.constant 0 : index
    %606 = vector.load %arg11[%605, %c0_211] : memref<128x512xbf16, #tpu.memory_space<vmem>>, vector<16x512xbf16>
    %607 = arith.extf %606 : vector<16x512xbf16> to vector<16x512xf32>
    %cst_212 = arith.constant dense<0.000000e+00> : vector<16x512xf32>
    %608 = tpu.matmul %563, %15, %cst_212 {dimension_numbers = #tpu.dot_dimension_numbers<[1], [0], [0], [1], [0, 0, 1, 1], [], []>} : vector<16x128xbf16>, vector<128x512xbf16>, vector<16x512xf32> -> vector<16x512xf32>
    %609 = arith.addf %607, %608 : vector<16x512xf32>
    %610 = arith.index_cast %604 : i32 to index
    %c0_213 = arith.constant 0 : index
    %611 = vector.load %arg12[%610, %c0_213] : memref<128x512xbf16, #tpu.memory_space<vmem>>, vector<16x512xbf16>
    %612 = arith.extf %611 : vector<16x512xbf16> to vector<16x512xf32>
    %cst_214 = arith.constant dense<0.000000e+00> : vector<16x512xf32>
    %613 = tpu.matmul %595, %16, %cst_214 {dimension_numbers = #tpu.dot_dimension_numbers<[1], [0], [0], [1], [0, 0, 1, 1], [], []>} : vector<16x128xbf16>, vector<128x512xbf16>, vector<16x512xf32> -> vector<16x512xf32>
    %614 = arith.addf %612, %613 : vector<16x512xf32>
    %615 = vector.extract_strided_slice %609 {offsets = [0, 0], sizes = [16, 128], strides = [1, 1]} : vector<16x512xf32> to vector<16x128xf32>
    %cst_215 = arith.constant 5.000000e-01 : f32
    %616 = vector.broadcast %cst_215 : f32 to vector<16x128xf32>
    %617 = arith.mulf %616, %615 : vector<16x128xf32>
    %618 = math.tanh %617 : vector<16x128xf32>
    %cst_216 = arith.constant 1.000000e+00 : f32
    %619 = vector.broadcast %cst_216 : f32 to vector<16x128xf32>
    %620 = arith.addf %618, %619 : vector<16x128xf32>
    %cst_217 = arith.constant 5.000000e-01 : f32
    %621 = vector.broadcast %cst_217 : f32 to vector<16x128xf32>
    %622 = arith.mulf %621, %620 : vector<16x128xf32>
    %623 = vector.extract_strided_slice %609 {offsets = [0, 128], sizes = [16, 128], strides = [1, 1]} : vector<16x512xf32> to vector<16x128xf32>
    %cst_218 = arith.constant 5.000000e-01 : f32
    %624 = vector.broadcast %cst_218 : f32 to vector<16x128xf32>
    %625 = arith.mulf %624, %623 : vector<16x128xf32>
    %626 = math.tanh %625 : vector<16x128xf32>
    %cst_219 = arith.constant 1.000000e+00 : f32
    %627 = vector.broadcast %cst_219 : f32 to vector<16x128xf32>
    %628 = arith.addf %626, %627 : vector<16x128xf32>
    %cst_220 = arith.constant 5.000000e-01 : f32
    %629 = vector.broadcast %cst_220 : f32 to vector<16x128xf32>
    %630 = arith.mulf %629, %628 : vector<16x128xf32>
    %631 = vector.extract_strided_slice %609 {offsets = [0, 256], sizes = [16, 128], strides = [1, 1]} : vector<16x512xf32> to vector<16x128xf32>
    %632 = math.tanh %631 : vector<16x128xf32>
    %633 = vector.extract_strided_slice %609 {offsets = [0, 384], sizes = [16, 128], strides = [1, 1]} : vector<16x512xf32> to vector<16x128xf32>
    %cst_221 = arith.constant 5.000000e-01 : f32
    %634 = vector.broadcast %cst_221 : f32 to vector<16x128xf32>
    %635 = arith.mulf %634, %633 : vector<16x128xf32>
    %636 = math.tanh %635 : vector<16x128xf32>
    %cst_222 = arith.constant 1.000000e+00 : f32
    %637 = vector.broadcast %cst_222 : f32 to vector<16x128xf32>
    %638 = arith.addf %636, %637 : vector<16x128xf32>
    %cst_223 = arith.constant 5.000000e-01 : f32
    %639 = vector.broadcast %cst_223 : f32 to vector<16x128xf32>
    %640 = arith.mulf %639, %638 : vector<16x128xf32>
    %641 = arith.mulf %630, %560 : vector<16x128xf32>
    %642 = arith.mulf %622, %632 : vector<16x128xf32>
    %643 = arith.addf %641, %642 : vector<16x128xf32>
    %644 = math.tanh %643 : vector<16x128xf32>
    %645 = arith.mulf %640, %644 : vector<16x128xf32>
    %646 = arith.truncf %645 : vector<16x128xf32> to vector<16x128xbf16>
    %647 = vector.extract_strided_slice %614 {offsets = [0, 0], sizes = [16, 128], strides = [1, 1]} : vector<16x512xf32> to vector<16x128xf32>
    %cst_224 = arith.constant 5.000000e-01 : f32
    %648 = vector.broadcast %cst_224 : f32 to vector<16x128xf32>
    %649 = arith.mulf %648, %647 : vector<16x128xf32>
    %650 = math.tanh %649 : vector<16x128xf32>
    %cst_225 = arith.constant 1.000000e+00 : f32
    %651 = vector.broadcast %cst_225 : f32 to vector<16x128xf32>
    %652 = arith.addf %650, %651 : vector<16x128xf32>
    %cst_226 = arith.constant 5.000000e-01 : f32
    %653 = vector.broadcast %cst_226 : f32 to vector<16x128xf32>
    %654 = arith.mulf %653, %652 : vector<16x128xf32>
    %655 = vector.extract_strided_slice %614 {offsets = [0, 128], sizes = [16, 128], strides = [1, 1]} : vector<16x512xf32> to vector<16x128xf32>
    %cst_227 = arith.constant 5.000000e-01 : f32
    %656 = vector.broadcast %cst_227 : f32 to vector<16x128xf32>
    %657 = arith.mulf %656, %655 : vector<16x128xf32>
    %658 = math.tanh %657 : vector<16x128xf32>
    %cst_228 = arith.constant 1.000000e+00 : f32
    %659 = vector.broadcast %cst_228 : f32 to vector<16x128xf32>
    %660 = arith.addf %658, %659 : vector<16x128xf32>
    %cst_229 = arith.constant 5.000000e-01 : f32
    %661 = vector.broadcast %cst_229 : f32 to vector<16x128xf32>
    %662 = arith.mulf %661, %660 : vector<16x128xf32>
    %663 = vector.extract_strided_slice %614 {offsets = [0, 256], sizes = [16, 128], strides = [1, 1]} : vector<16x512xf32> to vector<16x128xf32>
    %664 = math.tanh %663 : vector<16x128xf32>
    %665 = vector.extract_strided_slice %614 {offsets = [0, 384], sizes = [16, 128], strides = [1, 1]} : vector<16x512xf32> to vector<16x128xf32>
    %cst_230 = arith.constant 5.000000e-01 : f32
    %666 = vector.broadcast %cst_230 : f32 to vector<16x128xf32>
    %667 = arith.mulf %666, %665 : vector<16x128xf32>
    %668 = math.tanh %667 : vector<16x128xf32>
    %cst_231 = arith.constant 1.000000e+00 : f32
    %669 = vector.broadcast %cst_231 : f32 to vector<16x128xf32>
    %670 = arith.addf %668, %669 : vector<16x128xf32>
    %cst_232 = arith.constant 5.000000e-01 : f32
    %671 = vector.broadcast %cst_232 : f32 to vector<16x128xf32>
    %672 = arith.mulf %671, %670 : vector<16x128xf32>
    %673 = arith.mulf %662, %592 : vector<16x128xf32>
    %674 = arith.mulf %654, %664 : vector<16x128xf32>
    %675 = arith.addf %673, %674 : vector<16x128xf32>
    %676 = math.tanh %675 : vector<16x128xf32>
    %677 = arith.mulf %672, %676 : vector<16x128xf32>
    %678 = arith.truncf %677 : vector<16x128xf32> to vector<16x128xbf16>
    %679 = arith.index_cast %601 : i32 to index
    %c0_233 = arith.constant 0 : index
    %680 = vector.load %arg13[%679, %c0_233] : memref<128x128xbf16, #tpu.memory_space<vmem>>, vector<16x128xbf16>
    tpu.vector_store %arg13[%679, %c0_233], %646 {strides = array<i32>} : memref<128x128xbf16, #tpu.memory_space<vmem>>, vector<16x128xbf16>,
    %681 = arith.index_cast %604 : i32 to index
    %c0_234 = arith.constant 0 : index
    %682 = vector.load %arg14[%681, %c0_234] : memref<128x128xbf16, #tpu.memory_space<vmem>>, vector<16x128xbf16>
    tpu.vector_store %arg14[%681, %c0_234], %678 {strides = array<i32>} : memref<128x128xbf16, #tpu.memory_space<vmem>>, vector<16x128xbf16>,
    %c8_i32 = arith.constant 8 : i32
    %c0_235 = arith.constant 0 : index
    %c0_236 = arith.constant 0 : index
    %683 = vector.load %arg13[%c0_235, %c0_236] : memref<128x128xbf16, #tpu.memory_space<vmem>>, vector<128x128xbf16>
    %c0_237 = arith.constant 0 : index
    %c0_238 = arith.constant 0 : index
    %684 = vector.load %arg7[%c0_237, %c0_238] : memref<128x128xbf16, #tpu.memory_space<vmem>>, vector<128x128xbf16>
    %cst_239 = arith.constant dense<0.000000e+00> : vector<128x128xf32>
    %685 = tpu.matmul %683, %684, %cst_239 {dimension_numbers = #tpu.dot_dimension_numbers<[1], [0], [0], [1], [0, 0, 1, 1], [], []>} : vector<128x128xbf16>, vector<128x128xbf16>, vector<128x128xf32> -> vector<128x128xf32>
    %c0_240 = arith.constant 0 : index
    %c0_241 = arith.constant 0 : index
    %686 = vector.load %arg14[%c0_240, %c0_241] : memref<128x128xbf16, #tpu.memory_space<vmem>>, vector<128x128xbf16>
    %c0_242 = arith.constant 0 : index
    %c0_243 = arith.constant 0 : index
    %687 = vector.load %arg8[%c0_242, %c0_243] : memref<128x128xbf16, #tpu.memory_space<vmem>>, vector<128x128xbf16>
    %cst_244 = arith.constant dense<0.000000e+00> : vector<128x128xf32>
    %688 = tpu.matmul %686, %687, %cst_244 {dimension_numbers = #tpu.dot_dimension_numbers<[1], [0], [0], [1], [0, 0, 1, 1], [], []>} : vector<128x128xbf16>, vector<128x128xbf16>, vector<128x128xf32> -> vector<128x128xf32>
    %689 = arith.addf %685, %688 : vector<128x128xf32>
    %c0_245 = arith.constant 0 : index
    %c0_246 = arith.constant 0 : index
    %690 = vector.load %arg9[%c0_245, %c0_246] : memref<1x128xf32, #tpu.memory_space<vmem>>, vector<1x128xf32>
    %691 = vector.broadcast %690 : vector<1x128xf32> to vector<128x128xf32>
    %692 = arith.addf %689, %691 : vector<128x128xf32>
    %c0_247 = arith.constant 0 : index
    %c0_248 = arith.constant 0 : index
    %693 = vector.load %arg10[%c0_247, %c0_248] : memref<128x128xf32, #tpu.memory_space<vmem>>, vector<128x128xf32>
    tpu.vector_store %arg10[%c0_247, %c0_248], %692 {strides = array<i32>} : memref<128x128xf32, #tpu.memory_space<vmem>>, vector<128x128xf32>,
    return
  }
}

</mosaic_0001>

<llo_original>
// kernel: tpu_custom_call.1
$region0: #{tpu_custom_call.1}
  #allocation0 [shape = 'u32[]', space=smem, size = 0x4, offset = 0x4, fixed_abs, tag = 'smem constant byte address 0x4 - core index']
  #allocation1 [shape = 'u32[72,128]{1,0:T(1,128)}', space=vmem, size = 0x9000, scoped, tag = 'internal scratch']
  #allocation2 [shape = 'bf16[128,512]{1,0:T(8,128)(2,1)}', space=vmem, size = 0x20000, scoped, tag = 'scratch operand']
  #allocation3 [shape = 'bf16[128,512]{1,0:T(8,128)(2,1)}', space=vmem, size = 0x20000, scoped, tag = 'scratch operand']
  #allocation4 [shape = 'bf16[128,128]{1,0:T(8,128)(2,1)}', space=vmem, size = 0x8000, scoped, tag = 'scratch operand']
  #allocation5 [shape = 'bf16[128,128]{1,0:T(8,128)(2,1)}', space=vmem, size = 0x8000, scoped, tag = 'scratch operand']
  %s0 = inlined_call_operand.vmem [shape: bf16[128,32], index: 0, kind: input, shape index: {}]
  %s1 = inlined_call_operand.vmem [shape: bf16[32,512], index: 1, kind: input, shape index: {}]
  %s2 = inlined_call_operand.hbm [shape: bf16[128,512], index: 2, kind: input, shape index: {}]
  %s3 = inlined_call_operand.vmem [shape: f32[1,512], index: 3, kind: input, shape index: {}]
  %s4 = inlined_call_operand.hbm [shape: bf16[32,512], index: 4, kind: input, shape index: {}]
  %s5 = inlined_call_operand.hbm [shape: bf16[128,512], index: 5, kind: input, shape index: {}]
  %s6 = inlined_call_operand.vmem [shape: f32[1,512], index: 6, kind: input, shape index: {}]
  %s7 = inlined_call_operand.hbm [shape: bf16[128,128], index: 7, kind: input, shape index: {}]
  %s8 = inlined_call_operand.hbm [shape: bf16[128,128], index: 8, kind: input, shape index: {}]
  %s9 = inlined_call_operand.vmem [shape: f32[1,128], index: 9, kind: input, shape index: {}]
  %s10 = inlined_call_operand.hbm [shape: f32[128,128], index: 10, kind: output, shape index: {}]
  %s11 = sld [smem:[#allocation0]]
  $region70: #{tpu_custom_call.1} parent=0
    _
  %s13 = ssub.s32 1, %s11
  %s14 = scalar_select 0, %s13, %s11
  $region1: #{tpu_custom_call.1} parent=0
    #allocation6 [shape = 'u8[131072]{0}', space=vmem, size = 0x20000, scoped, tag = 'input window, operand 2, single buffered']
    #allocation7 [shape = 's32[1]{0}', space=sflag, size = 0x4, scoped, tag = 'scoped memory for tpu_custom_call.1']
    #allocation8 [shape = 's32[1]{0}', space=sflag, size = 0x4, scoped, tag = 'scoped memory for tpu_custom_call.1']
    #allocation9 [shape = 'u8[32768]{0}', space=vmem, size = 0x8000, scoped, tag = 'input window, operand 4, single buffered']
    #allocation10 [shape = 's32[1]{0}', space=sflag, size = 0x4, scoped, tag = 'scoped memory for tpu_custom_call.1']
    #allocation11 [shape = 'u8[131072]{0}', space=vmem, size = 0x20000, scoped, tag = 'input window, operand 5, single buffered']
    #allocation12 [shape = 'u8[32768]{0}', space=vmem, size = 0x8000, scoped, tag = 'input window, operand 7, single buffered']
    #allocation13 [shape = 's32[1]{0}', space=sflag, size = 0x4, scoped, tag = 'scoped memory for tpu_custom_call.1']
    #allocation14 [shape = 'u8[32768]{0}', space=vmem, size = 0x8000, scoped, tag = 'input window, operand 8, single buffered']
    #allocation15 [shape = 'u8[65536]{0}', space=vmem, size = 0x10000, scoped, tag = 'output window, operand 0, single buffered']
    %15 = vsyncpa [#allocation7], 0
    %16 = vsyncpa [#allocation10], 0
    %17 = vsyncpa [#allocation13], 0
    %18 = vsyncpa [#allocation8], 0
    // Predicated region
    $region2: #{tpu_custom_call.1} parent=1 // pred_check
      _
    $region3: #{tpu_custom_call.1} parent=1 // pred_check_branch
      %20 = sbr.rel (0) target = $region5
    $region4: #{tpu_custom_call.1} parent=1 // pred_region
      _
    $region5: #{tpu_custom_call.1} parent=1 // pred_fallthru
      _
    // Predicated region
    $region6: #{tpu_custom_call.1} parent=1 // pred_check
      _
    $region7: #{tpu_custom_call.1} parent=1 // pred_check_branch
      %22 = sbr.rel (0) target = $region9
    $region8: #{tpu_custom_call.1} parent=1 // pred_region
      _
    $region9: #{tpu_custom_call.1} parent=1 // pred_fallthru
      _
    // Predicated region
    $region10: #{tpu_custom_call.1} parent=1 // pred_check
      _
    $region11: #{tpu_custom_call.1} parent=1 // pred_check_branch
      %24 = sbr.rel (0) target = $region13
    $region12: #{tpu_custom_call.1} parent=1 // pred_region
      %26 = vsyncadd [#allocation7], 0
      %s27 = sshll.u32 %s2, 4
      %s28 = int_to_ptr.hbm [resolvable:$true] %s27
      %s29 = sshll.u32 [#allocation6], 4
      %s30 = int_to_ptr.vmem [resolvable:$true] %s29
      %35 = dma.hbm_to_vmem [thread:$0]  %s28, 4096, %s30, [#allocation7], 256, 256, 16
    $region13: #{tpu_custom_call.1} parent=1 // pred_fallthru
      _
    // Predicated region
    $region14: #{tpu_custom_call.1} parent=1 // pred_check
      _
    $region15: #{tpu_custom_call.1} parent=1 // pred_check_branch
      %37 = sbr.rel (0) target = $region17
    $region16: #{tpu_custom_call.1} parent=1 // pred_region
      _
    $region17: #{tpu_custom_call.1} parent=1 // pred_fallthru
      _
    // Predicated region
    $region18: #{tpu_custom_call.1} parent=1 // pred_check
      _
    $region19: #{tpu_custom_call.1} parent=1 // pred_check_branch
      %39 = sbr.rel (0) target = $region21
    $region20: #{tpu_custom_call.1} parent=1 // pred_region
      %41 = vsyncadd [#allocation10], 0
      %s42 = sshll.u32 %s4, 4
      %s43 = int_to_ptr.hbm [resolvable:$true] %s42
      %s44 = sshll.u32 [#allocation9], 4
      %s45 = int_to_ptr.vmem [resolvable:$true] %s44
      %50 = dma.hbm_to_vmem [thread:$0]  %s43, 1024, %s45, [#allocation10], 256, 256, 16
    $region21: #{tpu_custom_call.1} parent=1 // pred_fallthru
      _
    // Predicated region
    $region22: #{tpu_custom_call.1} parent=1 // pred_check
      _
    $region23: #{tpu_custom_call.1} parent=1 // pred_check_branch
      %52 = sbr.rel (0) target = $region25
    $region24: #{tpu_custom_call.1} parent=1 // pred_region
      %54 = vsyncadd [#allocation10], 0
      %s55 = sshll.u32 %s5, 4
      %s56 = int_to_ptr.hbm [resolvable:$true] %s55
      %s57 = sshll.u32 [#allocation11], 4
      %s58 = int_to_ptr.vmem [resolvable:$true] %s57
      %63 = dma.hbm_to_vmem [thread:$0]  %s56, 4096, %s58, [#allocation10], 256, 256, 16
    $region25: #{tpu_custom_call.1} parent=1 // pred_fallthru
      _
    // Predicated region
    $region26: #{tpu_custom_call.1} parent=1 // pred_check
      _
    $region27: #{tpu_custom_call.1} parent=1 // pred_check_branch
      %65 = sbr.rel (0) target = $region29
    $region28: #{tpu_custom_call.1} parent=1 // pred_region
      _
    $region29: #{tpu_custom_call.1} parent=1 // pred_fallthru
      _
    // Predicated region
    $region30: #{tpu_custom_call.1} parent=1 // pred_check
      _
    $region31: #{tpu_custom_call.1} parent=1 // pred_check_branch
      %67 = sbr.rel (0) target = $region33
    $region32: #{tpu_custom_call.1} parent=1 // pred_region
      %69 = vsyncadd [#allocation13], 0
      %s70 = sshll.u32 %s7, 4
      %s71 = int_to_ptr.hbm [resolvable:$true] %s70
      %s72 = sshll.u32 [#allocation12], 4
      %s73 = int_to_ptr.vmem [resolvable:$true] %s72
      %78 = dma.hbm_to_vmem [thread:$0]  %s71, 1024, %s73, [#allocation13], 64, 64, 4
    $region33: #{tpu_custom_call.1} parent=1 // pred_fallthru
      _
    // Predicated region
    $region34: #{tpu_custom_call.1} parent=1 // pred_check
      _
    $region35: #{tpu_custom_call.1} parent=1 // pred_check_branch
      %80 = sbr.rel (0) target = $region37
    $region36: #{tpu_custom_call.1} parent=1 // pred_region
      %82 = vsyncadd [#allocation13], 0
      %s83 = sshll.u32 %s8, 4
      %s84 = int_to_ptr.hbm [resolvable:$true] %s83
      %s85 = sshll.u32 [#allocation14], 4
      %s86 = int_to_ptr.vmem [resolvable:$true] %s85
      %91 = dma.hbm_to_vmem [thread:$0]  %s84, 1024, %s86, [#allocation13], 64, 64, 4
    $region37: #{tpu_custom_call.1} parent=1 // pred_fallthru
      _
    // Predicated region
    $region38: #{tpu_custom_call.1} parent=1 // pred_check
      _
    $region39: #{tpu_custom_call.1} parent=1 // pred_check_branch
      %93 = sbr.rel (0) target = $region41
    $region40: #{tpu_custom_call.1} parent=1 // pred_region
      _
    $region41: #{tpu_custom_call.1} parent=1 // pred_fallthru
      _
    // Predicated region
    $region42: #{tpu_custom_call.1} parent=1 // pred_check
      _
    $region43: #{tpu_custom_call.1} parent=1 // pred_check_branch
      %95 = sbr.rel (0) target = $region45
    $region44: #{tpu_custom_call.1} parent=1 // pred_region
      %97 = dma.done [#allocation7], 4096
    $region45: #{tpu_custom_call.1} parent=1 // pred_fallthru
      _
    // Predicated region
    $region46: #{tpu_custom_call.1} parent=1 // pred_check
      _
    $region47: #{tpu_custom_call.1} parent=1 // pred_check_branch
      %99 = sbr.rel (0) target = $region49
    $region48: #{tpu_custom_call.1} parent=1 // pred_region
      %101 = dma.done [#allocation10], 1024
    $region49: #{tpu_custom_call.1} parent=1 // pred_fallthru
      _
    // Predicated region
    $region50: #{tpu_custom_call.1} parent=1 // pred_check
      _
    $region51: #{tpu_custom_call.1} parent=1 // pred_check_branch
      %103 = sbr.rel (0) target = $region53
    $region52: #{tpu_custom_call.1} parent=1 // pred_region
      %105 = dma.done [#allocation10], 4096
    $region53: #{tpu_custom_call.1} parent=1 // pred_fallthru
      _
    // Predicated region
    $region54: #{tpu_custom_call.1} parent=1 // pred_check
      _
    $region55: #{tpu_custom_call.1} parent=1 // pred_check_branch
      %107 = sbr.rel (0) target = $region57
    $region56: #{tpu_custom_call.1} parent=1 // pred_region
      %109 = dma.done [#allocation13], 1024
    $region57: #{tpu_custom_call.1} parent=1 // pred_fallthru
      _
    // Predicated region
    $region58: #{tpu_custom_call.1} parent=1 // pred_check
      _
    $region59: #{tpu_custom_call.1} parent=1 // pred_check_branch
      %111 = sbr.rel (0) target = $region61
    $region60: #{tpu_custom_call.1} parent=1 // pred_region
      %113 = dma.done [#allocation13], 1024
    $region61: #{tpu_custom_call.1} parent=1 // pred_fallthru
      _
    %v115 = vld [vmem:[%s0] sm:$0xf]
    %v116 = vld [vmem:[%s0 + $0x4] sm:$0xf]
    %v117 = vld [vmem:[%s0 + $0x8] sm:$0xf]
    %v118 = vld [vmem:[%s0 + $0xc] sm:$0xf]
    %v119 = vld [vmem:[%s0 + $0x10] sm:$0xf]
    %v120 = vld [vmem:[%s0 + $0x14] sm:$0xf]
    %v121 = vld [vmem:[%s0 + $0x18] sm:$0xf]
    %v122 = vld [vmem:[%s0 + $0x1c] sm:$0xf]
    %v123 = vld [vmem:[%s0 + $0x20] sm:$0xf]
    %v124 = vld [vmem:[%s0 + $0x24] sm:$0xf]
    %v125 = vld [vmem:[%s0 + $0x28] sm:$0xf]
    %v126 = vld [vmem:[%s0 + $0x2c] sm:$0xf]
    %v127 = vld [vmem:[%s0 + $0x30] sm:$0xf]
    %v128 = vld [vmem:[%s0 + $0x34] sm:$0xf]
    %v129 = vld [vmem:[%s0 + $0x38] sm:$0xf]
    %v130 = vld [vmem:[%s0 + $0x3c] sm:$0xf]
    %v131 = vld [vmem:[%s1] sm:$0xff]
    %v132 = vld [vmem:[%s1 + $0x8] sm:$0xff]
    %v133 = vld [vmem:[%s1 + $0x10] sm:$0xff]
    %v134 = vld [vmem:[%s1 + $0x18] sm:$0xff]
    %v135 = vld [vmem:[%s1 + $0x20] sm:$0xff]
    %v136 = vld [vmem:[%s1 + $0x28] sm:$0xff]
    %v137 = vld [vmem:[%s1 + $0x30] sm:$0xff]
    %v138 = vld [vmem:[%s1 + $0x38] sm:$0xff]
    %v139 = vld [vmem:[%s3] sm:$0xf]
    %v141 = vperm.slane %v139, 0
    %v142 = vperm.slane %v139, 1
    %v143 = vperm.slane %v139, 2
    %v144 = vperm.slane %v139, 3
    %v165 = vunpack.c.l.b16 %v115
    %v166 = vunpack.c.l.b16 %v116
    %v167 = vunpack.c.l.b16 %v117
    %v168 = vunpack.c.l.b16 %v118
    %v169 = vunpack.c.l.b16 %v119
    %v170 = vunpack.c.l.b16 %v120
    %v171 = vunpack.c.l.b16 %v121
    %v172 = vunpack.c.l.b16 %v122
    %v173 = vunpack.c.l.b16 %v123
    %v174 = vunpack.c.l.b16 %v124
    %v175 = vunpack.c.l.b16 %v125
    %v176 = vunpack.c.l.b16 %v126
    %v177 = vunpack.c.l.b16 %v127
    %v178 = vunpack.c.l.b16 %v128
    %v179 = vunpack.c.l.b16 %v129
    %v180 = vunpack.c.l.b16 %v130
    %v181 = vpack.c.b16 %v166, %v165
    %v182 = vpack.c.b16 %v168, %v167
    %v183 = vpack.c.b16 %v170, %v169
    %v184 = vpack.c.b16 %v172, %v171
    %v185 = vpack.c.b16 %v174, %v173
    %v186 = vpack.c.b16 %v176, %v175
    %v187 = vpack.c.b16 %v178, %v177
    %v188 = vpack.c.b16 %v180, %v179
    %v197 = vunpack.c.l.b16 %v131
    %v198 = vunpack.c.h.b16 %v131
    %v199 = vunpack.c.l.b16 %v132
    %v200 = vunpack.c.h.b16 %v132
    %v201 = vunpack.c.l.b16 %v133
    %v202 = vunpack.c.h.b16 %v133
    %v203 = vunpack.c.l.b16 %v134
    %v204 = vunpack.c.h.b16 %v134
    %v205 = vunpack.c.l.b16 %v135
    %v206 = vunpack.c.h.b16 %v135
    %v207 = vunpack.c.l.b16 %v136
    %v208 = vunpack.c.h.b16 %v136
    %v209 = vunpack.c.l.b16 %v137
    %v210 = vunpack.c.h.b16 %v137
    %v211 = vunpack.c.l.b16 %v138
    %v212 = vunpack.c.h.b16 %v138
    %v213 = vpack.c.b16 %v201, %v197
    %v214 = vpack.c.b16 %v202, %v198
    %v215 = vpack.c.b16 %v203, %v199
    %v216 = vpack.c.b16 %v204, %v200
    %v217 = vpack.c.b16 %v209, %v205
    %v218 = vpack.c.b16 %v210, %v206
    %v219 = vpack.c.b16 %v211, %v207
    %v220 = vpack.c.b16 %v212, %v208
    %vm229 = vcmask 261120
    %v231 = vsel %vm229, %v181, 0
    %v234 = vsel %vm229, %v182, 0
    %v237 = vsel %vm229, %v183, 0
    %v240 = vsel %vm229, %v184, 0
    %v243 = vsel %vm229, %v185, 0
    %v246 = vsel %vm229, %v186, 0
    %v249 = vsel %vm229, %v187, 0
    %v252 = vsel %vm229, %v188, 0
    %254 = vmatpush.bf16.msra.mxu0 0
    %255 = vmatpush.bf16.msra.mxu0 0
    %256 = vmatpush.bf16.msra.mxu0 0
    %257 = vmatpush.bf16.msra.mxu0 0
    %258 = vmatpush.bf16.msra.mxu0 0
    %259 = vmatpush.bf16.msra.mxu0 0
    %260 = vmatpush.bf16.msra.mxu0 %v217
    %261 = vmatpush.bf16.msra.mxu0 %v213
    %262 = vmatmul.bf16.gmra.mxu0 %v231
    %v263 = vpop.f32.mrf.mxu0
    %v264 = vadd.f32 %v141, %v263
    %v265 = vpop.f32.mrf.mxu0
    %v266 = vadd.f32 %v141, %v265
    %267 = vmatmul.bf16.gmra.mxu0 %v234
    %v268 = vpop.f32.mrf.mxu0
    %v269 = vadd.f32 %v141, %v268
    %v270 = vpop.f32.mrf.mxu0
    %v271 = vadd.f32 %v141, %v270
    %272 = vmatmul.bf16.gmra.mxu0 %v237
    %v273 = vpop.f32.mrf.mxu0
    %v274 = vadd.f32 %v141, %v273
    %v275 = vpop.f32.mrf.mxu0
    %v276 = vadd.f32 %v141, %v275
    %277 = vmatmul.bf16.gmra.mxu0 %v240
    %v278 = vpop.f32.mrf.mxu0
    %v279 = vadd.f32 %v141, %v278
    %v280 = vpop.f32.mrf.mxu0
    %v281 = vadd.f32 %v141, %v280
    %282 = vmatmul.bf16.gmra.mxu0 %v243
    %v283 = vpop.f32.mrf.mxu0
    %v284 = vadd.f32 %v141, %v283
    %v285 = vpop.f32.mrf.mxu0
    %v286 = vadd.f32 %v141, %v285
    %287 = vmatmul.bf16.gmra.mxu0 %v246
    %v288 = vpop.f32.mrf.mxu0
    %v289 = vadd.f32 %v141, %v288
    %v290 = vpop.f32.mrf.mxu0
    %v291 = vadd.f32 %v141, %v290
    %292 = vmatmul.bf16.gmra.mxu0 %v249
    %v293 = vpop.f32.mrf.mxu0
    %v294 = vadd.f32 %v141, %v293
    %v295 = vpop.f32.mrf.mxu0
    %v296 = vadd.f32 %v141, %v295
    %297 = vmatmul.bf16.gmra.mxu0 %v252
    %v298 = vpop.f32.mrf.mxu0
    %v299 = vadd.f32 %v141, %v298
    %v300 = vpop.f32.mrf.mxu0
    %v301 = vadd.f32 %v141, %v300
    %302 = vdwg.mxu0
    %303 = vmatpush.bf16.msra.mxu0 0
    %304 = vmatpush.bf16.msra.mxu0 0
    %305 = vmatpush.bf16.msra.mxu0 0
    %306 = vmatpush.bf16.msra.mxu0 0
    %307 = vmatpush.bf16.msra.mxu0 0
    %308 = vmatpush.bf16.msra.mxu0 0
    %309 = vmatpush.bf16.msra.mxu0 %v218
    %310 = vmatpush.bf16.msra.mxu0 %v214
    %311 = vmatmul.bf16.gmra.mxu0 %v231
    %v312 = vpop.f32.mrf.mxu0
    %v313 = vadd.f32 %v142, %v312
    %v314 = vpop.f32.mrf.mxu0
    %v315 = vadd.f32 %v142, %v314
    %316 = vmatmul.bf16.gmra.mxu0 %v234
    %v317 = vpop.f32.mrf.mxu0
    %v318 = vadd.f32 %v142, %v317
    %v319 = vpop.f32.mrf.mxu0
    %v320 = vadd.f32 %v142, %v319
    %321 = vmatmul.bf16.gmra.mxu0 %v237
    %v322 = vpop.f32.mrf.mxu0
    %v323 = vadd.f32 %v142, %v322
    %v324 = vpop.f32.mrf.mxu0
    %v325 = vadd.f32 %v142, %v324
    %326 = vmatmul.bf16.gmra.mxu0 %v240
    %v327 = vpop.f32.mrf.mxu0
    %v328 = vadd.f32 %v142, %v327
    %v329 = vpop.f32.mrf.mxu0
    %v330 = vadd.f32 %v142, %v329
    %331 = vmatmul.bf16.gmra.mxu0 %v243
    %v332 = vpop.f32.mrf.mxu0
    %v333 = vadd.f32 %v142, %v332
    %v334 = vpop.f32.mrf.mxu0
    %v335 = vadd.f32 %v142, %v334
    %336 = vmatmul.bf16.gmra.mxu0 %v246
    %v337 = vpop.f32.mrf.mxu0
    %v338 = vadd.f32 %v142, %v337
    %v339 = vpop.f32.mrf.mxu0
    %v340 = vadd.f32 %v142, %v339
    %341 = vmatmul.bf16.gmra.mxu0 %v249
    %v342 = vpop.f32.mrf.mxu0
    %v343 = vadd.f32 %v142, %v342
    %v344 = vpop.f32.mrf.mxu0
    %v345 = vadd.f32 %v142, %v344
    %346 = vmatmul.bf16.gmra.mxu0 %v252
    %v347 = vpop.f32.mrf.mxu0
    %v348 = vadd.f32 %v142, %v347
    %v349 = vpop.f32.mrf.mxu0
    %v350 = vadd.f32 %v142, %v349
    %351 = vdwg.mxu0
    %352 = vmatpush.bf16.msra.mxu0 0
    %353 = vmatpush.bf16.msra.mxu0 0
    %354 = vmatpush.bf16.msra.mxu0 0
    %355 = vmatpush.bf16.msra.mxu0 0
    %356 = vmatpush.bf16.msra.mxu0 0
    %357 = vmatpush.bf16.msra.mxu0 0
    %358 = vmatpush.bf16.msra.mxu0 %v219
    %359 = vmatpush.bf16.msra.mxu0 %v215
    %360 = vmatmul.bf16.gmra.mxu0 %v231
    %v361 = vpop.f32.mrf.mxu0
    %v362 = vadd.f32 %v143, %v361
    %v363 = vpop.f32.mrf.mxu0
    %v364 = vadd.f32 %v143, %v363
    %365 = vmatmul.bf16.gmra.mxu0 %v234
    %v366 = vpop.f32.mrf.mxu0
    %v367 = vadd.f32 %v143, %v366
    %v368 = vpop.f32.mrf.mxu0
    %v369 = vadd.f32 %v143, %v368
    %370 = vmatmul.bf16.gmra.mxu0 %v237
    %v371 = vpop.f32.mrf.mxu0
    %v372 = vadd.f32 %v143, %v371
    %v373 = vpop.f32.mrf.mxu0
    %v374 = vadd.f32 %v143, %v373
    %375 = vmatmul.bf16.gmra.mxu0 %v240
    %v376 = vpop.f32.mrf.mxu0
    %v377 = vadd.f32 %v143, %v376
    %v378 = vpop.f32.mrf.mxu0
    %v379 = vadd.f32 %v143, %v378
    %380 = vmatmul.bf16.gmra.mxu0 %v243
    %v381 = vpop.f32.mrf.mxu0
    %v382 = vadd.f32 %v143, %v381
    %v383 = vpop.f32.mrf.mxu0
    %v384 = vadd.f32 %v143, %v383
    %385 = vmatmul.bf16.gmra.mxu0 %v246
    %v386 = vpop.f32.mrf.mxu0
    %v387 = vadd.f32 %v143, %v386
    %v388 = vpop.f32.mrf.mxu0
    %v389 = vadd.f32 %v143, %v388
    %390 = vmatmul.bf16.gmra.mxu0 %v249
    %v391 = vpop.f32.mrf.mxu0
    %v392 = vadd.f32 %v143, %v391
    %v393 = vpop.f32.mrf.mxu0
    %v394 = vadd.f32 %v143, %v393
    %395 = vmatmul.bf16.gmra.mxu0 %v252
    %v396 = vpop.f32.mrf.mxu0
    %v397 = vadd.f32 %v143, %v396
    %v398 = vpop.f32.mrf.mxu0
    %v399 = vadd.f32 %v143, %v398
    %400 = vdwg.mxu0
    %401 = vmatpush.bf16.msra.mxu0 0
    %402 = vmatpush.bf16.msra.mxu0 0
    %403 = vmatpush.bf16.msra.mxu0 0
    %404 = vmatpush.bf16.msra.mxu0 0
    %405 = vmatpush.bf16.msra.mxu0 0
    %406 = vmatpush.bf16.msra.mxu0 0
    %407 = vmatpush.bf16.msra.mxu0 %v220
    %408 = vmatpush.bf16.msra.mxu0 %v216
    %409 = vmatmul.bf16.gmra.mxu0 %v231
    %v410 = vpop.f32.mrf.mxu0
    %v411 = vadd.f32 %v144, %v410
    %v412 = vpop.f32.mrf.mxu0
    %v413 = vadd.f32 %v144, %v412
    %414 = vmatmul.bf16.gmra.mxu0 %v234
    %v415 = vpop.f32.mrf.mxu0
    %v416 = vadd.f32 %v144, %v415
    %v417 = vpop.f32.mrf.mxu0
    %v418 = vadd.f32 %v144, %v417
    %419 = vmatmul.bf16.gmra.mxu0 %v237
    %v420 = vpop.f32.mrf.mxu0
    %v421 = vadd.f32 %v144, %v420
    %v422 = vpop.f32.mrf.mxu0
    %v423 = vadd.f32 %v144, %v422
    %424 = vmatmul.bf16.gmra.mxu0 %v240
    %v425 = vpop.f32.mrf.mxu0
    %v426 = vadd.f32 %v144, %v425
    %v427 = vpop.f32.mrf.mxu0
    %v428 = vadd.f32 %v144, %v427
    %429 = vmatmul.bf16.gmra.mxu0 %v243
    %v430 = vpop.f32.mrf.mxu0
    %v431 = vadd.f32 %v144, %v430
    %v432 = vpop.f32.mrf.mxu0
    %v433 = vadd.f32 %v144, %v432
    %434 = vmatmul.bf16.gmra.mxu0 %v246
    %v435 = vpop.f32.mrf.mxu0
    %v436 = vadd.f32 %v144, %v435
    %v437 = vpop.f32.mrf.mxu0
    %v438 = vadd.f32 %v144, %v437
    %439 = vmatmul.bf16.gmra.mxu0 %v249
    %v440 = vpop.f32.mrf.mxu0
    %v441 = vadd.f32 %v144, %v440
    %v442 = vpop.f32.mrf.mxu0
    %v443 = vadd.f32 %v144, %v442
    %444 = vmatmul.bf16.gmra.mxu0 %v252
    %v445 = vpop.f32.mrf.mxu0
    %v446 = vadd.f32 %v144, %v445
    %v447 = vpop.f32.mrf.mxu0
    %v448 = vadd.f32 %v144, %v447
    %449 = vdwg.mxu0
    %v450 = vpack.c.bf16 %v313, %v264
    %v451 = vpack.c.bf16 %v411, %v362
    %v452 = vpack.c.bf16 %v315, %v266
    %v453 = vpack.c.bf16 %v413, %v364
    %v454 = vpack.c.bf16 %v318, %v269
    %v455 = vpack.c.bf16 %v416, %v367
    %v456 = vpack.c.bf16 %v320, %v271
    %v457 = vpack.c.bf16 %v418, %v369
    %v458 = vpack.c.bf16 %v323, %v274
    %v459 = vpack.c.bf16 %v421, %v372
    %v460 = vpack.c.bf16 %v325, %v276
    %v461 = vpack.c.bf16 %v423, %v374
    %v462 = vpack.c.bf16 %v328, %v279
    %v463 = vpack.c.bf16 %v426, %v377
    %v464 = vpack.c.bf16 %v330, %v281
    %v465 = vpack.c.bf16 %v428, %v379
    %v466 = vpack.c.bf16 %v333, %v284
    %v467 = vpack.c.bf16 %v431, %v382
    %v468 = vpack.c.bf16 %v335, %v286
    %v469 = vpack.c.bf16 %v433, %v384
    %v470 = vpack.c.bf16 %v338, %v289
    %v471 = vpack.c.bf16 %v436, %v387
    %v472 = vpack.c.bf16 %v340, %v291
    %v473 = vpack.c.bf16 %v438, %v389
    %v474 = vpack.c.bf16 %v343, %v294
    %v475 = vpack.c.bf16 %v441, %v392
    %v476 = vpack.c.bf16 %v345, %v296
    %v477 = vpack.c.bf16 %v443, %v394
    %v478 = vpack.c.bf16 %v348, %v299
    %v479 = vpack.c.bf16 %v446, %v397
    %v480 = vpack.c.bf16 %v350, %v301
    %v481 = vpack.c.bf16 %v448, %v399
    %482 = vst [vmem:[#allocation2] sm:$0xff] %v450
    %483 = vst [vmem:[#allocation2 + $0x8] sm:$0xff] %v451
    %484 = vst [vmem:[#allocation2 + $0x10] sm:$0xff] %v452
    %485 = vst [vmem:[#allocation2 + $0x18] sm:$0xff] %v453
    %486 = vst [vmem:[#allocation2 + $0x20] sm:$0xff] %v454
    %487 = vst [vmem:[#allocation2 + $0x28] sm:$0xff] %v455
    %488 = vst [vmem:[#allocation2 + $0x30] sm:$0xff] %v456
    %489 = vst [vmem:[#allocation2 + $0x38] sm:$0xff] %v457
    %490 = vst [vmem:[#allocation2 + $0x40] sm:$0xff] %v458
    %491 = vst [vmem:[#allocation2 + $0x48] sm:$0xff] %v459
    %492 = vst [vmem:[#allocation2 + $0x50] sm:$0xff] %v460
    %493 = vst [vmem:[#allocation2 + $0x58] sm:$0xff] %v461
    %494 = vst [vmem:[#allocation2 + $0x60] sm:$0xff] %v462
    %495 = vst [vmem:[#allocation2 + $0x68] sm:$0xff] %v463
    %496 = vst [vmem:[#allocation2 + $0x70] sm:$0xff] %v464
    %497 = vst [vmem:[#allocation2 + $0x78] sm:$0xff] %v465
    %498 = vst [vmem:[#allocation2 + $0x80] sm:$0xff] %v466
    %499 = vst [vmem:[#allocation2 + $0x88] sm:$0xff] %v467
    %500 = vst [vmem:[#allocation2 + $0x90] sm:$0xff] %v468
    %501 = vst [vmem:[#allocation2 + $0x98] sm:$0xff] %v469
    %502 = vst [vmem:[#allocation2 + $0xa0] sm:$0xff] %v470
    %503 = vst [vmem:[#allocation2 + $0xa8] sm:$0xff] %v471
    %504 = vst [vmem:[#allocation2 + $0xb0] sm:$0xff] %v472
    %505 = vst [vmem:[#allocation2 + $0xb8] sm:$0xff] %v473
    %506 = vst [vmem:[#allocation2 + $0xc0] sm:$0xff] %v474
    %507 = vst [vmem:[#allocation2 + $0xc8] sm:$0xff] %v475
    %508 = vst [vmem:[#allocation2 + $0xd0] sm:$0xff] %v476
    %509 = vst [vmem:[#allocation2 + $0xd8] sm:$0xff] %v477
    %510 = vst [vmem:[#allocation2 + $0xe0] sm:$0xff] %v478
    %511 = vst [vmem:[#allocation2 + $0xe8] sm:$0xff] %v479
    %512 = vst [vmem:[#allocation2 + $0xf0] sm:$0xff] %v480
    %513 = vst [vmem:[#allocation2 + $0xf8] sm:$0xff] %v481
    %v514 = vld [vmem:[#allocation9] sm:$0xff]
    %v515 = vld [vmem:[#allocation9 + $0x8] sm:$0xff]
    %v516 = vld [vmem:[#allocation9 + $0x10] sm:$0xff]
    %v517 = vld [vmem:[#allocation9 + $0x18] sm:$0xff]
    %v518 = vld [vmem:[#allocation9 + $0x20] sm:$0xff]
    %v519 = vld [vmem:[#allocation9 + $0x28] sm:$0xff]
    %v520 = vld [vmem:[#allocation9 + $0x30] sm:$0xff]
    %v521 = vld [vmem:[#allocation9 + $0x38] sm:$0xff]
    %v522 = vld [vmem:[%s6] sm:$0xf]
    %v524 = vperm.slane %v522, 0
    %v525 = vperm.slane %v522, 1
    %v526 = vperm.slane %v522, 2
    %v527 = vperm.slane %v522, 3
    %v540 = vunpack.c.l.b16 %v514
    %v541 = vunpack.c.h.b16 %v514
    %v542 = vunpack.c.l.b16 %v515
    %v543 = vunpack.c.h.b16 %v515
    %v544 = vunpack.c.l.b16 %v516
    %v545 = vunpack.c.h.b16 %v516
    %v546 = vunpack.c.l.b16 %v517
    %v547 = vunpack.c.h.b16 %v517
    %v548 = vunpack.c.l.b16 %v518
    %v549 = vunpack.c.h.b16 %v518
    %v550 = vunpack.c.l.b16 %v519
    %v551 = vunpack.c.h.b16 %v519
    %v552 = vunpack.c.l.b16 %v520
    %v553 = vunpack.c.h.b16 %v520
    %v554 = vunpack.c.l.b16 %v521
    %v555 = vunpack.c.h.b16 %v521
    %v556 = vpack.c.b16 %v544, %v540
    %v557 = vpack.c.b16 %v545, %v541
    %v558 = vpack.c.b16 %v546, %v542
    %v559 = vpack.c.b16 %v547, %v543
    %v560 = vpack.c.b16 %v552, %v548
    %v561 = vpack.c.b16 %v553, %v549
    %v562 = vpack.c.b16 %v554, %v550
    %v563 = vpack.c.b16 %v555, %v551
    %572 = vmatpush.bf16.msra.mxu0 0
    %573 = vmatpush.bf16.msra.mxu0 0
    %574 = vmatpush.bf16.msra.mxu0 0
    %575 = vmatpush.bf16.msra.mxu0 0
    %576 = vmatpush.bf16.msra.mxu0 0
    %577 = vmatpush.bf16.msra.mxu0 0
    %578 = vmatpush.bf16.msra.mxu0 %v560
    %579 = vmatpush.bf16.msra.mxu0 %v556
    %580 = vmatmul.bf16.gmra.mxu0 %v231
    %v581 = vpop.f32.mrf.mxu0
    %v582 = vadd.f32 %v524, %v581
    %v583 = vpop.f32.mrf.mxu0
    %v584 = vadd.f32 %v524, %v583
    %585 = vmatmul.bf16.gmra.mxu0 %v234
    %v586 = vpop.f32.mrf.mxu0
    %v587 = vadd.f32 %v524, %v586
    %v588 = vpop.f32.mrf.mxu0
    %v589 = vadd.f32 %v524, %v588
    %590 = vmatmul.bf16.gmra.mxu0 %v237
    %v591 = vpop.f32.mrf.mxu0
    %v592 = vadd.f32 %v524, %v591
    %v593 = vpop.f32.mrf.mxu0
    %v594 = vadd.f32 %v524, %v593
    %595 = vmatmul.bf16.gmra.mxu0 %v240
    %v596 = vpop.f32.mrf.mxu0
    %v597 = vadd.f32 %v524, %v596
    %v598 = vpop.f32.mrf.mxu0
    %v599 = vadd.f32 %v524, %v598
    %600 = vmatmul.bf16.gmra.mxu0 %v243
    %v601 = vpop.f32.mrf.mxu0
    %v602 = vadd.f32 %v524, %v601
    %v603 = vpop.f32.mrf.mxu0
    %v604 = vadd.f32 %v524, %v603
    %605 = vmatmul.bf16.gmra.mxu0 %v246
    %v606 = vpop.f32.mrf.mxu0
    %v607 = vadd.f32 %v524, %v606
    %v608 = vpop.f32.mrf.mxu0
    %v609 = vadd.f32 %v524, %v608
    %610 = vmatmul.bf16.gmra.mxu0 %v249
    %v611 = vpop.f32.mrf.mxu0
    %v612 = vadd.f32 %v524, %v611
    %v613 = vpop.f32.mrf.mxu0
    %v614 = vadd.f32 %v524, %v613
    %615 = vmatmul.bf16.gmra.mxu0 %v252
    %v616 = vpop.f32.mrf.mxu0
    %v617 = vadd.f32 %v524, %v616
    %v618 = vpop.f32.mrf.mxu0
    %v619 = vadd.f32 %v524, %v618
    %620 = vdwg.mxu0
    %621 = vmatpush.bf16.msra.mxu0 0
    %622 = vmatpush.bf16.msra.mxu0 0
    %623 = vmatpush.bf16.msra.mxu0 0
    %624 = vmatpush.bf16.msra.mxu0 0
    %625 = vmatpush.bf16.msra.mxu0 0
    %626 = vmatpush.bf16.msra.mxu0 0
    %627 = vmatpush.bf16.msra.mxu0 %v561
    %628 = vmatpush.bf16.msra.mxu0 %v557
    %629 = vmatmul.bf16.gmra.mxu0 %v231
    %v630 = vpop.f32.mrf.mxu0
    %v631 = vadd.f32 %v525, %v630
    %v632 = vpop.f32.mrf.mxu0
    %v633 = vadd.f32 %v525, %v632
    %634 = vmatmul.bf16.gmra.mxu0 %v234
    %v635 = vpop.f32.mrf.mxu0
    %v636 = vadd.f32 %v525, %v635
    %v637 = vpop.f32.mrf.mxu0
    %v638 = vadd.f32 %v525, %v637
    %639 = vmatmul.bf16.gmra.mxu0 %v237
    %v640 = vpop.f32.mrf.mxu0
    %v641 = vadd.f32 %v525, %v640
    %v642 = vpop.f32.mrf.mxu0
    %v643 = vadd.f32 %v525, %v642
    %644 = vmatmul.bf16.gmra.mxu0 %v240
    %v645 = vpop.f32.mrf.mxu0
    %v646 = vadd.f32 %v525, %v645
    %v647 = vpop.f32.mrf.mxu0
    %v648 = vadd.f32 %v525, %v647
    %649 = vmatmul.bf16.gmra.mxu0 %v243
    %v650 = vpop.f32.mrf.mxu0
    %v651 = vadd.f32 %v525, %v650
    %v652 = vpop.f32.mrf.mxu0
    %v653 = vadd.f32 %v525, %v652
    %654 = vmatmul.bf16.gmra.mxu0 %v246
    %v655 = vpop.f32.mrf.mxu0
    %v656 = vadd.f32 %v525, %v655
    %v657 = vpop.f32.mrf.mxu0
    %v658 = vadd.f32 %v525, %v657
    %659 = vmatmul.bf16.gmra.mxu0 %v249
    %v660 = vpop.f32.mrf.mxu0
    %v661 = vadd.f32 %v525, %v660
    %v662 = vpop.f32.mrf.mxu0
    %v663 = vadd.f32 %v525, %v662
    %664 = vmatmul.bf16.gmra.mxu0 %v252
    %v665 = vpop.f32.mrf.mxu0
    %v666 = vadd.f32 %v525, %v665
    %v667 = vpop.f32.mrf.mxu0
    %v668 = vadd.f32 %v525, %v667
    %669 = vdwg.mxu0
    %670 = vmatpush.bf16.msra.mxu0 0
    %671 = vmatpush.bf16.msra.mxu0 0
    %672 = vmatpush.bf16.msra.mxu0 0
    %673 = vmatpush.bf16.msra.mxu0 0
    %674 = vmatpush.bf16.msra.mxu0 0
    %675 = vmatpush.bf16.msra.mxu0 0
    %676 = vmatpush.bf16.msra.mxu0 %v562
    %677 = vmatpush.bf16.msra.mxu0 %v558
    %678 = vmatmul.bf16.gmra.mxu0 %v231
    %v679 = vpop.f32.mrf.mxu0
    %v680 = vadd.f32 %v526, %v679
    %v681 = vpop.f32.mrf.mxu0
    %v682 = vadd.f32 %v526, %v681
    %683 = vmatmul.bf16.gmra.mxu0 %v234
    %v684 = vpop.f32.mrf.mxu0
    %v685 = vadd.f32 %v526, %v684
    %v686 = vpop.f32.mrf.mxu0
    %v687 = vadd.f32 %v526, %v686
    %688 = vmatmul.bf16.gmra.mxu0 %v237
    %v689 = vpop.f32.mrf.mxu0
    %v690 = vadd.f32 %v526, %v689
    %v691 = vpop.f32.mrf.mxu0
    %v692 = vadd.f32 %v526, %v691
    %693 = vmatmul.bf16.gmra.mxu0 %v240
    %v694 = vpop.f32.mrf.mxu0
    %v695 = vadd.f32 %v526, %v694
    %v696 = vpop.f32.mrf.mxu0
    %v697 = vadd.f32 %v526, %v696
    %698 = vmatmul.bf16.gmra.mxu0 %v243
    %v699 = vpop.f32.mrf.mxu0
    %v700 = vadd.f32 %v526, %v699
    %v701 = vpop.f32.mrf.mxu0
    %v702 = vadd.f32 %v526, %v701
    %703 = vmatmul.bf16.gmra.mxu0 %v246
    %v704 = vpop.f32.mrf.mxu0
    %v705 = vadd.f32 %v526, %v704
    %v706 = vpop.f32.mrf.mxu0
    %v707 = vadd.f32 %v526, %v706
    %708 = vmatmul.bf16.gmra.mxu0 %v249
    %v709 = vpop.f32.mrf.mxu0
    %v710 = vadd.f32 %v526, %v709
    %v711 = vpop.f32.mrf.mxu0
    %v712 = vadd.f32 %v526, %v711
    %713 = vmatmul.bf16.gmra.mxu0 %v252
    %v714 = vpop.f32.mrf.mxu0
    %v715 = vadd.f32 %v526, %v714
    %v716 = vpop.f32.mrf.mxu0
    %v717 = vadd.f32 %v526, %v716
    %718 = vdwg.mxu0
    %719 = vmatpush.bf16.msra.mxu0 0
    %720 = vmatpush.bf16.msra.mxu0 0
    %721 = vmatpush.bf16.msra.mxu0 0
    %722 = vmatpush.bf16.msra.mxu0 0
    %723 = vmatpush.bf16.msra.mxu0 0
    %724 = vmatpush.bf16.msra.mxu0 0
    %725 = vmatpush.bf16.msra.mxu0 %v563
    %726 = vmatpush.bf16.msra.mxu0 %v559
    %727 = vmatmul.bf16.gmra.mxu0 %v231
    %v728 = vpop.f32.mrf.mxu0
    %v729 = vadd.f32 %v527, %v728
    %v730 = vpop.f32.mrf.mxu0
    %v731 = vadd.f32 %v527, %v730
    %732 = vmatmul.bf16.gmra.mxu0 %v234
    %v733 = vpop.f32.mrf.mxu0
    %v734 = vadd.f32 %v527, %v733
    %v735 = vpop.f32.mrf.mxu0
    %v736 = vadd.f32 %v527, %v735
    %737 = vmatmul.bf16.gmra.mxu0 %v237
    %v738 = vpop.f32.mrf.mxu0
    %v739 = vadd.f32 %v527, %v738
    %v740 = vpop.f32.mrf.mxu0
    %v741 = vadd.f32 %v527, %v740
    %742 = vmatmul.bf16.gmra.mxu0 %v240
    %v743 = vpop.f32.mrf.mxu0
    %v744 = vadd.f32 %v527, %v743
    %v745 = vpop.f32.mrf.mxu0
    %v746 = vadd.f32 %v527, %v745
    %747 = vmatmul.bf16.gmra.mxu0 %v243
    %v748 = vpop.f32.mrf.mxu0
    %v749 = vadd.f32 %v527, %v748
    %v750 = vpop.f32.mrf.mxu0
    %v751 = vadd.f32 %v527, %v750
    %752 = vmatmul.bf16.gmra.mxu0 %v246
    %v753 = vpop.f32.mrf.mxu0
    %v754 = vadd.f32 %v527, %v753
    %v755 = vpop.f32.mrf.mxu0
    %v756 = vadd.f32 %v527, %v755
    %757 = vmatmul.bf16.gmra.mxu0 %v249
    %v758 = vpop.f32.mrf.mxu0
    %v759 = vadd.f32 %v527, %v758
    %v760 = vpop.f32.mrf.mxu0
    %v761 = vadd.f32 %v527, %v760
    %762 = vmatmul.bf16.gmra.mxu0 %v252
    %v763 = vpop.f32.mrf.mxu0
    %v764 = vadd.f32 %v527, %v763
    %v765 = vpop.f32.mrf.mxu0
    %v766 = vadd.f32 %v527, %v765
    %767 = vdwg.mxu0
    %v768 = vpack.c.bf16 %v631, %v582
    %v769 = vpack.c.bf16 %v729, %v680
    %v770 = vpack.c.bf16 %v633, %v584
    %v771 = vpack.c.bf16 %v731, %v682
    %v772 = vpack.c.bf16 %v636, %v587
    %v773 = vpack.c.bf16 %v734, %v685
    %v774 = vpack.c.bf16 %v638, %v589
    %v775 = vpack.c.bf16 %v736, %v687
    %v776 = vpack.c.bf16 %v641, %v592
    %v777 = vpack.c.bf16 %v739, %v690
    %v778 = vpack.c.bf16 %v643, %v594
    %v779 = vpack.c.bf16 %v741, %v692
    %v780 = vpack.c.bf16 %v646, %v597
    %v781 = vpack.c.bf16 %v744, %v695
    %v782 = vpack.c.bf16 %v648, %v599
    %v783 = vpack.c.bf16 %v746, %v697
    %v784 = vpack.c.bf16 %v651, %v602
    %v785 = vpack.c.bf16 %v749, %v700
    %v786 = vpack.c.bf16 %v653, %v604
    %v787 = vpack.c.bf16 %v751, %v702
    %v788 = vpack.c.bf16 %v656, %v607
    %v789 = vpack.c.bf16 %v754, %v705
    %v790 = vpack.c.bf16 %v658, %v609
    %v791 = vpack.c.bf16 %v756, %v707
    %v792 = vpack.c.bf16 %v661, %v612
    %v793 = vpack.c.bf16 %v759, %v710
    %v794 = vpack.c.bf16 %v663, %v614
    %v795 = vpack.c.bf16 %v761, %v712
    %v796 = vpack.c.bf16 %v666, %v617
    %v797 = vpack.c.bf16 %v764, %v715
    %v798 = vpack.c.bf16 %v668, %v619
    %v799 = vpack.c.bf16 %v766, %v717
    %800 = vst [vmem:[#allocation3] sm:$0xff] %v768
    %801 = vst [vmem:[#allocation3 + $0x8] sm:$0xff] %v769
    %802 = vst [vmem:[#allocation3 + $0x10] sm:$0xff] %v770
    %803 = vst [vmem:[#allocation3 + $0x18] sm:$0xff] %v771
    %804 = vst [vmem:[#allocation3 + $0x20] sm:$0xff] %v772
    %805 = vst [vmem:[#allocation3 + $0x28] sm:$0xff] %v773
    %806 = vst [vmem:[#allocation3 + $0x30] sm:$0xff] %v774
    %807 = vst [vmem:[#allocation3 + $0x38] sm:$0xff] %v775
    %808 = vst [vmem:[#allocation3 + $0x40] sm:$0xff] %v776
    %809 = vst [vmem:[#allocation3 + $0x48] sm:$0xff] %v777
    %810 = vst [vmem:[#allocation3 + $0x50] sm:$0xff] %v778
    %811 = vst [vmem:[#allocation3 + $0x58] sm:$0xff] %v779
    %812 = vst [vmem:[#allocation3 + $0x60] sm:$0xff] %v780
    %813 = vst [vmem:[#allocation3 + $0x68] sm:$0xff] %v781
    %814 = vst [vmem:[#allocation3 + $0x70] sm:$0xff] %v782
    %815 = vst [vmem:[#allocation3 + $0x78] sm:$0xff] %v783
    %816 = vst [vmem:[#allocation3 + $0x80] sm:$0xff] %v784
    %817 = vst [vmem:[#allocation3 + $0x88] sm:$0xff] %v785
    %818 = vst [vmem:[#allocation3 + $0x90] sm:$0xff] %v786
    %819 = vst [vmem:[#allocation3 + $0x98] sm:$0xff] %v787
    %820 = vst [vmem:[#allocation3 + $0xa0] sm:$0xff] %v788
    %821 = vst [vmem:[#allocation3 + $0xa8] sm:$0xff] %v789
    %822 = vst [vmem:[#allocation3 + $0xb0] sm:$0xff] %v790
    %823 = vst [vmem:[#allocation3 + $0xb8] sm:$0xff] %v791
    %824 = vst [vmem:[#allocation3 + $0xc0] sm:$0xff] %v792
    %825 = vst [vmem:[#allocation3 + $0xc8] sm:$0xff] %v793
    %826 = vst [vmem:[#allocation3 + $0xd0] sm:$0xff] %v794
    %827 = vst [vmem:[#allocation3 + $0xd8] sm:$0xff] %v795
    %828 = vst [vmem:[#allocation3 + $0xe0] sm:$0xff] %v796
    %829 = vst [vmem:[#allocation3 + $0xe8] sm:$0xff] %v797
    %830 = vst [vmem:[#allocation3 + $0xf0] sm:$0xff] %v798
    %831 = vst [vmem:[#allocation3 + $0xf8] sm:$0xff] %v799
    %v832 = vld [vmem:[#allocation6] sm:$0xff]
    %v833 = vld [vmem:[#allocation6 + $0x8] sm:$0xff]
    %v834 = vld [vmem:[#allocation6 + $0x10] sm:$0xff]
    %v835 = vld [vmem:[#allocation6 + $0x18] sm:$0xff]
    %v836 = vld [vmem:[#allocation6 + $0x20] sm:$0xff]
    %v837 = vld [vmem:[#allocation6 + $0x28] sm:$0xff]
    %v838 = vld [vmem:[#allocation6 + $0x30] sm:$0xff]
    %v839 = vld [vmem:[#allocation6 + $0x38] sm:$0xff]
    %v840 = vld [vmem:[#allocation6 + $0x40] sm:$0xff]
    %v841 = vld [vmem:[#allocation6 + $0x48] sm:$0xff]
    %v842 = vld [vmem:[#allocation6 + $0x50] sm:$0xff]
    %v843 = vld [vmem:[#allocation6 + $0x58] sm:$0xff]
    %v844 = vld [vmem:[#allocation6 + $0x60] sm:$0xff]
    %v845 = vld [vmem:[#allocation6 + $0x68] sm:$0xff]
    %v846 = vld [vmem:[#allocation6 + $0x70] sm:$0xff]
    %v847 = vld [vmem:[#allocation6 + $0x78] sm:$0xff]
    %v848 = vld [vmem:[#allocation6 + $0x80] sm:$0xff]
    %v849 = vld [vmem:[#allocation6 + $0x88] sm:$0xff]
    %v850 = vld [vmem:[#allocation6 + $0x90] sm:$0xff]
    %v851 = vld [vmem:[#allocation6 + $0x98] sm:$0xff]
    %v852 = vld [vmem:[#allocation6 + $0xa0] sm:$0xff]
    %v853 = vld [vmem:[#allocation6 + $0xa8] sm:$0xff]
    %v854 = vld [vmem:[#allocation6 + $0xb0] sm:$0xff]
    %v855 = vld [vmem:[#allocation6 + $0xb8] sm:$0xff]
    %v856 = vld [vmem:[#allocation6 + $0xc0] sm:$0xff]
    %v857 = vld [vmem:[#allocation6 + $0xc8] sm:$0xff]
    %v858 = vld [vmem:[#allocation6 + $0xd0] sm:$0xff]
    %v859 = vld [vmem:[#allocation6 + $0xd8] sm:$0xff]
    %v860 = vld [vmem:[#allocation6 + $0xe0] sm:$0xff]
    %v861 = vld [vmem:[#allocation6 + $0xe8] sm:$0xff]
    %v862 = vld [vmem:[#allocation6 + $0xf0] sm:$0xff]
    %v863 = vld [vmem:[#allocation6 + $0xf8] sm:$0xff]
    %v864 = vld [vmem:[#allocation11] sm:$0xff]
    %v865 = vld [vmem:[#allocation11 + $0x8] sm:$0xff]
    %v866 = vld [vmem:[#allocation11 + $0x10] sm:$0xff]
    %v867 = vld [vmem:[#allocation11 + $0x18] sm:$0xff]
    %v868 = vld [vmem:[#allocation11 + $0x20] sm:$0xff]
    %v869 = vld [vmem:[#allocation11 + $0x28] sm:$0xff]
    %v870 = vld [vmem:[#allocation11 + $0x30] sm:$0xff]
    %v871 = vld [vmem:[#allocation11 + $0x38] sm:$0xff]
    %v872 = vld [vmem:[#allocation11 + $0x40] sm:$0xff]
    %v873 = vld [vmem:[#allocation11 + $0x48] sm:$0xff]
    %v874 = vld [vmem:[#allocation11 + $0x50] sm:$0xff]
    %v875 = vld [vmem:[#allocation11 + $0x58] sm:$0xff]
    %v876 = vld [vmem:[#allocation11 + $0x60] sm:$0xff]
    %v877 = vld [vmem:[#allocation11 + $0x68] sm:$0xff]
    %v878 = vld [vmem:[#allocation11 + $0x70] sm:$0xff]
    %v879 = vld [vmem:[#allocation11 + $0x78] sm:$0xff]
    %v880 = vld [vmem:[#allocation11 + $0x80] sm:$0xff]
    %v881 = vld [vmem:[#allocation11 + $0x88] sm:$0xff]
    %v882 = vld [vmem:[#allocation11 + $0x90] sm:$0xff]
    %v883 = vld [vmem:[#allocation11 + $0x98] sm:$0xff]
    %v884 = vld [vmem:[#allocation11 + $0xa0] sm:$0xff]
    %v885 = vld [vmem:[#allocation11 + $0xa8] sm:$0xff]
    %v886 = vld [vmem:[#allocation11 + $0xb0] sm:$0xff]
    %v887 = vld [vmem:[#allocation11 + $0xb8] sm:$0xff]
    %v888 = vld [vmem:[#allocation11 + $0xc0] sm:$0xff]
    %v889 = vld [vmem:[#allocation11 + $0xc8] sm:$0xff]
    %v890 = vld [vmem:[#allocation11 + $0xd0] sm:$0xff]
    %v891 = vld [vmem:[#allocation11 + $0xd8] sm:$0xff]
    %v892 = vld [vmem:[#allocation11 + $0xe0] sm:$0xff]
    %v893 = vld [vmem:[#allocation11 + $0xe8] sm:$0xff]
    %v894 = vld [vmem:[#allocation11 + $0xf0] sm:$0xff]
    %v895 = vld [vmem:[#allocation11 + $0xf8] sm:$0xff]
    %s896 = smul.u32 0, 4
    %s897 = smul.addr %s896, 4
    %s898 = scalar_lea.vmem [#allocation2], %s897
    %v899 = vld [vmem:[%s898] sm:$0xff]
    %v900 = vld [vmem:[%s898 + $0x8] sm:$0xff]
    %v901 = vld [vmem:[%s898 + $0x10] sm:$0xff]
    %v902 = vld [vmem:[%s898 + $0x18] sm:$0xff]
    %v903 = vunpack.c.l.bf16 %v899
    %v904 = vunpack.c.h.bf16 %v899
    %v905 = vunpack.c.l.bf16 %v900
    %v906 = vunpack.c.h.bf16 %v900
    %v907 = vunpack.c.l.bf16 %v901
    %v908 = vunpack.c.h.bf16 %v901
    %v909 = vunpack.c.l.bf16 %v902
    %v910 = vunpack.c.h.bf16 %v902
    %v943 = vunpack.c.l.b16 %v832
    %v944 = vunpack.c.h.b16 %v832
    %v945 = vunpack.c.l.b16 %v833
    %v946 = vunpack.c.h.b16 %v833
    %v947 = vunpack.c.l.b16 %v834
    %v948 = vunpack.c.h.b16 %v834
    %v949 = vunpack.c.l.b16 %v835
    %v950 = vunpack.c.h.b16 %v835
    %v951 = vunpack.c.l.b16 %v836
    %v952 = vunpack.c.h.b16 %v836
    %v953 = vunpack.c.l.b16 %v837
    %v954 = vunpack.c.h.b16 %v837
    %v955 = vunpack.c.l.b16 %v838
    %v956 = vunpack.c.h.b16 %v838
    %v957 = vunpack.c.l.b16 %v839
    %v958 = vunpack.c.h.b16 %v839
    %v959 = vunpack.c.l.b16 %v840
    %v960 = vunpack.c.h.b16 %v840
    %v961 = vunpack.c.l.b16 %v841
    %v962 = vunpack.c.h.b16 %v841
    %v963 = vunpack.c.l.b16 %v842
    %v964 = vunpack.c.h.b16 %v842
    %v965 = vunpack.c.l.b16 %v843
    %v966 = vunpack.c.h.b16 %v843
    %v967 = vunpack.c.l.b16 %v844
    %v968 = vunpack.c.h.b16 %v844
    %v969 = vunpack.c.l.b16 %v845
    %v970 = vunpack.c.h.b16 %v845
    %v971 = vunpack.c.l.b16 %v846
    %v972 = vunpack.c.h.b16 %v846
    %v973 = vunpack.c.l.b16 %v847
    %v974 = vunpack.c.h.b16 %v847
    %v975 = vunpack.c.l.b16 %v848
    %v976 = vunpack.c.h.b16 %v848
    %v977 = vunpack.c.l.b16 %v849
    %v978 = vunpack.c.h.b16 %v849
    %v979 = vunpack.c.l.b16 %v850
    %v980 = vunpack.c.h.b16 %v850
    %v981 = vunpack.c.l.b16 %v851
    %v982 = vunpack.c.h.b16 %v851
    %v983 = vunpack.c.l.b16 %v852
    %v984 = vunpack.c.h.b16 %v852
    %v985 = vunpack.c.l.b16 %v853
    %v986 = vunpack.c.h.b16 %v853
    %v987 = vunpack.c.l.b16 %v854
    %v988 = vunpack.c.h.b16 %v854
    %v989 = vunpack.c.l.b16 %v855
    %v990 = vunpack.c.h.b16 %v855
    %v991 = vunpack.c.l.b16 %v856
    %v992 = vunpack.c.h.b16 %v856
    %v993 = vunpack.c.l.b16 %v857
    %v994 = vunpack.c.h.b16 %v857
    %v995 = vunpack.c.l.b16 %v858
    %v996 = vunpack.c.h.b16 %v858
    %v997 = vunpack.c.l.b16 %v859
    %v998 = vunpack.c.h.b16 %v859
    %v999 = vunpack.c.l.b16 %v860
    %v1000 = vunpack.c.h.b16 %v860
    %v1001 = vunpack.c.l.b16 %v861
    %v1002 = vunpack.c.h.b16 %v861
    %v1003 = vunpack.c.l.b16 %v862
    %v1004 = vunpack.c.h.b16 %v862
    %v1005 = vunpack.c.l.b16 %v863
    %v1006 = vunpack.c.h.b16 %v863
    %v1007 = vpack.c.b16 %v947, %v943
    %v1008 = vpack.c.b16 %v948, %v944
    %v1009 = vpack.c.b16 %v949, %v945
    %v1010 = vpack.c.b16 %v950, %v946
    %v1011 = vpack.c.b16 %v955, %v951
    %v1012 = vpack.c.b16 %v956, %v952
    %v1013 = vpack.c.b16 %v957, %v953
    %v1014 = vpack.c.b16 %v958, %v954
    %v1015 = vpack.c.b16 %v963, %v959
    %v1016 = vpack.c.b16 %v964, %v960
    %v1017 = vpack.c.b16 %v965, %v961
    %v1018 = vpack.c.b16 %v966, %v962
    %v1019 = vpack.c.b16 %v971, %v967
    %v1020 = vpack.c.b16 %v972, %v968
    %v1021 = vpack.c.b16 %v973, %v969
    %v1022 = vpack.c.b16 %v974, %v970
    %v1023 = vpack.c.b16 %v979, %v975
    %v1024 = vpack.c.b16 %v980, %v976
    %v1025 = vpack.c.b16 %v981, %v977
    %v1026 = vpack.c.b16 %v982, %v978
    %v1027 = vpack.c.b16 %v987, %v983
    %v1028 = vpack.c.b16 %v988, %v984
    %v1029 = vpack.c.b16 %v989, %v985
    %v1030 = vpack.c.b16 %v990, %v986
    %v1031 = vpack.c.b16 %v995, %v991
    %v1032 = vpack.c.b16 %v996, %v992
    %v1033 = vpack.c.b16 %v997, %v993
    %v1034 = vpack.c.b16 %v998, %v994
    %v1035 = vpack.c.b16 %v1003, %v999
    %v1036 = vpack.c.b16 %v1004, %v1000
    %v1037 = vpack.c.b16 %v1005, %v1001
    %v1038 = vpack.c.b16 %v1006, %v1002
    %1071 = vmatpush.bf16.msra.mxu0 %v1035
    %1072 = vmatpush.bf16.msra.mxu0 %v1031
    %1073 = vmatpush.bf16.msra.mxu0 %v1027
    %1074 = vmatpush.bf16.msra.mxu0 %v1023
    %1075 = vmatpush.bf16.msra.mxu0 %v1019
    %1076 = vmatpush.bf16.msra.mxu0 %v1015
    %1077 = vmatpush.bf16.msra.mxu0 %v1011
    %1078 = vmatpush.bf16.msra.mxu0 %v1007
    %1079 = vmatmul.bf16.gmra.mxu0 0
    %v1080 = vpop.f32.mrf.mxu0
    %v1081 = vadd.f32 0.0, %v1080
    %v1082 = vpop.f32.mrf.mxu0
    %v1083 = vadd.f32 0.0, %v1082
    %1084 = vdwg.mxu0
    %1085 = vmatpush.bf16.msra.mxu0 %v1036
    %1086 = vmatpush.bf16.msra.mxu0 %v1032
    %1087 = vmatpush.bf16.msra.mxu0 %v1028
    %1088 = vmatpush.bf16.msra.mxu0 %v1024
    %1089 = vmatpush.bf16.msra.mxu0 %v1020
    %1090 = vmatpush.bf16.msra.mxu0 %v1016
    %1091 = vmatpush.bf16.msra.mxu0 %v1012
    %1092 = vmatpush.bf16.msra.mxu0 %v1008
    %1093 = vmatmul.bf16.gmra.mxu0 0
    %v1094 = vpop.f32.mrf.mxu0
    %v1095 = vadd.f32 0.0, %v1094
    %v1096 = vpop.f32.mrf.mxu0
    %v1097 = vadd.f32 0.0, %v1096
    %1098 = vdwg.mxu0
    %1099 = vmatpush.bf16.msra.mxu0 %v1037
    %1100 = vmatpush.bf16.msra.mxu0 %v1033
    %1101 = vmatpush.bf16.msra.mxu0 %v1029
    %1102 = vmatpush.bf16.msra.mxu0 %v1025
    %1103 = vmatpush.bf16.msra.mxu0 %v1021
    %1104 = vmatpush.bf16.msra.mxu0 %v1017
    %1105 = vmatpush.bf16.msra.mxu0 %v1013
    %1106 = vmatpush.bf16.msra.mxu0 %v1009
    %1107 = vmatmul.bf16.gmra.mxu0 0
    %v1108 = vpop.f32.mrf.mxu0
    %v1109 = vadd.f32 0.0, %v1108
    %v1110 = vpop.f32.mrf.mxu0
    %v1111 = vadd.f32 0.0, %v1110
    %1112 = vdwg.mxu0
    %1113 = vmatpush.bf16.msra.mxu0 %v1038
    %1114 = vmatpush.bf16.msra.mxu0 %v1034
    %1115 = vmatpush.bf16.msra.mxu0 %v1030
    %1116 = vmatpush.bf16.msra.mxu0 %v1026
    %1117 = vmatpush.bf16.msra.mxu0 %v1022
    %1118 = vmatpush.bf16.msra.mxu0 %v1018
    %1119 = vmatpush.bf16.msra.mxu0 %v1014
    %1120 = vmatpush.bf16.msra.mxu0 %v1010
    %1121 = vmatmul.bf16.gmra.mxu0 0
    %v1122 = vpop.f32.mrf.mxu0
    %v1123 = vadd.f32 0.0, %v1122
    %v1124 = vpop.f32.mrf.mxu0
    %v1125 = vadd.f32 0.0, %v1124
    %1126 = vdwg.mxu0
    %v1127 = vadd.f32 %v903, %v1081
    %v1128 = vadd.f32 %v904, %v1095
    %v1129 = vadd.f32 %v905, %v1109
    %v1130 = vadd.f32 %v906, %v1123
    %v1131 = vadd.f32 %v907, %v1083
    %v1132 = vadd.f32 %v908, %v1097
    %v1133 = vadd.f32 %v909, %v1111
    %v1134 = vadd.f32 %v910, %v1125
    %s1135 = smul.u32 14, 4
    %s1136 = smul.addr %s1135, 4
    %s1137 = scalar_lea.vmem [#allocation3], %s1136
    %v1138 = vld [vmem:[%s1137] sm:$0xff]
    %v1139 = vld [vmem:[%s1137 + $0x8] sm:$0xff]
    %v1140 = vld [vmem:[%s1137 + $0x10] sm:$0xff]
    %v1141 = vld [vmem:[%s1137 + $0x18] sm:$0xff]
    %v1142 = vunpack.c.l.bf16 %v1138
    %v1143 = vunpack.c.h.bf16 %v1138
    %v1144 = vunpack.c.l.bf16 %v1139
    %v1145 = vunpack.c.h.bf16 %v1139
    %v1146 = vunpack.c.l.bf16 %v1140
    %v1147 = vunpack.c.h.bf16 %v1140
    %v1148 = vunpack.c.l.bf16 %v1141
    %v1149 = vunpack.c.h.bf16 %v1141
    %v1182 = vunpack.c.l.b16 %v864
    %v1183 = vunpack.c.h.b16 %v864
    %v1184 = vunpack.c.l.b16 %v865
    %v1185 = vunpack.c.h.b16 %v865
    %v1186 = vunpack.c.l.b16 %v866
    %v1187 = vunpack.c.h.b16 %v866
    %v1188 = vunpack.c.l.b16 %v867
    %v1189 = vunpack.c.h.b16 %v867
    %v1190 = vunpack.c.l.b16 %v868
    %v1191 = vunpack.c.h.b16 %v868
    %v1192 = vunpack.c.l.b16 %v869
    %v1193 = vunpack.c.h.b16 %v869
    %v1194 = vunpack.c.l.b16 %v870
    %v1195 = vunpack.c.h.b16 %v870
    %v1196 = vunpack.c.l.b16 %v871
    %v1197 = vunpack.c.h.b16 %v871
    %v1198 = vunpack.c.l.b16 %v872
    %v1199 = vunpack.c.h.b16 %v872
    %v1200 = vunpack.c.l.b16 %v873
    %v1201 = vunpack.c.h.b16 %v873
    %v1202 = vunpack.c.l.b16 %v874
    %v1203 = vunpack.c.h.b16 %v874
    %v1204 = vunpack.c.l.b16 %v875
    %v1205 = vunpack.c.h.b16 %v875
    %v1206 = vunpack.c.l.b16 %v876
    %v1207 = vunpack.c.h.b16 %v876
    %v1208 = vunpack.c.l.b16 %v877
    %v1209 = vunpack.c.h.b16 %v877
    %v1210 = vunpack.c.l.b16 %v878
    %v1211 = vunpack.c.h.b16 %v878
    %v1212 = vunpack.c.l.b16 %v879
    %v1213 = vunpack.c.h.b16 %v879
    %v1214 = vunpack.c.l.b16 %v880
    %v1215 = vunpack.c.h.b16 %v880
    %v1216 = vunpack.c.l.b16 %v881
    %v1217 = vunpack.c.h.b16 %v881
    %v1218 = vunpack.c.l.b16 %v882
    %v1219 = vunpack.c.h.b16 %v882
    %v1220 = vunpack.c.l.b16 %v883
    %v1221 = vunpack.c.h.b16 %v883
    %v1222 = vunpack.c.l.b16 %v884
    %v1223 = vunpack.c.h.b16 %v884
    %v1224 = vunpack.c.l.b16 %v885
    %v1225 = vunpack.c.h.b16 %v885
    %v1226 = vunpack.c.l.b16 %v886
    %v1227 = vunpack.c.h.b16 %v886
    %v1228 = vunpack.c.l.b16 %v887
    %v1229 = vunpack.c.h.b16 %v887
    %v1230 = vunpack.c.l.b16 %v888
    %v1231 = vunpack.c.h.b16 %v888
    %v1232 = vunpack.c.l.b16 %v889
    %v1233 = vunpack.c.h.b16 %v889
    %v1234 = vunpack.c.l.b16 %v890
    %v1235 = vunpack.c.h.b16 %v890
    %v1236 = vunpack.c.l.b16 %v891
    %v1237 = vunpack.c.h.b16 %v891
    %v1238 = vunpack.c.l.b16 %v892
    %v1239 = vunpack.c.h.b16 %v892
    %v1240 = vunpack.c.l.b16 %v893
    %v1241 = vunpack.c.h.b16 %v893
    %v1242 = vunpack.c.l.b16 %v894
    %v1243 = vunpack.c.h.b16 %v894
    %v1244 = vunpack.c.l.b16 %v895
    %v1245 = vunpack.c.h.b16 %v895
    %v1246 = vpack.c.b16 %v1186, %v1182
    %v1247 = vpack.c.b16 %v1187, %v1183
    %v1248 = vpack.c.b16 %v1188, %v1184
    %v1249 = vpack.c.b16 %v1189, %v1185
    %v1250 = vpack.c.b16 %v1194, %v1190
    %v1251 = vpack.c.b16 %v1195, %v1191
    %v1252 = vpack.c.b16 %v1196, %v1192
    %v1253 = vpack.c.b16 %v1197, %v1193
    %v1254 = vpack.c.b16 %v1202, %v1198
    %v1255 = vpack.c.b16 %v1203, %v1199
    %v1256 = vpack.c.b16 %v1204, %v1200
    %v1257 = vpack.c.b16 %v1205, %v1201
    %v1258 = vpack.c.b16 %v1210, %v1206
    %v1259 = vpack.c.b16 %v1211, %v1207
    %v1260 = vpack.c.b16 %v1212, %v1208
    %v1261 = vpack.c.b16 %v1213, %v1209
    %v1262 = vpack.c.b16 %v1218, %v1214
    %v1263 = vpack.c.b16 %v1219, %v1215
    %v1264 = vpack.c.b16 %v1220, %v1216
    %v1265 = vpack.c.b16 %v1221, %v1217
    %v1266 = vpack.c.b16 %v1226, %v1222
    %v1267 = vpack.c.b16 %v1227, %v1223
    %v1268 = vpack.c.b16 %v1228, %v1224
    %v1269 = vpack.c.b16 %v1229, %v1225
    %v1270 = vpack.c.b16 %v1234, %v1230
    %v1271 = vpack.c.b16 %v1235, %v1231
    %v1272 = vpack.c.b16 %v1236, %v1232
    %v1273 = vpack.c.b16 %v1237, %v1233
    %v1274 = vpack.c.b16 %v1242, %v1238
    %v1275 = vpack.c.b16 %v1243, %v1239
    %v1276 = vpack.c.b16 %v1244, %v1240
    %v1277 = vpack.c.b16 %v1245, %v1241
    %1310 = vmatpush.bf16.msra.mxu0 %v1274
    %1311 = vmatpush.bf16.msra.mxu0 %v1270
    %1312 = vmatpush.bf16.msra.mxu0 %v1266
    %1313 = vmatpush.bf16.msra.mxu0 %v1262
    %1314 = vmatpush.bf16.msra.mxu0 %v1258
    %1315 = vmatpush.bf16.msra.mxu0 %v1254
    %1316 = vmatpush.bf16.msra.mxu0 %v1250
    %1317 = vmatpush.bf16.msra.mxu0 %v1246
    %1318 = vmatmul.bf16.gmra.mxu0 0
    %v1319 = vpop.f32.mrf.mxu0
    %v1320 = vadd.f32 0.0, %v1319
    %v1321 = vpop.f32.mrf.mxu0
    %v1322 = vadd.f32 0.0, %v1321
    %1323 = vdwg.mxu0
    %1324 = vmatpush.bf16.msra.mxu0 %v1275
    %1325 = vmatpush.bf16.msra.mxu0 %v1271
    %1326 = vmatpush.bf16.msra.mxu0 %v1267
    %1327 = vmatpush.bf16.msra.mxu0 %v1263
    %1328 = vmatpush.bf16.msra.mxu0 %v1259
    %1329 = vmatpush.bf16.msra.mxu0 %v1255
    %1330 = vmatpush.bf16.msra.mxu0 %v1251
    %1331 = vmatpush.bf16.msra.mxu0 %v1247
    %1332 = vmatmul.bf16.gmra.mxu0 0
    %v1333 = vpop.f32.mrf.mxu0
    %v1334 = vadd.f32 0.0, %v1333
    %v1335 = vpop.f32.mrf.mxu0
    %v1336 = vadd.f32 0.0, %v1335
    %1337 = vdwg.mxu0
    %1338 = vmatpush.bf16.msra.mxu0 %v1276
    %1339 = vmatpush.bf16.msra.mxu0 %v1272
    %1340 = vmatpush.bf16.msra.mxu0 %v1268
    %1341 = vmatpush.bf16.msra.mxu0 %v1264
    %1342 = vmatpush.bf16.msra.mxu0 %v1260
    %1343 = vmatpush.bf16.msra.mxu0 %v1256
    %1344 = vmatpush.bf16.msra.mxu0 %v1252
    %1345 = vmatpush.bf16.msra.mxu0 %v1248
    %1346 = vmatmul.bf16.gmra.mxu0 0
    %v1347 = vpop.f32.mrf.mxu0
    %v1348 = vadd.f32 0.0, %v1347
    %v1349 = vpop.f32.mrf.mxu0
    %v1350 = vadd.f32 0.0, %v1349
    %1351 = vdwg.mxu0
    %1352 = vmatpush.bf16.msra.mxu0 %v1277
    %1353 = vmatpush.bf16.msra.mxu0 %v1273
    %1354 = vmatpush.bf16.msra.mxu0 %v1269
    %1355 = vmatpush.bf16.msra.mxu0 %v1265
    %1356 = vmatpush.bf16.msra.mxu0 %v1261
    %1357 = vmatpush.bf16.msra.mxu0 %v1257
    %1358 = vmatpush.bf16.msra.mxu0 %v1253
    %1359 = vmatpush.bf16.msra.mxu0 %v1249
    %1360 = vmatmul.bf16.gmra.mxu0 0
    %v1361 = vpop.f32.mrf.mxu0
    %v1362 = vadd.f32 0.0, %v1361
    %v1363 = vpop.f32.mrf.mxu0
    %v1364 = vadd.f32 0.0, %v1363
    %1365 = vdwg.mxu0
    %v1366 = vadd.f32 %v1142, %v1320
    %v1367 = vadd.f32 %v1143, %v1334
    %v1368 = vadd.f32 %v1144, %v1348
    %v1369 = vadd.f32 %v1145, %v1362
    %v1370 = vadd.f32 %v1146, %v1322
    %v1371 = vadd.f32 %v1147, %v1336
    %v1372 = vadd.f32 %v1148, %v1350
    %v1373 = vadd.f32 %v1149, %v1364
    %v1374 = vmul.f32 %v1127, 0.5
    %v1375 = vmul.f32 %v1131, 0.5
    %v1376 = vtanh.pop %v1374
    %v1377 = vtanh.pop %v1375
    %v1378 = vadd.f32 %v1376, 1.0
    %v1379 = vadd.f32 %v1377, 1.0
    %v1380 = vmul.f32 %v1378, 0.5
    %v1381 = vmul.f32 %v1379, 0.5
    %v1382 = vmul.f32 %v1128, 0.5
    %v1383 = vmul.f32 %v1132, 0.5
    %v1384 = vtanh.pop %v1382
    %v1385 = vtanh.pop %v1383
    %v1386 = vadd.f32 %v1384, 1.0
    %v1387 = vadd.f32 %v1385, 1.0
    %v1388 = vmul.f32 %v1386, 0.5
    %v1389 = vmul.f32 %v1387, 0.5
    %v1390 = vtanh.pop %v1129
    %v1391 = vtanh.pop %v1133
    %v1392 = vmul.f32 %v1130, 0.5
    %v1393 = vmul.f32 %v1134, 0.5
    %v1394 = vtanh.pop %v1392
    %v1395 = vtanh.pop %v1393
    %v1396 = vadd.f32 %v1394, 1.0
    %v1397 = vadd.f32 %v1395, 1.0
    %v1398 = vmul.f32 %v1396, 0.5
    %v1399 = vmul.f32 %v1397, 0.5
    %v1400 = vmul.f32 %v1388, 0.0
    %v1401 = vmul.f32 %v1389, 0.0
    %v1402 = vmul.f32 %v1380, %v1390
    %v1403 = vmul.f32 %v1381, %v1391
    %v1404 = vadd.f32 %v1400, %v1402
    %v1405 = vadd.f32 %v1401, %v1403
    %v1406 = vtanh.pop %v1404
    %v1407 = vtanh.pop %v1405
    %v1408 = vmul.f32 %v1398, %v1406
    %v1409 = vmul.f32 %v1399, %v1407
    %v1410 = vpack.c.bf16 %v1408, %v1408
    %v1411 = vpack.c.bf16 %v1409, %v1409
    %v1412 = vmul.f32 %v1366, 0.5
    %v1413 = vmul.f32 %v1370, 0.5
    %v1414 = vtanh.pop %v1412
    %v1415 = vtanh.pop %v1413
    %v1416 = vadd.f32 %v1414, 1.0
    %v1417 = vadd.f32 %v1415, 1.0
    %v1418 = vmul.f32 %v1416, 0.5
    %v1419 = vmul.f32 %v1417, 0.5
    %v1420 = vmul.f32 %v1367, 0.5
    %v1421 = vmul.f32 %v1371, 0.5
    %v1422 = vtanh.pop %v1420
    %v1423 = vtanh.pop %v1421
    %v1424 = vadd.f32 %v1422, 1.0
    %v1425 = vadd.f32 %v1423, 1.0
    %v1426 = vmul.f32 %v1424, 0.5
    %v1427 = vmul.f32 %v1425, 0.5
    %v1428 = vtanh.pop %v1368
    %v1429 = vtanh.pop %v1372
    %v1430 = vmul.f32 %v1369, 0.5
    %v1431 = vmul.f32 %v1373, 0.5
    %v1432 = vtanh.pop %v1430
    %v1433 = vtanh.pop %v1431
    %v1434 = vadd.f32 %v1432, 1.0
    %v1435 = vadd.f32 %v1433, 1.0
    %v1436 = vmul.f32 %v1434, 0.5
    %v1437 = vmul.f32 %v1435, 0.5
    %v1438 = vmul.f32 %v1426, 0.0
    %v1439 = vmul.f32 %v1427, 0.0
    %v1440 = vmul.f32 %v1418, %v1428
    %v1441 = vmul.f32 %v1419, %v1429
    %v1442 = vadd.f32 %v1438, %v1440
    %v1443 = vadd.f32 %v1439, %v1441
    %v1444 = vtanh.pop %v1442
    %v1445 = vtanh.pop %v1443
    %v1446 = vmul.f32 %v1436, %v1444
    %v1447 = vmul.f32 %v1437, %v1445
    %v1448 = vpack.c.bf16 %v1446, %v1446
    %v1449 = vpack.c.bf16 %v1447, %v1447
    %1450 = vst [vmem:[#allocation4] sm:$0xf] %v1410
    %1451 = vst [vmem:[#allocation4 + $0x4] sm:$0xf] %v1411
    %s1452 = scalar_lea.vmem [#allocation5], 56
    %1453 = vst [vmem:[%s1452] sm:$0xf] %v1448
    %1454 = vst [vmem:[%s1452 + $0x4] sm:$0xf] %v1449
    %s1455 = smul.u32 2, 4
    %s1456 = smul.addr %s1455, 4
    %s1457 = scalar_lea.vmem [#allocation2], %s1456
    %v1458 = vld [vmem:[%s1457] sm:$0xff]
    %v1459 = vld [vmem:[%s1457 + $0x8] sm:$0xff]
    %v1460 = vld [vmem:[%s1457 + $0x10] sm:$0xff]
    %v1461 = vld [vmem:[%s1457 + $0x18] sm:$0xff]
    %v1462 = vunpack.c.l.bf16 %v1458
    %v1463 = vunpack.c.h.bf16 %v1458
    %v1464 = vunpack.c.l.bf16 %v1459
    %v1465 = vunpack.c.h.bf16 %v1459
    %v1466 = vunpack.c.l.bf16 %v1460
    %v1467 = vunpack.c.h.bf16 %v1460
    %v1468 = vunpack.c.l.bf16 %v1461
    %v1469 = vunpack.c.h.bf16 %v1461
    %v1472 = vunpack.c.l.b16 %v1410
    %v1473 = vunpack.c.l.b16 %v1411
    %v1474 = vpack.c.b16 %v1473, %v1472
    %1476 = vmatpush.bf16.msra.mxu0 %v1035
    %1477 = vmatpush.bf16.msra.mxu0 %v1031
    %1478 = vmatpush.bf16.msra.mxu0 %v1027
    %1479 = vmatpush.bf16.msra.mxu0 %v1023
    %1480 = vmatpush.bf16.msra.mxu0 %v1019
    %1481 = vmatpush.bf16.msra.mxu0 %v1015
    %1482 = vmatpush.bf16.msra.mxu0 %v1011
    %1483 = vmatpush.bf16.msra.mxu0 %v1007
    %1484 = vmatmul.bf16.gmra.mxu0 %v1474
    %v1485 = vpop.f32.mrf.mxu0
    %v1486 = vadd.f32 0.0, %v1485
    %v1487 = vpop.f32.mrf.mxu0
    %v1488 = vadd.f32 0.0, %v1487
    %1489 = vdwg.mxu0
    %1490 = vmatpush.bf16.msra.mxu0 %v1036
    %1491 = vmatpush.bf16.msra.mxu0 %v1032
    %1492 = vmatpush.bf16.msra.mxu0 %v1028
    %1493 = vmatpush.bf16.msra.mxu0 %v1024
    %1494 = vmatpush.bf16.msra.mxu0 %v1020
    %1495 = vmatpush.bf16.msra.mxu0 %v1016
    %1496 = vmatpush.bf16.msra.mxu0 %v1012
    %1497 = vmatpush.bf16.msra.mxu0 %v1008
    %1498 = vmatmul.bf16.gmra.mxu0 %v1474
    %v1499 = vpop.f32.mrf.mxu0
    %v1500 = vadd.f32 0.0, %v1499
    %v1501 = vpop.f32.mrf.mxu0
    %v1502 = vadd.f32 0.0, %v1501
    %1503 = vdwg.mxu0
    %1504 = vmatpush.bf16.msra.mxu0 %v1037
    %1505 = vmatpush.bf16.msra.mxu0 %v1033
    %1506 = vmatpush.bf16.msra.mxu0 %v1029
    %1507 = vmatpush.bf16.msra.mxu0 %v1025
    %1508 = vmatpush.bf16.msra.mxu0 %v1021
    %1509 = vmatpush.bf16.msra.mxu0 %v1017
    %1510 = vmatpush.bf16.msra.mxu0 %v1013
    %1511 = vmatpush.bf16.msra.mxu0 %v1009
    %1512 = vmatmul.bf16.gmra.mxu0 %v1474
    %v1513 = vpop.f32.mrf.mxu0
    %v1514 = vadd.f32 0.0, %v1513
    %v1515 = vpop.f32.mrf.mxu0
    %v1516 = vadd.f32 0.0, %v1515
    %1517 = vdwg.mxu0
    %1518 = vmatpush.bf16.msra.mxu0 %v1038
    %1519 = vmatpush.bf16.msra.mxu0 %v1034
    %1520 = vmatpush.bf16.msra.mxu0 %v1030
    %1521 = vmatpush.bf16.msra.mxu0 %v1026
    %1522 = vmatpush.bf16.msra.mxu0 %v1022
    %1523 = vmatpush.bf16.msra.mxu0 %v1018
    %1524 = vmatpush.bf16.msra.mxu0 %v1014
    %1525 = vmatpush.bf16.msra.mxu0 %v1010
    %1526 = vmatmul.bf16.gmra.mxu0 %v1474
    %v1527 = vpop.f32.mrf.mxu0
    %v1528 = vadd.f32 0.0, %v1527
    %v1529 = vpop.f32.mrf.mxu0
    %v1530 = vadd.f32 0.0, %v1529
    %1531 = vdwg.mxu0
    %v1532 = vadd.f32 %v1462, %v1486
    %v1533 = vadd.f32 %v1463, %v1500
    %v1534 = vadd.f32 %v1464, %v1514
    %v1535 = vadd.f32 %v1465, %v1528
    %v1536 = vadd.f32 %v1466, %v1488
    %v1537 = vadd.f32 %v1467, %v1502
    %v1538 = vadd.f32 %v1468, %v1516
    %v1539 = vadd.f32 %v1469, %v1530
    %s1540 = smul.u32 12, 4
    %s1541 = smul.addr %s1540, 4
    %s1542 = scalar_lea.vmem [#allocation3], %s1541
    %v1543 = vld [vmem:[%s1542] sm:$0xff]
    %v1544 = vld [vmem:[%s1542 + $0x8] sm:$0xff]
    %v1545 = vld [vmem:[%s1542 + $0x10] sm:$0xff]
    %v1546 = vld [vmem:[%s1542 + $0x18] sm:$0xff]
    %v1547 = vunpack.c.l.bf16 %v1543
    %v1548 = vunpack.c.h.bf16 %v1543
    %v1549 = vunpack.c.l.bf16 %v1544
    %v1550 = vunpack.c.h.bf16 %v1544
    %v1551 = vunpack.c.l.bf16 %v1545
    %v1552 = vunpack.c.h.bf16 %v1545
    %v1553 = vunpack.c.l.bf16 %v1546
    %v1554 = vunpack.c.h.bf16 %v1546
    %v1557 = vunpack.c.l.b16 %v1448
    %v1558 = vunpack.c.l.b16 %v1449
    %v1559 = vpack.c.b16 %v1558, %v1557
    %1561 = vmatpush.bf16.msra.mxu0 %v1274
    %1562 = vmatpush.bf16.msra.mxu0 %v1270
    %1563 = vmatpush.bf16.msra.mxu0 %v1266
    %1564 = vmatpush.bf16.msra.mxu0 %v1262
    %1565 = vmatpush.bf16.msra.mxu0 %v1258
    %1566 = vmatpush.bf16.msra.mxu0 %v1254
    %1567 = vmatpush.bf16.msra.mxu0 %v1250
    %1568 = vmatpush.bf16.msra.mxu0 %v1246
    %1569 = vmatmul.bf16.gmra.mxu0 %v1559
    %v1570 = vpop.f32.mrf.mxu0
    %v1571 = vadd.f32 0.0, %v1570
    %v1572 = vpop.f32.mrf.mxu0
    %v1573 = vadd.f32 0.0, %v1572
    %1574 = vdwg.mxu0
    %1575 = vmatpush.bf16.msra.mxu0 %v1275
    %1576 = vmatpush.bf16.msra.mxu0 %v1271
    %1577 = vmatpush.bf16.msra.mxu0 %v1267
    %1578 = vmatpush.bf16.msra.mxu0 %v1263
    %1579 = vmatpush.bf16.msra.mxu0 %v1259
    %1580 = vmatpush.bf16.msra.mxu0 %v1255
    %1581 = vmatpush.bf16.msra.mxu0 %v1251
    %1582 = vmatpush.bf16.msra.mxu0 %v1247
    %1583 = vmatmul.bf16.gmra.mxu0 %v1559
    %v1584 = vpop.f32.mrf.mxu0
    %v1585 = vadd.f32 0.0, %v1584
    %v1586 = vpop.f32.mrf.mxu0
    %v1587 = vadd.f32 0.0, %v1586
    %1588 = vdwg.mxu0
    %1589 = vmatpush.bf16.msra.mxu0 %v1276
    %1590 = vmatpush.bf16.msra.mxu0 %v1272
    %1591 = vmatpush.bf16.msra.mxu0 %v1268
    %1592 = vmatpush.bf16.msra.mxu0 %v1264
    %1593 = vmatpush.bf16.msra.mxu0 %v1260
    %1594 = vmatpush.bf16.msra.mxu0 %v1256
    %1595 = vmatpush.bf16.msra.mxu0 %v1252
    %1596 = vmatpush.bf16.msra.mxu0 %v1248
    %1597 = vmatmul.bf16.gmra.mxu0 %v1559
    %v1598 = vpop.f32.mrf.mxu0
    %v1599 = vadd.f32 0.0, %v1598
    %v1600 = vpop.f32.mrf.mxu0
    %v1601 = vadd.f32 0.0, %v1600
    %1602 = vdwg.mxu0
    %1603 = vmatpush.bf16.msra.mxu0 %v1277
    %1604 = vmatpush.bf16.msra.mxu0 %v1273
    %1605 = vmatpush.bf16.msra.mxu0 %v1269
    %1606 = vmatpush.bf16.msra.mxu0 %v1265
    %1607 = vmatpush.bf16.msra.mxu0 %v1261
    %1608 = vmatpush.bf16.msra.mxu0 %v1257
    %1609 = vmatpush.bf16.msra.mxu0 %v1253
    %1610 = vmatpush.bf16.msra.mxu0 %v1249
    %1611 = vmatmul.bf16.gmra.mxu0 %v1559
    %v1612 = vpop.f32.mrf.mxu0
    %v1613 = vadd.f32 0.0, %v1612
    %v1614 = vpop.f32.mrf.mxu0
    %v1615 = vadd.f32 0.0, %v1614
    %1616 = vdwg.mxu0
    %v1617 = vadd.f32 %v1547, %v1571
    %v1618 = vadd.f32 %v1548, %v1585
    %v1619 = vadd.f32 %v1549, %v1599
    %v1620 = vadd.f32 %v1550, %v1613
    %v1621 = vadd.f32 %v1551, %v1573
    %v1622 = vadd.f32 %v1552, %v1587
    %v1623 = vadd.f32 %v1553, %v1601
    %v1624 = vadd.f32 %v1554, %v1615
    %v1625 = vmul.f32 %v1532, 0.5
    %v1626 = vmul.f32 %v1536, 0.5
    %v1627 = vtanh.pop %v1625
    %v1628 = vtanh.pop %v1626
    %v1629 = vadd.f32 %v1627, 1.0
    %v1630 = vadd.f32 %v1628, 1.0
    %v1631 = vmul.f32 %v1629, 0.5
    %v1632 = vmul.f32 %v1630, 0.5
    %v1633 = vmul.f32 %v1533, 0.5
    %v1634 = vmul.f32 %v1537, 0.5
    %v1635 = vtanh.pop %v1633
    %v1636 = vtanh.pop %v1634
    %v1637 = vadd.f32 %v1635, 1.0
    %v1638 = vadd.f32 %v1636, 1.0
    %v1639 = vmul.f32 %v1637, 0.5
    %v1640 = vmul.f32 %v1638, 0.5
    %v1641 = vtanh.pop %v1534
    %v1642 = vtanh.pop %v1538
    %v1643 = vmul.f32 %v1535, 0.5
    %v1644 = vmul.f32 %v1539, 0.5
    %v1645 = vtanh.pop %v1643
    %v1646 = vtanh.pop %v1644
    %v1647 = vadd.f32 %v1645, 1.0
    %v1648 = vadd.f32 %v1646, 1.0
    %v1649 = vmul.f32 %v1647, 0.5
    %v1650 = vmul.f32 %v1648, 0.5
    %v1651 = vmul.f32 %v1639, %v1404
    %v1652 = vmul.f32 %v1640, %v1405
    %v1653 = vmul.f32 %v1631, %v1641
    %v1654 = vmul.f32 %v1632, %v1642
    %v1655 = vadd.f32 %v1651, %v1653
    %v1656 = vadd.f32 %v1652, %v1654
    %v1657 = vtanh.pop %v1655
    %v1658 = vtanh.pop %v1656
    %v1659 = vmul.f32 %v1649, %v1657
    %v1660 = vmul.f32 %v1650, %v1658
    %v1661 = vpack.c.bf16 %v1659, %v1659
    %v1662 = vpack.c.bf16 %v1660, %v1660
    %v1663 = vmul.f32 %v1617, 0.5
    %v1664 = vmul.f32 %v1621, 0.5
    %v1665 = vtanh.pop %v1663
    %v1666 = vtanh.pop %v1664
    %v1667 = vadd.f32 %v1665, 1.0
    %v1668 = vadd.f32 %v1666, 1.0
    %v1669 = vmul.f32 %v1667, 0.5
    %v1670 = vmul.f32 %v1668, 0.5
    %v1671 = vmul.f32 %v1618, 0.5
    %v1672 = vmul.f32 %v1622, 0.5
    %v1673 = vtanh.pop %v1671
    %v1674 = vtanh.pop %v1672
    %v1675 = vadd.f32 %v1673, 1.0
    %v1676 = vadd.f32 %v1674, 1.0
    %v1677 = vmul.f32 %v1675, 0.5
    %v1678 = vmul.f32 %v1676, 0.5
    %v1679 = vtanh.pop %v1619
    %v1680 = vtanh.pop %v1623
    %v1681 = vmul.f32 %v1620, 0.5
    %v1682 = vmul.f32 %v1624, 0.5
    %v1683 = vtanh.pop %v1681
    %v1684 = vtanh.pop %v1682
    %v1685 = vadd.f32 %v1683, 1.0
    %v1686 = vadd.f32 %v1684, 1.0
    %v1687 = vmul.f32 %v1685, 0.5
    %v1688 = vmul.f32 %v1686, 0.5
    %v1689 = vmul.f32 %v1677, %v1442
    %v1690 = vmul.f32 %v1678, %v1443
    %v1691 = vmul.f32 %v1669, %v1679
    %v1692 = vmul.f32 %v1670, %v1680
    %v1693 = vadd.f32 %v1689, %v1691
    %v1694 = vadd.f32 %v1690, %v1692
    %v1695 = vtanh.pop %v1693
    %v1696 = vtanh.pop %v1694
    %v1697 = vmul.f32 %v1687, %v1695
    %v1698 = vmul.f32 %v1688, %v1696
    %v1699 = vpack.c.bf16 %v1697, %v1697
    %v1700 = vpack.c.bf16 %v1698, %v1698
    %s1701 = scalar_lea.vmem [#allocation4], 8
    %1702 = vst [vmem:[%s1701] sm:$0xf] %v1661
    %1703 = vst [vmem:[%s1701 + $0x4] sm:$0xf] %v1662
    %s1704 = scalar_lea.vmem [#allocation5], 48
    %1705 = vst [vmem:[%s1704] sm:$0xf] %v1699
    %1706 = vst [vmem:[%s1704 + $0x4] sm:$0xf] %v1700
    %s1707 = smul.u32 4, 4
    %s1708 = smul.addr %s1707, 4
    %s1709 = scalar_lea.vmem [#allocation2], %s1708
    %v1710 = vld [vmem:[%s1709] sm:$0xff]
    %v1711 = vld [vmem:[%s1709 + $0x8] sm:$0xff]
    %v1712 = vld [vmem:[%s1709 + $0x10] sm:$0xff]
    %v1713 = vld [vmem:[%s1709 + $0x18] sm:$0xff]
    %v1714 = vunpack.c.l.bf16 %v1710
    %v1715 = vunpack.c.h.bf16 %v1710
    %v1716 = vunpack.c.l.bf16 %v1711
    %v1717 = vunpack.c.h.bf16 %v1711
    %v1718 = vunpack.c.l.bf16 %v1712
    %v1719 = vunpack.c.h.bf16 %v1712
    %v1720 = vunpack.c.l.bf16 %v1713
    %v1721 = vunpack.c.h.bf16 %v1713
    %v1724 = vunpack.c.l.b16 %v1661
    %v1725 = vunpack.c.l.b16 %v1662
    %v1726 = vpack.c.b16 %v1725, %v1724
    %1728 = vmatpush.bf16.msra.mxu0 %v1035
    %1729 = vmatpush.bf16.msra.mxu0 %v1031
    %1730 = vmatpush.bf16.msra.mxu0 %v1027
    %1731 = vmatpush.bf16.msra.mxu0 %v1023
    %1732 = vmatpush.bf16.msra.mxu0 %v1019
    %1733 = vmatpush.bf16.msra.mxu0 %v1015
    %1734 = vmatpush.bf16.msra.mxu0 %v1011
    %1735 = vmatpush.bf16.msra.mxu0 %v1007
    %1736 = vmatmul.bf16.gmra.mxu0 %v1726
    %v1737 = vpop.f32.mrf.mxu0
    %v1738 = vadd.f32 0.0, %v1737
    %v1739 = vpop.f32.mrf.mxu0
    %v1740 = vadd.f32 0.0, %v1739
    %1741 = vdwg.mxu0
    %1742 = vmatpush.bf16.msra.mxu0 %v1036
    %1743 = vmatpush.bf16.msra.mxu0 %v1032
    %1744 = vmatpush.bf16.msra.mxu0 %v1028
    %1745 = vmatpush.bf16.msra.mxu0 %v1024
    %1746 = vmatpush.bf16.msra.mxu0 %v1020
    %1747 = vmatpush.bf16.msra.mxu0 %v1016
    %1748 = vmatpush.bf16.msra.mxu0 %v1012
    %1749 = vmatpush.bf16.msra.mxu0 %v1008
    %1750 = vmatmul.bf16.gmra.mxu0 %v1726
    %v1751 = vpop.f32.mrf.mxu0
    %v1752 = vadd.f32 0.0, %v1751
    %v1753 = vpop.f32.mrf.mxu0
    %v1754 = vadd.f32 0.0, %v1753
    %1755 = vdwg.mxu0
    %1756 = vmatpush.bf16.msra.mxu0 %v1037
    %1757 = vmatpush.bf16.msra.mxu0 %v1033
    %1758 = vmatpush.bf16.msra.mxu0 %v1029
    %1759 = vmatpush.bf16.msra.mxu0 %v1025
    %1760 = vmatpush.bf16.msra.mxu0 %v1021
    %1761 = vmatpush.bf16.msra.mxu0 %v1017
    %1762 = vmatpush.bf16.msra.mxu0 %v1013
    %1763 = vmatpush.bf16.msra.mxu0 %v1009
    %1764 = vmatmul.bf16.gmra.mxu0 %v1726
    %v1765 = vpop.f32.mrf.mxu0
    %v1766 = vadd.f32 0.0, %v1765
    %v1767 = vpop.f32.mrf.mxu0
    %v1768 = vadd.f32 0.0, %v1767
    %1769 = vdwg.mxu0
    %1770 = vmatpush.bf16.msra.mxu0 %v1038
    %1771 = vmatpush.bf16.msra.mxu0 %v1034
    %1772 = vmatpush.bf16.msra.mxu0 %v1030
    %1773 = vmatpush.bf16.msra.mxu0 %v1026
    %1774 = vmatpush.bf16.msra.mxu0 %v1022
    %1775 = vmatpush.bf16.msra.mxu0 %v1018
    %1776 = vmatpush.bf16.msra.mxu0 %v1014
    %1777 = vmatpush.bf16.msra.mxu0 %v1010
    %1778 = vmatmul.bf16.gmra.mxu0 %v1726
    %v1779 = vpop.f32.mrf.mxu0
    %v1780 = vadd.f32 0.0, %v1779
    %v1781 = vpop.f32.mrf.mxu0
    %v1782 = vadd.f32 0.0, %v1781
    %1783 = vdwg.mxu0
    %v1784 = vadd.f32 %v1714, %v1738
    %v1785 = vadd.f32 %v1715, %v1752
    %v1786 = vadd.f32 %v1716, %v1766
    %v1787 = vadd.f32 %v1717, %v1780
    %v1788 = vadd.f32 %v1718, %v1740
    %v1789 = vadd.f32 %v1719, %v1754
    %v1790 = vadd.f32 %v1720, %v1768
    %v1791 = vadd.f32 %v1721, %v1782
    %s1792 = smul.u32 10, 4
    %s1793 = smul.addr %s1792, 4
    %s1794 = scalar_lea.vmem [#allocation3], %s1793
    %v1795 = vld [vmem:[%s1794] sm:$0xff]
    %v1796 = vld [vmem:[%s1794 + $0x8] sm:$0xff]
    %v1797 = vld [vmem:[%s1794 + $0x10] sm:$0xff]
    %v1798 = vld [vmem:[%s1794 + $0x18] sm:$0xff]
    %v1799 = vunpack.c.l.bf16 %v1795
    %v1800 = vunpack.c.h.bf16 %v1795
    %v1801 = vunpack.c.l.bf16 %v1796
    %v1802 = vunpack.c.h.bf16 %v1796
    %v1803 = vunpack.c.l.bf16 %v1797
    %v1804 = vunpack.c.h.bf16 %v1797
    %v1805 = vunpack.c.l.bf16 %v1798
    %v1806 = vunpack.c.h.bf16 %v1798
    %v1809 = vunpack.c.l.b16 %v1699
    %v1810 = vunpack.c.l.b16 %v1700
    %v1811 = vpack.c.b16 %v1810, %v1809
    %1813 = vmatpush.bf16.msra.mxu0 %v1274
    %1814 = vmatpush.bf16.msra.mxu0 %v1270
    %1815 = vmatpush.bf16.msra.mxu0 %v1266
    %1816 = vmatpush.bf16.msra.mxu0 %v1262
    %1817 = vmatpush.bf16.msra.mxu0 %v1258
    %1818 = vmatpush.bf16.msra.mxu0 %v1254
    %1819 = vmatpush.bf16.msra.mxu0 %v1250
    %1820 = vmatpush.bf16.msra.mxu0 %v1246
    %1821 = vmatmul.bf16.gmra.mxu0 %v1811
    %v1822 = vpop.f32.mrf.mxu0
    %v1823 = vadd.f32 0.0, %v1822
    %v1824 = vpop.f32.mrf.mxu0
    %v1825 = vadd.f32 0.0, %v1824
    %1826 = vdwg.mxu0
    %1827 = vmatpush.bf16.msra.mxu0 %v1275
    %1828 = vmatpush.bf16.msra.mxu0 %v1271
    %1829 = vmatpush.bf16.msra.mxu0 %v1267
    %1830 = vmatpush.bf16.msra.mxu0 %v1263
    %1831 = vmatpush.bf16.msra.mxu0 %v1259
    %1832 = vmatpush.bf16.msra.mxu0 %v1255
    %1833 = vmatpush.bf16.msra.mxu0 %v1251
    %1834 = vmatpush.bf16.msra.mxu0 %v1247
    %1835 = vmatmul.bf16.gmra.mxu0 %v1811
    %v1836 = vpop.f32.mrf.mxu0
    %v1837 = vadd.f32 0.0, %v1836
    %v1838 = vpop.f32.mrf.mxu0
    %v1839 = vadd.f32 0.0, %v1838
    %1840 = vdwg.mxu0
    %1841 = vmatpush.bf16.msra.mxu0 %v1276
    %1842 = vmatpush.bf16.msra.mxu0 %v1272
    %1843 = vmatpush.bf16.msra.mxu0 %v1268
    %1844 = vmatpush.bf16.msra.mxu0 %v1264
    %1845 = vmatpush.bf16.msra.mxu0 %v1260
    %1846 = vmatpush.bf16.msra.mxu0 %v1256
    %1847 = vmatpush.bf16.msra.mxu0 %v1252
    %1848 = vmatpush.bf16.msra.mxu0 %v1248
    %1849 = vmatmul.bf16.gmra.mxu0 %v1811
    %v1850 = vpop.f32.mrf.mxu0
    %v1851 = vadd.f32 0.0, %v1850
    %v1852 = vpop.f32.mrf.mxu0
    %v1853 = vadd.f32 0.0, %v1852
    %1854 = vdwg.mxu0
    %1855 = vmatpush.bf16.msra.mxu0 %v1277
    %1856 = vmatpush.bf16.msra.mxu0 %v1273
    %1857 = vmatpush.bf16.msra.mxu0 %v1269
    %1858 = vmatpush.bf16.msra.mxu0 %v1265
    %1859 = vmatpush.bf16.msra.mxu0 %v1261
    %1860 = vmatpush.bf16.msra.mxu0 %v1257
    %1861 = vmatpush.bf16.msra.mxu0 %v1253
    %1862 = vmatpush.bf16.msra.mxu0 %v1249
    %1863 = vmatmul.bf16.gmra.mxu0 %v1811
    %v1864 = vpop.f32.mrf.mxu0
    %v1865 = vadd.f32 0.0, %v1864
    %v1866 = vpop.f32.mrf.mxu0
    %v1867 = vadd.f32 0.0, %v1866
    %1868 = vdwg.mxu0
    %v1869 = vadd.f32 %v1799, %v1823
    %v1870 = vadd.f32 %v1800, %v1837
    %v1871 = vadd.f32 %v1801, %v1851
    %v1872 = vadd.f32 %v1802, %v1865
    %v1873 = vadd.f32 %v1803, %v1825
    %v1874 = vadd.f32 %v1804, %v1839
    %v1875 = vadd.f32 %v1805, %v1853
    %v1876 = vadd.f32 %v1806, %v1867
    %v1877 = vmul.f32 %v1784, 0.5
    %v1878 = vmul.f32 %v1788, 0.5
    %v1879 = vtanh.pop %v1877
    %v1880 = vtanh.pop %v1878
    %v1881 = vadd.f32 %v1879, 1.0
    %v1882 = vadd.f32 %v1880, 1.0
    %v1883 = vmul.f32 %v1881, 0.5
    %v1884 = vmul.f32 %v1882, 0.5
    %v1885 = vmul.f32 %v1785, 0.5
    %v1886 = vmul.f32 %v1789, 0.5
    %v1887 = vtanh.pop %v1885
    %v1888 = vtanh.pop %v1886
    %v1889 = vadd.f32 %v1887, 1.0
    %v1890 = vadd.f32 %v1888, 1.0
    %v1891 = vmul.f32 %v1889, 0.5
    %v1892 = vmul.f32 %v1890, 0.5
    %v1893 = vtanh.pop %v1786
    %v1894 = vtanh.pop %v1790
    %v1895 = vmul.f32 %v1787, 0.5
    %v1896 = vmul.f32 %v1791, 0.5
    %v1897 = vtanh.pop %v1895
    %v1898 = vtanh.pop %v1896
    %v1899 = vadd.f32 %v1897, 1.0
    %v1900 = vadd.f32 %v1898, 1.0
    %v1901 = vmul.f32 %v1899, 0.5
    %v1902 = vmul.f32 %v1900, 0.5
    %v1903 = vmul.f32 %v1891, %v1655
    %v1904 = vmul.f32 %v1892, %v1656
    %v1905 = vmul.f32 %v1883, %v1893
    %v1906 = vmul.f32 %v1884, %v1894
    %v1907 = vadd.f32 %v1903, %v1905
    %v1908 = vadd.f32 %v1904, %v1906
    %v1909 = vtanh.pop %v1907
    %v1910 = vtanh.pop %v1908
    %v1911 = vmul.f32 %v1901, %v1909
    %v1912 = vmul.f32 %v1902, %v1910
    %v1913 = vpack.c.bf16 %v1911, %v1911
    %v1914 = vpack.c.bf16 %v1912, %v1912
    %v1915 = vmul.f32 %v1869, 0.5
    %v1916 = vmul.f32 %v1873, 0.5
    %v1917 = vtanh.pop %v1915
    %v1918 = vtanh.pop %v1916
    %v1919 = vadd.f32 %v1917, 1.0
    %v1920 = vadd.f32 %v1918, 1.0
    %v1921 = vmul.f32 %v1919, 0.5
    %v1922 = vmul.f32 %v1920, 0.5
    %v1923 = vmul.f32 %v1870, 0.5
    %v1924 = vmul.f32 %v1874, 0.5
    %v1925 = vtanh.pop %v1923
    %v1926 = vtanh.pop %v1924
    %v1927 = vadd.f32 %v1925, 1.0
    %v1928 = vadd.f32 %v1926, 1.0
    %v1929 = vmul.f32 %v1927, 0.5
    %v1930 = vmul.f32 %v1928, 0.5
    %v1931 = vtanh.pop %v1871
    %v1932 = vtanh.pop %v1875
    %v1933 = vmul.f32 %v1872, 0.5
    %v1934 = vmul.f32 %v1876, 0.5
    %v1935 = vtanh.pop %v1933
    %v1936 = vtanh.pop %v1934
    %v1937 = vadd.f32 %v1935, 1.0
    %v1938 = vadd.f32 %v1936, 1.0
    %v1939 = vmul.f32 %v1937, 0.5
    %v1940 = vmul.f32 %v1938, 0.5
    %v1941 = vmul.f32 %v1929, %v1693
    %v1942 = vmul.f32 %v1930, %v1694
    %v1943 = vmul.f32 %v1921, %v1931
    %v1944 = vmul.f32 %v1922, %v1932
    %v1945 = vadd.f32 %v1941, %v1943
    %v1946 = vadd.f32 %v1942, %v1944
    %v1947 = vtanh.pop %v1945
    %v1948 = vtanh.pop %v1946
    %v1949 = vmul.f32 %v1939, %v1947
    %v1950 = vmul.f32 %v1940, %v1948
    %v1951 = vpack.c.bf16 %v1949, %v1949
    %v1952 = vpack.c.bf16 %v1950, %v1950
    %s1953 = scalar_lea.vmem [#allocation4], 16
    %1954 = vst [vmem:[%s1953] sm:$0xf] %v1913
    %1955 = vst [vmem:[%s1953 + $0x4] sm:$0xf] %v1914
    %s1956 = scalar_lea.vmem [#allocation5], 40
    %1957 = vst [vmem:[%s1956] sm:$0xf] %v1951
    %1958 = vst [vmem:[%s1956 + $0x4] sm:$0xf] %v1952
    %s1959 = smul.u32 6, 4
    %s1960 = smul.addr %s1959, 4
    %s1961 = scalar_lea.vmem [#allocation2], %s1960
    %v1962 = vld [vmem:[%s1961] sm:$0xff]
    %v1963 = vld [vmem:[%s1961 + $0x8] sm:$0xff]
    %v1964 = vld [vmem:[%s1961 + $0x10] sm:$0xff]
    %v1965 = vld [vmem:[%s1961 + $0x18] sm:$0xff]
    %v1966 = vunpack.c.l.bf16 %v1962
    %v1967 = vunpack.c.h.bf16 %v1962
    %v1968 = vunpack.c.l.bf16 %v1963
    %v1969 = vunpack.c.h.bf16 %v1963
    %v1970 = vunpack.c.l.bf16 %v1964
    %v1971 = vunpack.c.h.bf16 %v1964
    %v1972 = vunpack.c.l.bf16 %v1965
    %v1973 = vunpack.c.h.bf16 %v1965
    %v1976 = vunpack.c.l.b16 %v1913
    %v1977 = vunpack.c.l.b16 %v1914
    %v1978 = vpack.c.b16 %v1977, %v1976
    %1980 = vmatpush.bf16.msra.mxu0 %v1035
    %1981 = vmatpush.bf16.msra.mxu0 %v1031
    %1982 = vmatpush.bf16.msra.mxu0 %v1027
    %1983 = vmatpush.bf16.msra.mxu0 %v1023
    %1984 = vmatpush.bf16.msra.mxu0 %v1019
    %1985 = vmatpush.bf16.msra.mxu0 %v1015
    %1986 = vmatpush.bf16.msra.mxu0 %v1011
    %1987 = vmatpush.bf16.msra.mxu0 %v1007
    %1988 = vmatmul.bf16.gmra.mxu0 %v1978
    %v1989 = vpop.f32.mrf.mxu0
    %v1990 = vadd.f32 0.0, %v1989
    %v1991 = vpop.f32.mrf.mxu0
    %v1992 = vadd.f32 0.0, %v1991
    %1993 = vdwg.mxu0
    %1994 = vmatpush.bf16.msra.mxu0 %v1036
    %1995 = vmatpush.bf16.msra.mxu0 %v1032
    %1996 = vmatpush.bf16.msra.mxu0 %v1028
    %1997 = vmatpush.bf16.msra.mxu0 %v1024
    %1998 = vmatpush.bf16.msra.mxu0 %v1020
    %1999 = vmatpush.bf16.msra.mxu0 %v1016
    %2000 = vmatpush.bf16.msra.mxu0 %v1012
    %2001 = vmatpush.bf16.msra.mxu0 %v1008
    %2002 = vmatmul.bf16.gmra.mxu0 %v1978
    %v2003 = vpop.f32.mrf.mxu0
    %v2004 = vadd.f32 0.0, %v2003
    %v2005 = vpop.f32.mrf.mxu0
    %v2006 = vadd.f32 0.0, %v2005
    %2007 = vdwg.mxu0
    %2008 = vmatpush.bf16.msra.mxu0 %v1037
    %2009 = vmatpush.bf16.msra.mxu0 %v1033
    %2010 = vmatpush.bf16.msra.mxu0 %v1029
    %2011 = vmatpush.bf16.msra.mxu0 %v1025
    %2012 = vmatpush.bf16.msra.mxu0 %v1021
    %2013 = vmatpush.bf16.msra.mxu0 %v1017
    %2014 = vmatpush.bf16.msra.mxu0 %v1013
    %2015 = vmatpush.bf16.msra.mxu0 %v1009
    %2016 = vmatmul.bf16.gmra.mxu0 %v1978
    %v2017 = vpop.f32.mrf.mxu0
    %v2018 = vadd.f32 0.0, %v2017
    %v2019 = vpop.f32.mrf.mxu0
    %v2020 = vadd.f32 0.0, %v2019
    %2021 = vdwg.mxu0
    %2022 = vmatpush.bf16.msra.mxu0 %v1038
    %2023 = vmatpush.bf16.msra.mxu0 %v1034
    %2024 = vmatpush.bf16.msra.mxu0 %v1030
    %2025 = vmatpush.bf16.msra.mxu0 %v1026
    %2026 = vmatpush.bf16.msra.mxu0 %v1022
    %2027 = vmatpush.bf16.msra.mxu0 %v1018
    %2028 = vmatpush.bf16.msra.mxu0 %v1014
    %2029 = vmatpush.bf16.msra.mxu0 %v1010
    %2030 = vmatmul.bf16.gmra.mxu0 %v1978
    %v2031 = vpop.f32.mrf.mxu0
    %v2032 = vadd.f32 0.0, %v2031
    %v2033 = vpop.f32.mrf.mxu0
    %v2034 = vadd.f32 0.0, %v2033
    %2035 = vdwg.mxu0
    %v2036 = vadd.f32 %v1966, %v1990
    %v2037 = vadd.f32 %v1967, %v2004
    %v2038 = vadd.f32 %v1968, %v2018
    %v2039 = vadd.f32 %v1969, %v2032
    %v2040 = vadd.f32 %v1970, %v1992
    %v2041 = vadd.f32 %v1971, %v2006
    %v2042 = vadd.f32 %v1972, %v2020
    %v2043 = vadd.f32 %v1973, %v2034
    %s2044 = smul.u32 8, 4
    %s2045 = smul.addr %s2044, 4
    %s2046 = scalar_lea.vmem [#allocation3], %s2045
    %v2047 = vld [vmem:[%s2046] sm:$0xff]
    %v2048 = vld [vmem:[%s2046 + $0x8] sm:$0xff]
    %v2049 = vld [vmem:[%s2046 + $0x10] sm:$0xff]
    %v2050 = vld [vmem:[%s2046 + $0x18] sm:$0xff]
    %v2051 = vunpack.c.l.bf16 %v2047
    %v2052 = vunpack.c.h.bf16 %v2047
    %v2053 = vunpack.c.l.bf16 %v2048
    %v2054 = vunpack.c.h.bf16 %v2048
    %v2055 = vunpack.c.l.bf16 %v2049
    %v2056 = vunpack.c.h.bf16 %v2049
    %v2057 = vunpack.c.l.bf16 %v2050
    %v2058 = vunpack.c.h.bf16 %v2050
    %v2061 = vunpack.c.l.b16 %v1951
    %v2062 = vunpack.c.l.b16 %v1952
    %v2063 = vpack.c.b16 %v2062, %v2061
    %2065 = vmatpush.bf16.msra.mxu0 %v1274
    %2066 = vmatpush.bf16.msra.mxu0 %v1270
    %2067 = vmatpush.bf16.msra.mxu0 %v1266
    %2068 = vmatpush.bf16.msra.mxu0 %v1262
    %2069 = vmatpush.bf16.msra.mxu0 %v1258
    %2070 = vmatpush.bf16.msra.mxu0 %v1254
    %2071 = vmatpush.bf16.msra.mxu0 %v1250
    %2072 = vmatpush.bf16.msra.mxu0 %v1246
    %2073 = vmatmul.bf16.gmra.mxu0 %v2063
    %v2074 = vpop.f32.mrf.mxu0
    %v2075 = vadd.f32 0.0, %v2074
    %v2076 = vpop.f32.mrf.mxu0
    %v2077 = vadd.f32 0.0, %v2076
    %2078 = vdwg.mxu0
    %2079 = vmatpush.bf16.msra.mxu0 %v1275
    %2080 = vmatpush.bf16.msra.mxu0 %v1271
    %2081 = vmatpush.bf16.msra.mxu0 %v1267
    %2082 = vmatpush.bf16.msra.mxu0 %v1263
    %2083 = vmatpush.bf16.msra.mxu0 %v1259
    %2084 = vmatpush.bf16.msra.mxu0 %v1255
    %2085 = vmatpush.bf16.msra.mxu0 %v1251
    %2086 = vmatpush.bf16.msra.mxu0 %v1247
    %2087 = vmatmul.bf16.gmra.mxu0 %v2063
    %v2088 = vpop.f32.mrf.mxu0
    %v2089 = vadd.f32 0.0, %v2088
    %v2090 = vpop.f32.mrf.mxu0
    %v2091 = vadd.f32 0.0, %v2090
    %2092 = vdwg.mxu0
    %2093 = vmatpush.bf16.msra.mxu0 %v1276
    %2094 = vmatpush.bf16.msra.mxu0 %v1272
    %2095 = vmatpush.bf16.msra.mxu0 %v1268
    %2096 = vmatpush.bf16.msra.mxu0 %v1264
    %2097 = vmatpush.bf16.msra.mxu0 %v1260
    %2098 = vmatpush.bf16.msra.mxu0 %v1256
    %2099 = vmatpush.bf16.msra.mxu0 %v1252
    %2100 = vmatpush.bf16.msra.mxu0 %v1248
    %2101 = vmatmul.bf16.gmra.mxu0 %v2063
    %v2102 = vpop.f32.mrf.mxu0
    %v2103 = vadd.f32 0.0, %v2102
    %v2104 = vpop.f32.mrf.mxu0
    %v2105 = vadd.f32 0.0, %v2104
    %2106 = vdwg.mxu0
    %2107 = vmatpush.bf16.msra.mxu0 %v1277
    %2108 = vmatpush.bf16.msra.mxu0 %v1273
    %2109 = vmatpush.bf16.msra.mxu0 %v1269
    %2110 = vmatpush.bf16.msra.mxu0 %v1265
    %2111 = vmatpush.bf16.msra.mxu0 %v1261
    %2112 = vmatpush.bf16.msra.mxu0 %v1257
    %2113 = vmatpush.bf16.msra.mxu0 %v1253
    %2114 = vmatpush.bf16.msra.mxu0 %v1249
    %2115 = vmatmul.bf16.gmra.mxu0 %v2063
    %v2116 = vpop.f32.mrf.mxu0
    %v2117 = vadd.f32 0.0, %v2116
    %v2118 = vpop.f32.mrf.mxu0
    %v2119 = vadd.f32 0.0, %v2118
    %2120 = vdwg.mxu0
    %v2121 = vadd.f32 %v2051, %v2075
    %v2122 = vadd.f32 %v2052, %v2089
    %v2123 = vadd.f32 %v2053, %v2103
    %v2124 = vadd.f32 %v2054, %v2117
    %v2125 = vadd.f32 %v2055, %v2077
    %v2126 = vadd.f32 %v2056, %v2091
    %v2127 = vadd.f32 %v2057, %v2105
    %v2128 = vadd.f32 %v2058, %v2119
    %v2129 = vmul.f32 %v2036, 0.5
    %v2130 = vmul.f32 %v2040, 0.5
    %v2131 = vtanh.pop %v2129
    %v2132 = vtanh.pop %v2130
    %v2133 = vadd.f32 %v2131, 1.0
    %v2134 = vadd.f32 %v2132, 1.0
    %v2135 = vmul.f32 %v2133, 0.5
    %v2136 = vmul.f32 %v2134, 0.5
    %v2137 = vmul.f32 %v2037, 0.5
    %v2138 = vmul.f32 %v2041, 0.5
    %v2139 = vtanh.pop %v2137
    %v2140 = vtanh.pop %v2138
    %v2141 = vadd.f32 %v2139, 1.0
    %v2142 = vadd.f32 %v2140, 1.0
    %v2143 = vmul.f32 %v2141, 0.5
    %v2144 = vmul.f32 %v2142, 0.5
    %v2145 = vtanh.pop %v2038
    %v2146 = vtanh.pop %v2042
    %v2147 = vmul.f32 %v2039, 0.5
    %v2148 = vmul.f32 %v2043, 0.5
    %v2149 = vtanh.pop %v2147
    %v2150 = vtanh.pop %v2148
    %v2151 = vadd.f32 %v2149, 1.0
    %v2152 = vadd.f32 %v2150, 1.0
    %v2153 = vmul.f32 %v2151, 0.5
    %v2154 = vmul.f32 %v2152, 0.5
    %v2155 = vmul.f32 %v2143, %v1907
    %v2156 = vmul.f32 %v2144, %v1908
    %v2157 = vmul.f32 %v2135, %v2145
    %v2158 = vmul.f32 %v2136, %v2146
    %v2159 = vadd.f32 %v2155, %v2157
    %v2160 = vadd.f32 %v2156, %v2158
    %v2161 = vtanh.pop %v2159
    %v2162 = vtanh.pop %v2160
    %v2163 = vmul.f32 %v2153, %v2161
    %v2164 = vmul.f32 %v2154, %v2162
    %v2165 = vpack.c.bf16 %v2163, %v2163
    %v2166 = vpack.c.bf16 %v2164, %v2164
    %v2167 = vmul.f32 %v2121, 0.5
    %v2168 = vmul.f32 %v2125, 0.5
    %v2169 = vtanh.pop %v2167
    %v2170 = vtanh.pop %v2168
    %v2171 = vadd.f32 %v2169, 1.0
    %v2172 = vadd.f32 %v2170, 1.0
    %v2173 = vmul.f32 %v2171, 0.5
    %v2174 = vmul.f32 %v2172, 0.5
    %v2175 = vmul.f32 %v2122, 0.5
    %v2176 = vmul.f32 %v2126, 0.5
    %v2177 = vtanh.pop %v2175
    %v2178 = vtanh.pop %v2176
    %v2179 = vadd.f32 %v2177, 1.0
    %v2180 = vadd.f32 %v2178, 1.0
    %v2181 = vmul.f32 %v2179, 0.5
    %v2182 = vmul.f32 %v2180, 0.5
    %v2183 = vtanh.pop %v2123
    %v2184 = vtanh.pop %v2127
    %v2185 = vmul.f32 %v2124, 0.5
    %v2186 = vmul.f32 %v2128, 0.5
    %v2187 = vtanh.pop %v2185
    %v2188 = vtanh.pop %v2186
    %v2189 = vadd.f32 %v2187, 1.0
    %v2190 = vadd.f32 %v2188, 1.0
    %v2191 = vmul.f32 %v2189, 0.5
    %v2192 = vmul.f32 %v2190, 0.5
    %v2193 = vmul.f32 %v2181, %v1945
    %v2194 = vmul.f32 %v2182, %v1946
    %v2195 = vmul.f32 %v2173, %v2183
    %v2196 = vmul.f32 %v2174, %v2184
    %v2197 = vadd.f32 %v2193, %v2195
    %v2198 = vadd.f32 %v2194, %v2196
    %v2199 = vtanh.pop %v2197
    %v2200 = vtanh.pop %v2198
    %v2201 = vmul.f32 %v2191, %v2199
    %v2202 = vmul.f32 %v2192, %v2200
    %v2203 = vpack.c.bf16 %v2201, %v2201
    %v2204 = vpack.c.bf16 %v2202, %v2202
    %s2205 = scalar_lea.vmem [#allocation4], 24
    %2206 = vst [vmem:[%s2205] sm:$0xf] %v2165
    %2207 = vst [vmem:[%s2205 + $0x4] sm:$0xf] %v2166
    %s2208 = scalar_lea.vmem [#allocation5], 32
    %2209 = vst [vmem:[%s2208] sm:$0xf] %v2203
    %2210 = vst [vmem:[%s2208 + $0x4] sm:$0xf] %v2204
    %s2211 = smul.addr %s2044, 4
    %s2212 = scalar_lea.vmem [#allocation2], %s2211
    %v2213 = vld [vmem:[%s2212] sm:$0xff]
    %v2214 = vld [vmem:[%s2212 + $0x8] sm:$0xff]
    %v2215 = vld [vmem:[%s2212 + $0x10] sm:$0xff]
    %v2216 = vld [vmem:[%s2212 + $0x18] sm:$0xff]
    %v2217 = vunpack.c.l.bf16 %v2213
    %v2218 = vunpack.c.h.bf16 %v2213
    %v2219 = vunpack.c.l.bf16 %v2214
    %v2220 = vunpack.c.h.bf16 %v2214
    %v2221 = vunpack.c.l.bf16 %v2215
    %v2222 = vunpack.c.h.bf16 %v2215
    %v2223 = vunpack.c.l.bf16 %v2216
    %v2224 = vunpack.c.h.bf16 %v2216
    %v2227 = vunpack.c.l.b16 %v2165
    %v2228 = vunpack.c.l.b16 %v2166
    %v2229 = vpack.c.b16 %v2228, %v2227
    %2231 = vmatpush.bf16.msra.mxu0 %v1035
    %2232 = vmatpush.bf16.msra.mxu0 %v1031
    %2233 = vmatpush.bf16.msra.mxu0 %v1027
    %2234 = vmatpush.bf16.msra.mxu0 %v1023
    %2235 = vmatpush.bf16.msra.mxu0 %v1019
    %2236 = vmatpush.bf16.msra.mxu0 %v1015
    %2237 = vmatpush.bf16.msra.mxu0 %v1011
    %2238 = vmatpush.bf16.msra.mxu0 %v1007
    %2239 = vmatmul.bf16.gmra.mxu0 %v2229
    %v2240 = vpop.f32.mrf.mxu0
    %v2241 = vadd.f32 0.0, %v2240
    %v2242 = vpop.f32.mrf.mxu0
    %v2243 = vadd.f32 0.0, %v2242
    %2244 = vdwg.mxu0
    %2245 = vmatpush.bf16.msra.mxu0 %v1036
    %2246 = vmatpush.bf16.msra.mxu0 %v1032
    %2247 = vmatpush.bf16.msra.mxu0 %v1028
    %2248 = vmatpush.bf16.msra.mxu0 %v1024
    %2249 = vmatpush.bf16.msra.mxu0 %v1020
    %2250 = vmatpush.bf16.msra.mxu0 %v1016
    %2251 = vmatpush.bf16.msra.mxu0 %v1012
    %2252 = vmatpush.bf16.msra.mxu0 %v1008
    %2253 = vmatmul.bf16.gmra.mxu0 %v2229
    %v2254 = vpop.f32.mrf.mxu0
    %v2255 = vadd.f32 0.0, %v2254
    %v2256 = vpop.f32.mrf.mxu0
    %v2257 = vadd.f32 0.0, %v2256
    %2258 = vdwg.mxu0
    %2259 = vmatpush.bf16.msra.mxu0 %v1037
    %2260 = vmatpush.bf16.msra.mxu0 %v1033
    %2261 = vmatpush.bf16.msra.mxu0 %v1029
    %2262 = vmatpush.bf16.msra.mxu0 %v1025
    %2263 = vmatpush.bf16.msra.mxu0 %v1021
    %2264 = vmatpush.bf16.msra.mxu0 %v1017
    %2265 = vmatpush.bf16.msra.mxu0 %v1013
    %2266 = vmatpush.bf16.msra.mxu0 %v1009
    %2267 = vmatmul.bf16.gmra.mxu0 %v2229
    %v2268 = vpop.f32.mrf.mxu0
    %v2269 = vadd.f32 0.0, %v2268
    %v2270 = vpop.f32.mrf.mxu0
    %v2271 = vadd.f32 0.0, %v2270
    %2272 = vdwg.mxu0
    %2273 = vmatpush.bf16.msra.mxu0 %v1038
    %2274 = vmatpush.bf16.msra.mxu0 %v1034
    %2275 = vmatpush.bf16.msra.mxu0 %v1030
    %2276 = vmatpush.bf16.msra.mxu0 %v1026
    %2277 = vmatpush.bf16.msra.mxu0 %v1022
    %2278 = vmatpush.bf16.msra.mxu0 %v1018
    %2279 = vmatpush.bf16.msra.mxu0 %v1014
    %2280 = vmatpush.bf16.msra.mxu0 %v1010
    %2281 = vmatmul.bf16.gmra.mxu0 %v2229
    %v2282 = vpop.f32.mrf.mxu0
    %v2283 = vadd.f32 0.0, %v2282
    %v2284 = vpop.f32.mrf.mxu0
    %v2285 = vadd.f32 0.0, %v2284
    %2286 = vdwg.mxu0
    %v2287 = vadd.f32 %v2217, %v2241
    %v2288 = vadd.f32 %v2218, %v2255
    %v2289 = vadd.f32 %v2219, %v2269
    %v2290 = vadd.f32 %v2220, %v2283
    %v2291 = vadd.f32 %v2221, %v2243
    %v2292 = vadd.f32 %v2222, %v2257
    %v2293 = vadd.f32 %v2223, %v2271
    %v2294 = vadd.f32 %v2224, %v2285
    %s2295 = smul.addr %s1959, 4
    %s2296 = scalar_lea.vmem [#allocation3], %s2295
    %v2297 = vld [vmem:[%s2296] sm:$0xff]
    %v2298 = vld [vmem:[%s2296 + $0x8] sm:$0xff]
    %v2299 = vld [vmem:[%s2296 + $0x10] sm:$0xff]
    %v2300 = vld [vmem:[%s2296 + $0x18] sm:$0xff]
    %v2301 = vunpack.c.l.bf16 %v2297
    %v2302 = vunpack.c.h.bf16 %v2297
    %v2303 = vunpack.c.l.bf16 %v2298
    %v2304 = vunpack.c.h.bf16 %v2298
    %v2305 = vunpack.c.l.bf16 %v2299
    %v2306 = vunpack.c.h.bf16 %v2299
    %v2307 = vunpack.c.l.bf16 %v2300
    %v2308 = vunpack.c.h.bf16 %v2300
    %v2311 = vunpack.c.l.b16 %v2203
    %v2312 = vunpack.c.l.b16 %v2204
    %v2313 = vpack.c.b16 %v2312, %v2311
    %2315 = vmatpush.bf16.msra.mxu0 %v1274
    %2316 = vmatpush.bf16.msra.mxu0 %v1270
    %2317 = vmatpush.bf16.msra.mxu0 %v1266
    %2318 = vmatpush.bf16.msra.mxu0 %v1262
    %2319 = vmatpush.bf16.msra.mxu0 %v1258
    %2320 = vmatpush.bf16.msra.mxu0 %v1254
    %2321 = vmatpush.bf16.msra.mxu0 %v1250
    %2322 = vmatpush.bf16.msra.mxu0 %v1246
    %2323 = vmatmul.bf16.gmra.mxu0 %v2313
    %v2324 = vpop.f32.mrf.mxu0
    %v2325 = vadd.f32 0.0, %v2324
    %v2326 = vpop.f32.mrf.mxu0
    %v2327 = vadd.f32 0.0, %v2326
    %2328 = vdwg.mxu0
    %2329 = vmatpush.bf16.msra.mxu0 %v1275
    %2330 = vmatpush.bf16.msra.mxu0 %v1271
    %2331 = vmatpush.bf16.msra.mxu0 %v1267
    %2332 = vmatpush.bf16.msra.mxu0 %v1263
    %2333 = vmatpush.bf16.msra.mxu0 %v1259
    %2334 = vmatpush.bf16.msra.mxu0 %v1255
    %2335 = vmatpush.bf16.msra.mxu0 %v1251
    %2336 = vmatpush.bf16.msra.mxu0 %v1247
    %2337 = vmatmul.bf16.gmra.mxu0 %v2313
    %v2338 = vpop.f32.mrf.mxu0
    %v2339 = vadd.f32 0.0, %v2338
    %v2340 = vpop.f32.mrf.mxu0
    %v2341 = vadd.f32 0.0, %v2340
    %2342 = vdwg.mxu0
    %2343 = vmatpush.bf16.msra.mxu0 %v1276
    %2344 = vmatpush.bf16.msra.mxu0 %v1272
    %2345 = vmatpush.bf16.msra.mxu0 %v1268
    %2346 = vmatpush.bf16.msra.mxu0 %v1264
    %2347 = vmatpush.bf16.msra.mxu0 %v1260
    %2348 = vmatpush.bf16.msra.mxu0 %v1256
    %2349 = vmatpush.bf16.msra.mxu0 %v1252
    %2350 = vmatpush.bf16.msra.mxu0 %v1248
    %2351 = vmatmul.bf16.gmra.mxu0 %v2313
    %v2352 = vpop.f32.mrf.mxu0
    %v2353 = vadd.f32 0.0, %v2352
    %v2354 = vpop.f32.mrf.mxu0
    %v2355 = vadd.f32 0.0, %v2354
    %2356 = vdwg.mxu0
    %2357 = vmatpush.bf16.msra.mxu0 %v1277
    %2358 = vmatpush.bf16.msra.mxu0 %v1273
    %2359 = vmatpush.bf16.msra.mxu0 %v1269
    %2360 = vmatpush.bf16.msra.mxu0 %v1265
    %2361 = vmatpush.bf16.msra.mxu0 %v1261
    %2362 = vmatpush.bf16.msra.mxu0 %v1257
    %2363 = vmatpush.bf16.msra.mxu0 %v1253
    %2364 = vmatpush.bf16.msra.mxu0 %v1249
    %2365 = vmatmul.bf16.gmra.mxu0 %v2313
    %v2366 = vpop.f32.mrf.mxu0
    %v2367 = vadd.f32 0.0, %v2366
    %v2368 = vpop.f32.mrf.mxu0
    %v2369 = vadd.f32 0.0, %v2368
    %2370 = vdwg.mxu0
    %v2371 = vadd.f32 %v2301, %v2325
    %v2372 = vadd.f32 %v2302, %v2339
    %v2373 = vadd.f32 %v2303, %v2353
    %v2374 = vadd.f32 %v2304, %v2367
    %v2375 = vadd.f32 %v2305, %v2327
    %v2376 = vadd.f32 %v2306, %v2341
    %v2377 = vadd.f32 %v2307, %v2355
    %v2378 = vadd.f32 %v2308, %v2369
    %v2379 = vmul.f32 %v2287, 0.5
    %v2380 = vmul.f32 %v2291, 0.5
    %v2381 = vtanh.pop %v2379
    %v2382 = vtanh.pop %v2380
    %v2383 = vadd.f32 %v2381, 1.0
    %v2384 = vadd.f32 %v2382, 1.0
    %v2385 = vmul.f32 %v2383, 0.5
    %v2386 = vmul.f32 %v2384, 0.5
    %v2387 = vmul.f32 %v2288, 0.5
    %v2388 = vmul.f32 %v2292, 0.5
    %v2389 = vtanh.pop %v2387
    %v2390 = vtanh.pop %v2388
    %v2391 = vadd.f32 %v2389, 1.0
    %v2392 = vadd.f32 %v2390, 1.0
    %v2393 = vmul.f32 %v2391, 0.5
    %v2394 = vmul.f32 %v2392, 0.5
    %v2395 = vtanh.pop %v2289
    %v2396 = vtanh.pop %v2293
    %v2397 = vmul.f32 %v2290, 0.5
    %v2398 = vmul.f32 %v2294, 0.5
    %v2399 = vtanh.pop %v2397
    %v2400 = vtanh.pop %v2398
    %v2401 = vadd.f32 %v2399, 1.0
    %v2402 = vadd.f32 %v2400, 1.0
    %v2403 = vmul.f32 %v2401, 0.5
    %v2404 = vmul.f32 %v2402, 0.5
    %v2405 = vmul.f32 %v2393, %v2159
    %v2406 = vmul.f32 %v2394, %v2160
    %v2407 = vmul.f32 %v2385, %v2395
    %v2408 = vmul.f32 %v2386, %v2396
    %v2409 = vadd.f32 %v2405, %v2407
    %v2410 = vadd.f32 %v2406, %v2408
    %v2411 = vtanh.pop %v2409
    %v2412 = vtanh.pop %v2410
    %v2413 = vmul.f32 %v2403, %v2411
    %v2414 = vmul.f32 %v2404, %v2412
    %v2415 = vpack.c.bf16 %v2413, %v2413
    %v2416 = vpack.c.bf16 %v2414, %v2414
    %v2417 = vmul.f32 %v2371, 0.5
    %v2418 = vmul.f32 %v2375, 0.5
    %v2419 = vtanh.pop %v2417
    %v2420 = vtanh.pop %v2418
    %v2421 = vadd.f32 %v2419, 1.0
    %v2422 = vadd.f32 %v2420, 1.0
    %v2423 = vmul.f32 %v2421, 0.5
    %v2424 = vmul.f32 %v2422, 0.5
    %v2425 = vmul.f32 %v2372, 0.5
    %v2426 = vmul.f32 %v2376, 0.5
    %v2427 = vtanh.pop %v2425
    %v2428 = vtanh.pop %v2426
    %v2429 = vadd.f32 %v2427, 1.0
    %v2430 = vadd.f32 %v2428, 1.0
    %v2431 = vmul.f32 %v2429, 0.5
    %v2432 = vmul.f32 %v2430, 0.5
    %v2433 = vtanh.pop %v2373
    %v2434 = vtanh.pop %v2377
    %v2435 = vmul.f32 %v2374, 0.5
    %v2436 = vmul.f32 %v2378, 0.5
    %v2437 = vtanh.pop %v2435
    %v2438 = vtanh.pop %v2436
    %v2439 = vadd.f32 %v2437, 1.0
    %v2440 = vadd.f32 %v2438, 1.0
    %v2441 = vmul.f32 %v2439, 0.5
    %v2442 = vmul.f32 %v2440, 0.5
    %v2443 = vmul.f32 %v2431, %v2197
    %v2444 = vmul.f32 %v2432, %v2198
    %v2445 = vmul.f32 %v2423, %v2433
    %v2446 = vmul.f32 %v2424, %v2434
    %v2447 = vadd.f32 %v2443, %v2445
    %v2448 = vadd.f32 %v2444, %v2446
    %v2449 = vtanh.pop %v2447
    %v2450 = vtanh.pop %v2448
    %v2451 = vmul.f32 %v2441, %v2449
    %v2452 = vmul.f32 %v2442, %v2450
    %v2453 = vpack.c.bf16 %v2451, %v2451
    %v2454 = vpack.c.bf16 %v2452, %v2452
    %s2455 = scalar_lea.vmem [#allocation4], 32
    %2456 = vst [vmem:[%s2455] sm:$0xf] %v2415
    %2457 = vst [vmem:[%s2455 + $0x4] sm:$0xf] %v2416
    %s2458 = scalar_lea.vmem [#allocation5], 24
    %2459 = vst [vmem:[%s2458] sm:$0xf] %v2453
    %2460 = vst [vmem:[%s2458 + $0x4] sm:$0xf] %v2454
    %s2461 = smul.addr %s1792, 4
    %s2462 = scalar_lea.vmem [#allocation2], %s2461
    %v2463 = vld [vmem:[%s2462] sm:$0xff]
    %v2464 = vld [vmem:[%s2462 + $0x8] sm:$0xff]
    %v2465 = vld [vmem:[%s2462 + $0x10] sm:$0xff]
    %v2466 = vld [vmem:[%s2462 + $0x18] sm:$0xff]
    %v2467 = vunpack.c.l.bf16 %v2463
    %v2468 = vunpack.c.h.bf16 %v2463
    %v2469 = vunpack.c.l.bf16 %v2464
    %v2470 = vunpack.c.h.bf16 %v2464
    %v2471 = vunpack.c.l.bf16 %v2465
    %v2472 = vunpack.c.h.bf16 %v2465
    %v2473 = vunpack.c.l.bf16 %v2466
    %v2474 = vunpack.c.h.bf16 %v2466
    %v2477 = vunpack.c.l.b16 %v2415
    %v2478 = vunpack.c.l.b16 %v2416
    %v2479 = vpack.c.b16 %v2478, %v2477
    %2481 = vmatpush.bf16.msra.mxu0 %v1035
    %2482 = vmatpush.bf16.msra.mxu0 %v1031
    %2483 = vmatpush.bf16.msra.mxu0 %v1027
    %2484 = vmatpush.bf16.msra.mxu0 %v1023
    %2485 = vmatpush.bf16.msra.mxu0 %v1019
    %2486 = vmatpush.bf16.msra.mxu0 %v1015
    %2487 = vmatpush.bf16.msra.mxu0 %v1011
    %2488 = vmatpush.bf16.msra.mxu0 %v1007
    %2489 = vmatmul.bf16.gmra.mxu0 %v2479
    %v2490 = vpop.f32.mrf.mxu0
    %v2491 = vadd.f32 0.0, %v2490
    %v2492 = vpop.f32.mrf.mxu0
    %v2493 = vadd.f32 0.0, %v2492
    %2494 = vdwg.mxu0
    %2495 = vmatpush.bf16.msra.mxu0 %v1036
    %2496 = vmatpush.bf16.msra.mxu0 %v1032
    %2497 = vmatpush.bf16.msra.mxu0 %v1028
    %2498 = vmatpush.bf16.msra.mxu0 %v1024
    %2499 = vmatpush.bf16.msra.mxu0 %v1020
    %2500 = vmatpush.bf16.msra.mxu0 %v1016
    %2501 = vmatpush.bf16.msra.mxu0 %v1012
    %2502 = vmatpush.bf16.msra.mxu0 %v1008
    %2503 = vmatmul.bf16.gmra.mxu0 %v2479
    %v2504 = vpop.f32.mrf.mxu0
    %v2505 = vadd.f32 0.0, %v2504
    %v2506 = vpop.f32.mrf.mxu0
    %v2507 = vadd.f32 0.0, %v2506
    %2508 = vdwg.mxu0
    %2509 = vmatpush.bf16.msra.mxu0 %v1037
    %2510 = vmatpush.bf16.msra.mxu0 %v1033
    %2511 = vmatpush.bf16.msra.mxu0 %v1029
    %2512 = vmatpush.bf16.msra.mxu0 %v1025
    %2513 = vmatpush.bf16.msra.mxu0 %v1021
    %2514 = vmatpush.bf16.msra.mxu0 %v1017
    %2515 = vmatpush.bf16.msra.mxu0 %v1013
    %2516 = vmatpush.bf16.msra.mxu0 %v1009
    %2517 = vmatmul.bf16.gmra.mxu0 %v2479
    %v2518 = vpop.f32.mrf.mxu0
    %v2519 = vadd.f32 0.0, %v2518
    %v2520 = vpop.f32.mrf.mxu0
    %v2521 = vadd.f32 0.0, %v2520
    %2522 = vdwg.mxu0
    %2523 = vmatpush.bf16.msra.mxu0 %v1038
    %2524 = vmatpush.bf16.msra.mxu0 %v1034
    %2525 = vmatpush.bf16.msra.mxu0 %v1030
    %2526 = vmatpush.bf16.msra.mxu0 %v1026
    %2527 = vmatpush.bf16.msra.mxu0 %v1022
    %2528 = vmatpush.bf16.msra.mxu0 %v1018
    %2529 = vmatpush.bf16.msra.mxu0 %v1014
    %2530 = vmatpush.bf16.msra.mxu0 %v1010
    %2531 = vmatmul.bf16.gmra.mxu0 %v2479
    %v2532 = vpop.f32.mrf.mxu0
    %v2533 = vadd.f32 0.0, %v2532
    %v2534 = vpop.f32.mrf.mxu0
    %v2535 = vadd.f32 0.0, %v2534
    %2536 = vdwg.mxu0
    %v2537 = vadd.f32 %v2467, %v2491
    %v2538 = vadd.f32 %v2468, %v2505
    %v2539 = vadd.f32 %v2469, %v2519
    %v2540 = vadd.f32 %v2470, %v2533
    %v2541 = vadd.f32 %v2471, %v2493
    %v2542 = vadd.f32 %v2472, %v2507
    %v2543 = vadd.f32 %v2473, %v2521
    %v2544 = vadd.f32 %v2474, %v2535
    %s2545 = smul.addr %s1707, 4
    %s2546 = scalar_lea.vmem [#allocation3], %s2545
    %v2547 = vld [vmem:[%s2546] sm:$0xff]
    %v2548 = vld [vmem:[%s2546 + $0x8] sm:$0xff]
    %v2549 = vld [vmem:[%s2546 + $0x10] sm:$0xff]
    %v2550 = vld [vmem:[%s2546 + $0x18] sm:$0xff]
    %v2551 = vunpack.c.l.bf16 %v2547
    %v2552 = vunpack.c.h.bf16 %v2547
    %v2553 = vunpack.c.l.bf16 %v2548
    %v2554 = vunpack.c.h.bf16 %v2548
    %v2555 = vunpack.c.l.bf16 %v2549
    %v2556 = vunpack.c.h.bf16 %v2549
    %v2557 = vunpack.c.l.bf16 %v2550
    %v2558 = vunpack.c.h.bf16 %v2550
    %v2561 = vunpack.c.l.b16 %v2453
    %v2562 = vunpack.c.l.b16 %v2454
    %v2563 = vpack.c.b16 %v2562, %v2561
    %2565 = vmatpush.bf16.msra.mxu0 %v1274
    %2566 = vmatpush.bf16.msra.mxu0 %v1270
    %2567 = vmatpush.bf16.msra.mxu0 %v1266
    %2568 = vmatpush.bf16.msra.mxu0 %v1262
    %2569 = vmatpush.bf16.msra.mxu0 %v1258
    %2570 = vmatpush.bf16.msra.mxu0 %v1254
    %2571 = vmatpush.bf16.msra.mxu0 %v1250
    %2572 = vmatpush.bf16.msra.mxu0 %v1246
    %2573 = vmatmul.bf16.gmra.mxu0 %v2563
    %v2574 = vpop.f32.mrf.mxu0
    %v2575 = vadd.f32 0.0, %v2574
    %v2576 = vpop.f32.mrf.mxu0
    %v2577 = vadd.f32 0.0, %v2576
    %2578 = vdwg.mxu0
    %2579 = vmatpush.bf16.msra.mxu0 %v1275
    %2580 = vmatpush.bf16.msra.mxu0 %v1271
    %2581 = vmatpush.bf16.msra.mxu0 %v1267
    %2582 = vmatpush.bf16.msra.mxu0 %v1263
    %2583 = vmatpush.bf16.msra.mxu0 %v1259
    %2584 = vmatpush.bf16.msra.mxu0 %v1255
    %2585 = vmatpush.bf16.msra.mxu0 %v1251
    %2586 = vmatpush.bf16.msra.mxu0 %v1247
    %2587 = vmatmul.bf16.gmra.mxu0 %v2563
    %v2588 = vpop.f32.mrf.mxu0
    %v2589 = vadd.f32 0.0, %v2588
    %v2590 = vpop.f32.mrf.mxu0
    %v2591 = vadd.f32 0.0, %v2590
    %2592 = vdwg.mxu0
    %2593 = vmatpush.bf16.msra.mxu0 %v1276
    %2594 = vmatpush.bf16.msra.mxu0 %v1272
    %2595 = vmatpush.bf16.msra.mxu0 %v1268
    %2596 = vmatpush.bf16.msra.mxu0 %v1264
    %2597 = vmatpush.bf16.msra.mxu0 %v1260
    %2598 = vmatpush.bf16.msra.mxu0 %v1256
    %2599 = vmatpush.bf16.msra.mxu0 %v1252
    %2600 = vmatpush.bf16.msra.mxu0 %v1248
    %2601 = vmatmul.bf16.gmra.mxu0 %v2563
    %v2602 = vpop.f32.mrf.mxu0
    %v2603 = vadd.f32 0.0, %v2602
    %v2604 = vpop.f32.mrf.mxu0
    %v2605 = vadd.f32 0.0, %v2604
    %2606 = vdwg.mxu0
    %2607 = vmatpush.bf16.msra.mxu0 %v1277
    %2608 = vmatpush.bf16.msra.mxu0 %v1273
    %2609 = vmatpush.bf16.msra.mxu0 %v1269
    %2610 = vmatpush.bf16.msra.mxu0 %v1265
    %2611 = vmatpush.bf16.msra.mxu0 %v1261
    %2612 = vmatpush.bf16.msra.mxu0 %v1257
    %2613 = vmatpush.bf16.msra.mxu0 %v1253
    %2614 = vmatpush.bf16.msra.mxu0 %v1249
    %2615 = vmatmul.bf16.gmra.mxu0 %v2563
    %v2616 = vpop.f32.mrf.mxu0
    %v2617 = vadd.f32 0.0, %v2616
    %v2618 = vpop.f32.mrf.mxu0
    %v2619 = vadd.f32 0.0, %v2618
    %2620 = vdwg.mxu0
    %v2621 = vadd.f32 %v2551, %v2575
    %v2622 = vadd.f32 %v2552, %v2589
    %v2623 = vadd.f32 %v2553, %v2603
    %v2624 = vadd.f32 %v2554, %v2617
    %v2625 = vadd.f32 %v2555, %v2577
    %v2626 = vadd.f32 %v2556, %v2591
    %v2627 = vadd.f32 %v2557, %v2605
    %v2628 = vadd.f32 %v2558, %v2619
    %v2629 = vmul.f32 %v2537, 0.5
    %v2630 = vmul.f32 %v2541, 0.5
    %v2631 = vtanh.pop %v2629
    %v2632 = vtanh.pop %v2630
    %v2633 = vadd.f32 %v2631, 1.0
    %v2634 = vadd.f32 %v2632, 1.0
    %v2635 = vmul.f32 %v2633, 0.5
    %v2636 = vmul.f32 %v2634, 0.5
    %v2637 = vmul.f32 %v2538, 0.5
    %v2638 = vmul.f32 %v2542, 0.5
    %v2639 = vtanh.pop %v2637
    %v2640 = vtanh.pop %v2638
    %v2641 = vadd.f32 %v2639, 1.0
    %v2642 = vadd.f32 %v2640, 1.0
    %v2643 = vmul.f32 %v2641, 0.5
    %v2644 = vmul.f32 %v2642, 0.5
    %v2645 = vtanh.pop %v2539
    %v2646 = vtanh.pop %v2543
    %v2647 = vmul.f32 %v2540, 0.5
    %v2648 = vmul.f32 %v2544, 0.5
    %v2649 = vtanh.pop %v2647
    %v2650 = vtanh.pop %v2648
    %v2651 = vadd.f32 %v2649, 1.0
    %v2652 = vadd.f32 %v2650, 1.0
    %v2653 = vmul.f32 %v2651, 0.5
    %v2654 = vmul.f32 %v2652, 0.5
    %v2655 = vmul.f32 %v2643, %v2409
    %v2656 = vmul.f32 %v2644, %v2410
    %v2657 = vmul.f32 %v2635, %v2645
    %v2658 = vmul.f32 %v2636, %v2646
    %v2659 = vadd.f32 %v2655, %v2657
    %v2660 = vadd.f32 %v2656, %v2658
    %v2661 = vtanh.pop %v2659
    %v2662 = vtanh.pop %v2660
    %v2663 = vmul.f32 %v2653, %v2661
    %v2664 = vmul.f32 %v2654, %v2662
    %v2665 = vpack.c.bf16 %v2663, %v2663
    %v2666 = vpack.c.bf16 %v2664, %v2664
    %v2667 = vmul.f32 %v2621, 0.5
    %v2668 = vmul.f32 %v2625, 0.5
    %v2669 = vtanh.pop %v2667
    %v2670 = vtanh.pop %v2668
    %v2671 = vadd.f32 %v2669, 1.0
    %v2672 = vadd.f32 %v2670, 1.0
    %v2673 = vmul.f32 %v2671, 0.5
    %v2674 = vmul.f32 %v2672, 0.5
    %v2675 = vmul.f32 %v2622, 0.5
    %v2676 = vmul.f32 %v2626, 0.5
    %v2677 = vtanh.pop %v2675
    %v2678 = vtanh.pop %v2676
    %v2679 = vadd.f32 %v2677, 1.0
    %v2680 = vadd.f32 %v2678, 1.0
    %v2681 = vmul.f32 %v2679, 0.5
    %v2682 = vmul.f32 %v2680, 0.5
    %v2683 = vtanh.pop %v2623
    %v2684 = vtanh.pop %v2627
    %v2685 = vmul.f32 %v2624, 0.5
    %v2686 = vmul.f32 %v2628, 0.5
    %v2687 = vtanh.pop %v2685
    %v2688 = vtanh.pop %v2686
    %v2689 = vadd.f32 %v2687, 1.0
    %v2690 = vadd.f32 %v2688, 1.0
    %v2691 = vmul.f32 %v2689, 0.5
    %v2692 = vmul.f32 %v2690, 0.5
    %v2693 = vmul.f32 %v2681, %v2447
    %v2694 = vmul.f32 %v2682, %v2448
    %v2695 = vmul.f32 %v2673, %v2683
    %v2696 = vmul.f32 %v2674, %v2684
    %v2697 = vadd.f32 %v2693, %v2695
    %v2698 = vadd.f32 %v2694, %v2696
    %v2699 = vtanh.pop %v2697
    %v2700 = vtanh.pop %v2698
    %v2701 = vmul.f32 %v2691, %v2699
    %v2702 = vmul.f32 %v2692, %v2700
    %v2703 = vpack.c.bf16 %v2701, %v2701
    %v2704 = vpack.c.bf16 %v2702, %v2702
    %s2705 = scalar_lea.vmem [#allocation4], 40
    %2706 = vst [vmem:[%s2705] sm:$0xf] %v2665
    %2707 = vst [vmem:[%s2705 + $0x4] sm:$0xf] %v2666
    %s2708 = scalar_lea.vmem [#allocation5], 16
    %2709 = vst [vmem:[%s2708] sm:$0xf] %v2703
    %2710 = vst [vmem:[%s2708 + $0x4] sm:$0xf] %v2704
    %s2711 = smul.addr %s1540, 4
    %s2712 = scalar_lea.vmem [#allocation2], %s2711
    %v2713 = vld [vmem:[%s2712] sm:$0xff]
    %v2714 = vld [vmem:[%s2712 + $0x8] sm:$0xff]
    %v2715 = vld [vmem:[%s2712 + $0x10] sm:$0xff]
    %v2716 = vld [vmem:[%s2712 + $0x18] sm:$0xff]
    %v2717 = vunpack.c.l.bf16 %v2713
    %v2718 = vunpack.c.h.bf16 %v2713
    %v2719 = vunpack.c.l.bf16 %v2714
    %v2720 = vunpack.c.h.bf16 %v2714
    %v2721 = vunpack.c.l.bf16 %v2715
    %v2722 = vunpack.c.h.bf16 %v2715
    %v2723 = vunpack.c.l.bf16 %v2716
    %v2724 = vunpack.c.h.bf16 %v2716
    %v2727 = vunpack.c.l.b16 %v2665
    %v2728 = vunpack.c.l.b16 %v2666
    %v2729 = vpack.c.b16 %v2728, %v2727
    %2731 = vmatpush.bf16.msra.mxu0 %v1035
    %2732 = vmatpush.bf16.msra.mxu0 %v1031
    %2733 = vmatpush.bf16.msra.mxu0 %v1027
    %2734 = vmatpush.bf16.msra.mxu0 %v1023
    %2735 = vmatpush.bf16.msra.mxu0 %v1019
    %2736 = vmatpush.bf16.msra.mxu0 %v1015
    %2737 = vmatpush.bf16.msra.mxu0 %v1011
    %2738 = vmatpush.bf16.msra.mxu0 %v1007
    %2739 = vmatmul.bf16.gmra.mxu0 %v2729
    %v2740 = vpop.f32.mrf.mxu0
    %v2741 = vadd.f32 0.0, %v2740
    %v2742 = vpop.f32.mrf.mxu0
    %v2743 = vadd.f32 0.0, %v2742
    %2744 = vdwg.mxu0
    %2745 = vmatpush.bf16.msra.mxu0 %v1036
    %2746 = vmatpush.bf16.msra.mxu0 %v1032
    %2747 = vmatpush.bf16.msra.mxu0 %v1028
    %2748 = vmatpush.bf16.msra.mxu0 %v1024
    %2749 = vmatpush.bf16.msra.mxu0 %v1020
    %2750 = vmatpush.bf16.msra.mxu0 %v1016
    %2751 = vmatpush.bf16.msra.mxu0 %v1012
    %2752 = vmatpush.bf16.msra.mxu0 %v1008
    %2753 = vmatmul.bf16.gmra.mxu0 %v2729
    %v2754 = vpop.f32.mrf.mxu0
    %v2755 = vadd.f32 0.0, %v2754
    %v2756 = vpop.f32.mrf.mxu0
    %v2757 = vadd.f32 0.0, %v2756
    %2758 = vdwg.mxu0
    %2759 = vmatpush.bf16.msra.mxu0 %v1037
    %2760 = vmatpush.bf16.msra.mxu0 %v1033
    %2761 = vmatpush.bf16.msra.mxu0 %v1029
    %2762 = vmatpush.bf16.msra.mxu0 %v1025
    %2763 = vmatpush.bf16.msra.mxu0 %v1021
    %2764 = vmatpush.bf16.msra.mxu0 %v1017
    %2765 = vmatpush.bf16.msra.mxu0 %v1013
    %2766 = vmatpush.bf16.msra.mxu0 %v1009
    %2767 = vmatmul.bf16.gmra.mxu0 %v2729
    %v2768 = vpop.f32.mrf.mxu0
    %v2769 = vadd.f32 0.0, %v2768
    %v2770 = vpop.f32.mrf.mxu0
    %v2771 = vadd.f32 0.0, %v2770
    %2772 = vdwg.mxu0
    %2773 = vmatpush.bf16.msra.mxu0 %v1038
    %2774 = vmatpush.bf16.msra.mxu0 %v1034
    %2775 = vmatpush.bf16.msra.mxu0 %v1030
    %2776 = vmatpush.bf16.msra.mxu0 %v1026
    %2777 = vmatpush.bf16.msra.mxu0 %v1022
    %2778 = vmatpush.bf16.msra.mxu0 %v1018
    %2779 = vmatpush.bf16.msra.mxu0 %v1014
    %2780 = vmatpush.bf16.msra.mxu0 %v1010
    %2781 = vmatmul.bf16.gmra.mxu0 %v2729
    %v2782 = vpop.f32.mrf.mxu0
    %v2783 = vadd.f32 0.0, %v2782
    %v2784 = vpop.f32.mrf.mxu0
    %v2785 = vadd.f32 0.0, %v2784
    %2786 = vdwg.mxu0
    %v2787 = vadd.f32 %v2717, %v2741
    %v2788 = vadd.f32 %v2718, %v2755
    %v2789 = vadd.f32 %v2719, %v2769
    %v2790 = vadd.f32 %v2720, %v2783
    %v2791 = vadd.f32 %v2721, %v2743
    %v2792 = vadd.f32 %v2722, %v2757
    %v2793 = vadd.f32 %v2723, %v2771
    %v2794 = vadd.f32 %v2724, %v2785
    %s2795 = smul.addr %s1455, 4
    %s2796 = scalar_lea.vmem [#allocation3], %s2795
    %v2797 = vld [vmem:[%s2796] sm:$0xff]
    %v2798 = vld [vmem:[%s2796 + $0x8] sm:$0xff]
    %v2799 = vld [vmem:[%s2796 + $0x10] sm:$0xff]
    %v2800 = vld [vmem:[%s2796 + $0x18] sm:$0xff]
    %v2801 = vunpack.c.l.bf16 %v2797
    %v2802 = vunpack.c.h.bf16 %v2797
    %v2803 = vunpack.c.l.bf16 %v2798
    %v2804 = vunpack.c.h.bf16 %v2798
    %v2805 = vunpack.c.l.bf16 %v2799
    %v2806 = vunpack.c.h.bf16 %v2799
    %v2807 = vunpack.c.l.bf16 %v2800
    %v2808 = vunpack.c.h.bf16 %v2800
    %v2811 = vunpack.c.l.b16 %v2703
    %v2812 = vunpack.c.l.b16 %v2704
    %v2813 = vpack.c.b16 %v2812, %v2811
    %2815 = vmatpush.bf16.msra.mxu0 %v1274
    %2816 = vmatpush.bf16.msra.mxu0 %v1270
    %2817 = vmatpush.bf16.msra.mxu0 %v1266
    %2818 = vmatpush.bf16.msra.mxu0 %v1262
    %2819 = vmatpush.bf16.msra.mxu0 %v1258
    %2820 = vmatpush.bf16.msra.mxu0 %v1254
    %2821 = vmatpush.bf16.msra.mxu0 %v1250
    %2822 = vmatpush.bf16.msra.mxu0 %v1246
    %2823 = vmatmul.bf16.gmra.mxu0 %v2813
    %v2824 = vpop.f32.mrf.mxu0
    %v2825 = vadd.f32 0.0, %v2824
    %v2826 = vpop.f32.mrf.mxu0
    %v2827 = vadd.f32 0.0, %v2826
    %2828 = vdwg.mxu0
    %2829 = vmatpush.bf16.msra.mxu0 %v1275
    %2830 = vmatpush.bf16.msra.mxu0 %v1271
    %2831 = vmatpush.bf16.msra.mxu0 %v1267
    %2832 = vmatpush.bf16.msra.mxu0 %v1263
    %2833 = vmatpush.bf16.msra.mxu0 %v1259
    %2834 = vmatpush.bf16.msra.mxu0 %v1255
    %2835 = vmatpush.bf16.msra.mxu0 %v1251
    %2836 = vmatpush.bf16.msra.mxu0 %v1247
    %2837 = vmatmul.bf16.gmra.mxu0 %v2813
    %v2838 = vpop.f32.mrf.mxu0
    %v2839 = vadd.f32 0.0, %v2838
    %v2840 = vpop.f32.mrf.mxu0
    %v2841 = vadd.f32 0.0, %v2840
    %2842 = vdwg.mxu0
    %2843 = vmatpush.bf16.msra.mxu0 %v1276
    %2844 = vmatpush.bf16.msra.mxu0 %v1272
    %2845 = vmatpush.bf16.msra.mxu0 %v1268
    %2846 = vmatpush.bf16.msra.mxu0 %v1264
    %2847 = vmatpush.bf16.msra.mxu0 %v1260
    %2848 = vmatpush.bf16.msra.mxu0 %v1256
    %2849 = vmatpush.bf16.msra.mxu0 %v1252
    %2850 = vmatpush.bf16.msra.mxu0 %v1248
    %2851 = vmatmul.bf16.gmra.mxu0 %v2813
    %v2852 = vpop.f32.mrf.mxu0
    %v2853 = vadd.f32 0.0, %v2852
    %v2854 = vpop.f32.mrf.mxu0
    %v2855 = vadd.f32 0.0, %v2854
    %2856 = vdwg.mxu0
    %2857 = vmatpush.bf16.msra.mxu0 %v1277
    %2858 = vmatpush.bf16.msra.mxu0 %v1273
    %2859 = vmatpush.bf16.msra.mxu0 %v1269
    %2860 = vmatpush.bf16.msra.mxu0 %v1265
    %2861 = vmatpush.bf16.msra.mxu0 %v1261
    %2862 = vmatpush.bf16.msra.mxu0 %v1257
    %2863 = vmatpush.bf16.msra.mxu0 %v1253
    %2864 = vmatpush.bf16.msra.mxu0 %v1249
    %2865 = vmatmul.bf16.gmra.mxu0 %v2813
    %v2866 = vpop.f32.mrf.mxu0
    %v2867 = vadd.f32 0.0, %v2866
    %v2868 = vpop.f32.mrf.mxu0
    %v2869 = vadd.f32 0.0, %v2868
    %2870 = vdwg.mxu0
    %v2871 = vadd.f32 %v2801, %v2825
    %v2872 = vadd.f32 %v2802, %v2839
    %v2873 = vadd.f32 %v2803, %v2853
    %v2874 = vadd.f32 %v2804, %v2867
    %v2875 = vadd.f32 %v2805, %v2827
    %v2876 = vadd.f32 %v2806, %v2841
    %v2877 = vadd.f32 %v2807, %v2855
    %v2878 = vadd.f32 %v2808, %v2869
    %v2879 = vmul.f32 %v2787, 0.5
    %v2880 = vmul.f32 %v2791, 0.5
    %v2881 = vtanh.pop %v2879
    %v2882 = vtanh.pop %v2880
    %v2883 = vadd.f32 %v2881, 1.0
    %v2884 = vadd.f32 %v2882, 1.0
    %v2885 = vmul.f32 %v2883, 0.5
    %v2886 = vmul.f32 %v2884, 0.5
    %v2887 = vmul.f32 %v2788, 0.5
    %v2888 = vmul.f32 %v2792, 0.5
    %v2889 = vtanh.pop %v2887
    %v2890 = vtanh.pop %v2888
    %v2891 = vadd.f32 %v2889, 1.0
    %v2892 = vadd.f32 %v2890, 1.0
    %v2893 = vmul.f32 %v2891, 0.5
    %v2894 = vmul.f32 %v2892, 0.5
    %v2895 = vtanh.pop %v2789
    %v2896 = vtanh.pop %v2793
    %v2897 = vmul.f32 %v2790, 0.5
    %v2898 = vmul.f32 %v2794, 0.5
    %v2899 = vtanh.pop %v2897
    %v2900 = vtanh.pop %v2898
    %v2901 = vadd.f32 %v2899, 1.0
    %v2902 = vadd.f32 %v2900, 1.0
    %v2903 = vmul.f32 %v2901, 0.5
    %v2904 = vmul.f32 %v2902, 0.5
    %v2905 = vmul.f32 %v2893, %v2659
    %v2906 = vmul.f32 %v2894, %v2660
    %v2907 = vmul.f32 %v2885, %v2895
    %v2908 = vmul.f32 %v2886, %v2896
    %v2909 = vadd.f32 %v2905, %v2907
    %v2910 = vadd.f32 %v2906, %v2908
    %v2911 = vtanh.pop %v2909
    %v2912 = vtanh.pop %v2910
    %v2913 = vmul.f32 %v2903, %v2911
    %v2914 = vmul.f32 %v2904, %v2912
    %v2915 = vpack.c.bf16 %v2913, %v2913
    %v2916 = vpack.c.bf16 %v2914, %v2914
    %v2917 = vmul.f32 %v2871, 0.5
    %v2918 = vmul.f32 %v2875, 0.5
    %v2919 = vtanh.pop %v2917
    %v2920 = vtanh.pop %v2918
    %v2921 = vadd.f32 %v2919, 1.0
    %v2922 = vadd.f32 %v2920, 1.0
    %v2923 = vmul.f32 %v2921, 0.5
    %v2924 = vmul.f32 %v2922, 0.5
    %v2925 = vmul.f32 %v2872, 0.5
    %v2926 = vmul.f32 %v2876, 0.5
    %v2927 = vtanh.pop %v2925
    %v2928 = vtanh.pop %v2926
    %v2929 = vadd.f32 %v2927, 1.0
    %v2930 = vadd.f32 %v2928, 1.0
    %v2931 = vmul.f32 %v2929, 0.5
    %v2932 = vmul.f32 %v2930, 0.5
    %v2933 = vtanh.pop %v2873
    %v2934 = vtanh.pop %v2877
    %v2935 = vmul.f32 %v2874, 0.5
    %v2936 = vmul.f32 %v2878, 0.5
    %v2937 = vtanh.pop %v2935
    %v2938 = vtanh.pop %v2936
    %v2939 = vadd.f32 %v2937, 1.0
    %v2940 = vadd.f32 %v2938, 1.0
    %v2941 = vmul.f32 %v2939, 0.5
    %v2942 = vmul.f32 %v2940, 0.5
    %v2943 = vmul.f32 %v2931, %v2697
    %v2944 = vmul.f32 %v2932, %v2698
    %v2945 = vmul.f32 %v2923, %v2933
    %v2946 = vmul.f32 %v2924, %v2934
    %v2947 = vadd.f32 %v2943, %v2945
    %v2948 = vadd.f32 %v2944, %v2946
    %v2949 = vtanh.pop %v2947
    %v2950 = vtanh.pop %v2948
    %v2951 = vmul.f32 %v2941, %v2949
    %v2952 = vmul.f32 %v2942, %v2950
    %v2953 = vpack.c.bf16 %v2951, %v2951
    %v2954 = vpack.c.bf16 %v2952, %v2952
    %s2955 = scalar_lea.vmem [#allocation4], 48
    %2956 = vst [vmem:[%s2955] sm:$0xf] %v2915
    %2957 = vst [vmem:[%s2955 + $0x4] sm:$0xf] %v2916
    %s2958 = scalar_lea.vmem [#allocation5], 8
    %2959 = vst [vmem:[%s2958] sm:$0xf] %v2953
    %2960 = vst [vmem:[%s2958 + $0x4] sm:$0xf] %v2954
    %s2961 = smul.addr %s1135, 4
    %s2962 = scalar_lea.vmem [#allocation2], %s2961
    %v2963 = vld [vmem:[%s2962] sm:$0xff]
    %v2964 = vld [vmem:[%s2962 + $0x8] sm:$0xff]
    %v2965 = vld [vmem:[%s2962 + $0x10] sm:$0xff]
    %v2966 = vld [vmem:[%s2962 + $0x18] sm:$0xff]
    %v2967 = vunpack.c.l.bf16 %v2963
    %v2968 = vunpack.c.h.bf16 %v2963
    %v2969 = vunpack.c.l.bf16 %v2964
    %v2970 = vunpack.c.h.bf16 %v2964
    %v2971 = vunpack.c.l.bf16 %v2965
    %v2972 = vunpack.c.h.bf16 %v2965
    %v2973 = vunpack.c.l.bf16 %v2966
    %v2974 = vunpack.c.h.bf16 %v2966
    %v2977 = vunpack.c.l.b16 %v2915
    %v2978 = vunpack.c.l.b16 %v2916
    %v2979 = vpack.c.b16 %v2978, %v2977
    %2981 = vmatpush.bf16.msra.mxu0 %v1035
    %2982 = vmatpush.bf16.msra.mxu0 %v1031
    %2983 = vmatpush.bf16.msra.mxu0 %v1027
    %2984 = vmatpush.bf16.msra.mxu0 %v1023
    %2985 = vmatpush.bf16.msra.mxu0 %v1019
    %2986 = vmatpush.bf16.msra.mxu0 %v1015
    %2987 = vmatpush.bf16.msra.mxu0 %v1011
    %2988 = vmatpush.bf16.msra.mxu0 %v1007
    %2989 = vmatmul.bf16.gmra.mxu0 %v2979
    %v2990 = vpop.f32.mrf.mxu0
    %v2991 = vadd.f32 0.0, %v2990
    %v2992 = vpop.f32.mrf.mxu0
    %v2993 = vadd.f32 0.0, %v2992
    %2994 = vdwg.mxu0
    %2995 = vmatpush.bf16.msra.mxu0 %v1036
    %2996 = vmatpush.bf16.msra.mxu0 %v1032
    %2997 = vmatpush.bf16.msra.mxu0 %v1028
    %2998 = vmatpush.bf16.msra.mxu0 %v1024
    %2999 = vmatpush.bf16.msra.mxu0 %v1020
    %3000 = vmatpush.bf16.msra.mxu0 %v1016
    %3001 = vmatpush.bf16.msra.mxu0 %v1012
    %3002 = vmatpush.bf16.msra.mxu0 %v1008
    %3003 = vmatmul.bf16.gmra.mxu0 %v2979
    %v3004 = vpop.f32.mrf.mxu0
    %v3005 = vadd.f32 0.0, %v3004
    %v3006 = vpop.f32.mrf.mxu0
    %v3007 = vadd.f32 0.0, %v3006
    %3008 = vdwg.mxu0
    %3009 = vmatpush.bf16.msra.mxu0 %v1037
    %3010 = vmatpush.bf16.msra.mxu0 %v1033
    %3011 = vmatpush.bf16.msra.mxu0 %v1029
    %3012 = vmatpush.bf16.msra.mxu0 %v1025
    %3013 = vmatpush.bf16.msra.mxu0 %v1021
    %3014 = vmatpush.bf16.msra.mxu0 %v1017
    %3015 = vmatpush.bf16.msra.mxu0 %v1013
    %3016 = vmatpush.bf16.msra.mxu0 %v1009
    %3017 = vmatmul.bf16.gmra.mxu0 %v2979
    %v3018 = vpop.f32.mrf.mxu0
    %v3019 = vadd.f32 0.0, %v3018
    %v3020 = vpop.f32.mrf.mxu0
    %v3021 = vadd.f32 0.0, %v3020
    %3022 = vdwg.mxu0
    %3023 = vmatpush.bf16.msra.mxu0 %v1038
    %3024 = vmatpush.bf16.msra.mxu0 %v1034
    %3025 = vmatpush.bf16.msra.mxu0 %v1030
    %3026 = vmatpush.bf16.msra.mxu0 %v1026
    %3027 = vmatpush.bf16.msra.mxu0 %v1022
    %3028 = vmatpush.bf16.msra.mxu0 %v1018
    %3029 = vmatpush.bf16.msra.mxu0 %v1014
    %3030 = vmatpush.bf16.msra.mxu0 %v1010
    %3031 = vmatmul.bf16.gmra.mxu0 %v2979
    %v3032 = vpop.f32.mrf.mxu0
    %v3033 = vadd.f32 0.0, %v3032
    %v3034 = vpop.f32.mrf.mxu0
    %v3035 = vadd.f32 0.0, %v3034
    %3036 = vdwg.mxu0
    %v3037 = vadd.f32 %v2967, %v2991
    %v3038 = vadd.f32 %v2968, %v3005
    %v3039 = vadd.f32 %v2969, %v3019
    %v3040 = vadd.f32 %v2970, %v3033
    %v3041 = vadd.f32 %v2971, %v2993
    %v3042 = vadd.f32 %v2972, %v3007
    %v3043 = vadd.f32 %v2973, %v3021
    %v3044 = vadd.f32 %v2974, %v3035
    %s3045 = smul.addr %s896, 4
    %s3046 = scalar_lea.vmem [#allocation3], %s3045
    %v3047 = vld [vmem:[%s3046] sm:$0xff]
    %v3048 = vld [vmem:[%s3046 + $0x8] sm:$0xff]
    %v3049 = vld [vmem:[%s3046 + $0x10] sm:$0xff]
    %v3050 = vld [vmem:[%s3046 + $0x18] sm:$0xff]
    %v3051 = vunpack.c.l.bf16 %v3047
    %v3052 = vunpack.c.h.bf16 %v3047
    %v3053 = vunpack.c.l.bf16 %v3048
    %v3054 = vunpack.c.h.bf16 %v3048
    %v3055 = vunpack.c.l.bf16 %v3049
    %v3056 = vunpack.c.h.bf16 %v3049
    %v3057 = vunpack.c.l.bf16 %v3050
    %v3058 = vunpack.c.h.bf16 %v3050
    %v3061 = vunpack.c.l.b16 %v2953
    %v3062 = vunpack.c.l.b16 %v2954
    %v3063 = vpack.c.b16 %v3062, %v3061
    %3065 = vmatpush.bf16.msra.mxu0 %v1274
    %3066 = vmatpush.bf16.msra.mxu0 %v1270
    %3067 = vmatpush.bf16.msra.mxu0 %v1266
    %3068 = vmatpush.bf16.msra.mxu0 %v1262
    %3069 = vmatpush.bf16.msra.mxu0 %v1258
    %3070 = vmatpush.bf16.msra.mxu0 %v1254
    %3071 = vmatpush.bf16.msra.mxu0 %v1250
    %3072 = vmatpush.bf16.msra.mxu0 %v1246
    %3073 = vmatmul.bf16.gmra.mxu0 %v3063
    %v3074 = vpop.f32.mrf.mxu0
    %v3075 = vadd.f32 0.0, %v3074
    %v3076 = vpop.f32.mrf.mxu0
    %v3077 = vadd.f32 0.0, %v3076
    %3078 = vdwg.mxu0
    %3079 = vmatpush.bf16.msra.mxu0 %v1275
    %3080 = vmatpush.bf16.msra.mxu0 %v1271
    %3081 = vmatpush.bf16.msra.mxu0 %v1267
    %3082 = vmatpush.bf16.msra.mxu0 %v1263
    %3083 = vmatpush.bf16.msra.mxu0 %v1259
    %3084 = vmatpush.bf16.msra.mxu0 %v1255
    %3085 = vmatpush.bf16.msra.mxu0 %v1251
    %3086 = vmatpush.bf16.msra.mxu0 %v1247
    %3087 = vmatmul.bf16.gmra.mxu0 %v3063
    %v3088 = vpop.f32.mrf.mxu0
    %v3089 = vadd.f32 0.0, %v3088
    %v3090 = vpop.f32.mrf.mxu0
    %v3091 = vadd.f32 0.0, %v3090
    %3092 = vdwg.mxu0
    %3093 = vmatpush.bf16.msra.mxu0 %v1276
    %3094 = vmatpush.bf16.msra.mxu0 %v1272
    %3095 = vmatpush.bf16.msra.mxu0 %v1268
    %3096 = vmatpush.bf16.msra.mxu0 %v1264
    %3097 = vmatpush.bf16.msra.mxu0 %v1260
    %3098 = vmatpush.bf16.msra.mxu0 %v1256
    %3099 = vmatpush.bf16.msra.mxu0 %v1252
    %3100 = vmatpush.bf16.msra.mxu0 %v1248
    %3101 = vmatmul.bf16.gmra.mxu0 %v3063
    %v3102 = vpop.f32.mrf.mxu0
    %v3103 = vadd.f32 0.0, %v3102
    %v3104 = vpop.f32.mrf.mxu0
    %v3105 = vadd.f32 0.0, %v3104
    %3106 = vdwg.mxu0
    %3107 = vmatpush.bf16.msra.mxu0 %v1277
    %3108 = vmatpush.bf16.msra.mxu0 %v1273
    %3109 = vmatpush.bf16.msra.mxu0 %v1269
    %3110 = vmatpush.bf16.msra.mxu0 %v1265
    %3111 = vmatpush.bf16.msra.mxu0 %v1261
    %3112 = vmatpush.bf16.msra.mxu0 %v1257
    %3113 = vmatpush.bf16.msra.mxu0 %v1253
    %3114 = vmatpush.bf16.msra.mxu0 %v1249
    %3115 = vmatmul.bf16.gmra.mxu0 %v3063
    %v3116 = vpop.f32.mrf.mxu0
    %v3117 = vadd.f32 0.0, %v3116
    %v3118 = vpop.f32.mrf.mxu0
    %v3119 = vadd.f32 0.0, %v3118
    %3120 = vdwg.mxu0
    %v3121 = vadd.f32 %v3051, %v3075
    %v3122 = vadd.f32 %v3052, %v3089
    %v3123 = vadd.f32 %v3053, %v3103
    %v3124 = vadd.f32 %v3054, %v3117
    %v3125 = vadd.f32 %v3055, %v3077
    %v3126 = vadd.f32 %v3056, %v3091
    %v3127 = vadd.f32 %v3057, %v3105
    %v3128 = vadd.f32 %v3058, %v3119
    %v3129 = vmul.f32 %v3037, 0.5
    %v3130 = vmul.f32 %v3041, 0.5
    %v3131 = vtanh.pop %v3129
    %v3132 = vtanh.pop %v3130
    %v3133 = vadd.f32 %v3131, 1.0
    %v3134 = vadd.f32 %v3132, 1.0
    %v3135 = vmul.f32 %v3133, 0.5
    %v3136 = vmul.f32 %v3134, 0.5
    %v3137 = vmul.f32 %v3038, 0.5
    %v3138 = vmul.f32 %v3042, 0.5
    %v3139 = vtanh.pop %v3137
    %v3140 = vtanh.pop %v3138
    %v3141 = vadd.f32 %v3139, 1.0
    %v3142 = vadd.f32 %v3140, 1.0
    %v3143 = vmul.f32 %v3141, 0.5
    %v3144 = vmul.f32 %v3142, 0.5
    %v3145 = vtanh.pop %v3039
    %v3146 = vtanh.pop %v3043
    %v3147 = vmul.f32 %v3040, 0.5
    %v3148 = vmul.f32 %v3044, 0.5
    %v3149 = vtanh.pop %v3147
    %v3150 = vtanh.pop %v3148
    %v3151 = vadd.f32 %v3149, 1.0
    %v3152 = vadd.f32 %v3150, 1.0
    %v3153 = vmul.f32 %v3151, 0.5
    %v3154 = vmul.f32 %v3152, 0.5
    %v3155 = vmul.f32 %v3143, %v2909
    %v3156 = vmul.f32 %v3144, %v2910
    %v3157 = vmul.f32 %v3135, %v3145
    %v3158 = vmul.f32 %v3136, %v3146
    %v3159 = vadd.f32 %v3155, %v3157
    %v3160 = vadd.f32 %v3156, %v3158
    %v3161 = vtanh.pop %v3159
    %v3162 = vtanh.pop %v3160
    %v3163 = vmul.f32 %v3153, %v3161
    %v3164 = vmul.f32 %v3154, %v3162
    %v3165 = vpack.c.bf16 %v3163, %v3163
    %v3166 = vpack.c.bf16 %v3164, %v3164
    %v3167 = vmul.f32 %v3121, 0.5
    %v3168 = vmul.f32 %v3125, 0.5
    %v3169 = vtanh.pop %v3167
    %v3170 = vtanh.pop %v3168
    %v3171 = vadd.f32 %v3169, 1.0
    %v3172 = vadd.f32 %v3170, 1.0
    %v3173 = vmul.f32 %v3171, 0.5
    %v3174 = vmul.f32 %v3172, 0.5
    %v3175 = vmul.f32 %v3122, 0.5
    %v3176 = vmul.f32 %v3126, 0.5
    %v3177 = vtanh.pop %v3175
    %v3178 = vtanh.pop %v3176
    %v3179 = vadd.f32 %v3177, 1.0
    %v3180 = vadd.f32 %v3178, 1.0
    %v3181 = vmul.f32 %v3179, 0.5
    %v3182 = vmul.f32 %v3180, 0.5
    %v3183 = vtanh.pop %v3123
    %v3184 = vtanh.pop %v3127
    %v3185 = vmul.f32 %v3124, 0.5
    %v3186 = vmul.f32 %v3128, 0.5
    %v3187 = vtanh.pop %v3185
    %v3188 = vtanh.pop %v3186
    %v3189 = vadd.f32 %v3187, 1.0
    %v3190 = vadd.f32 %v3188, 1.0
    %v3191 = vmul.f32 %v3189, 0.5
    %v3192 = vmul.f32 %v3190, 0.5
    %v3193 = vmul.f32 %v3181, %v2947
    %v3194 = vmul.f32 %v3182, %v2948
    %v3195 = vmul.f32 %v3173, %v3183
    %v3196 = vmul.f32 %v3174, %v3184
    %v3197 = vadd.f32 %v3193, %v3195
    %v3198 = vadd.f32 %v3194, %v3196
    %v3199 = vtanh.pop %v3197
    %v3200 = vtanh.pop %v3198
    %v3201 = vmul.f32 %v3191, %v3199
    %v3202 = vmul.f32 %v3192, %v3200
    %v3203 = vpack.c.bf16 %v3201, %v3201
    %v3204 = vpack.c.bf16 %v3202, %v3202
    %s3205 = scalar_lea.vmem [#allocation4], 56
    %3206 = vst [vmem:[%s3205] sm:$0xf] %v3165
    %3207 = vst [vmem:[%s3205 + $0x4] sm:$0xf] %v3166
    %3208 = vst [vmem:[#allocation5] sm:$0xf] %v3203
    %3209 = vst [vmem:[#allocation5 + $0x4] sm:$0xf] %v3204
    %v3210 = vld [vmem:[#allocation4] sm:$0xf]
    %v3211 = vld [vmem:[#allocation4 + $0x4] sm:$0xf]
    %v3212 = vld [vmem:[#allocation4 + $0x8] sm:$0xf]
    %v3213 = vld [vmem:[#allocation4 + $0xc] sm:$0xf]
    %v3214 = vld [vmem:[#allocation4 + $0x10] sm:$0xf]
    %v3215 = vld [vmem:[#allocation4 + $0x14] sm:$0xf]
    %v3216 = vld [vmem:[#allocation4 + $0x18] sm:$0xf]
    %v3217 = vld [vmem:[#allocation4 + $0x1c] sm:$0xf]
    %v3218 = vld [vmem:[#allocation4 + $0x20] sm:$0xf]
    %v3219 = vld [vmem:[#allocation4 + $0x24] sm:$0xf]
    %v3220 = vld [vmem:[#allocation4 + $0x28] sm:$0xf]
    %v3221 = vld [vmem:[#allocation4 + $0x2c] sm:$0xf]
    %v3222 = vld [vmem:[#allocation4 + $0x30] sm:$0xf]
    %v3223 = vld [vmem:[#allocation4 + $0x34] sm:$0xf]
    %v3224 = vld [vmem:[#allocation4 + $0x38] sm:$0xf]
    %v3225 = vld [vmem:[#allocation4 + $0x3c] sm:$0xf]
    %v3226 = vld [vmem:[#allocation12] sm:$0xf]
    %v3227 = vld [vmem:[#allocation12 + $0x4] sm:$0xf]
    %v3228 = vld [vmem:[#allocation12 + $0x8] sm:$0xf]
    %v3229 = vld [vmem:[#allocation12 + $0xc] sm:$0xf]
    %v3230 = vld [vmem:[#allocation12 + $0x10] sm:$0xf]
    %v3231 = vld [vmem:[#allocation12 + $0x14] sm:$0xf]
    %v3232 = vld [vmem:[#allocation12 + $0x18] sm:$0xf]
    %v3233 = vld [vmem:[#allocation12 + $0x1c] sm:$0xf]
    %v3234 = vld [vmem:[#allocation12 + $0x20] sm:$0xf]
    %v3235 = vld [vmem:[#allocation12 + $0x24] sm:$0xf]
    %v3236 = vld [vmem:[#allocation12 + $0x28] sm:$0xf]
    %v3237 = vld [vmem:[#allocation12 + $0x2c] sm:$0xf]
    %v3238 = vld [vmem:[#allocation12 + $0x30] sm:$0xf]
    %v3239 = vld [vmem:[#allocation12 + $0x34] sm:$0xf]
    %v3240 = vld [vmem:[#allocation12 + $0x38] sm:$0xf]
    %v3241 = vld [vmem:[#allocation12 + $0x3c] sm:$0xf]
    %v3242 = vld [vmem:[#allocation5] sm:$0xf]
    %v3243 = vld [vmem:[#allocation5 + $0x4] sm:$0xf]
    %v3244 = vld [vmem:[#allocation5 + $0x8] sm:$0xf]
    %v3245 = vld [vmem:[#allocation5 + $0xc] sm:$0xf]
    %v3246 = vld [vmem:[#allocation5 + $0x10] sm:$0xf]
    %v3247 = vld [vmem:[#allocation5 + $0x14] sm:$0xf]
    %v3248 = vld [vmem:[#allocation5 + $0x18] sm:$0xf]
    %v3249 = vld [vmem:[#allocation5 + $0x1c] sm:$0xf]
    %v3250 = vld [vmem:[#allocation5 + $0x20] sm:$0xf]
    %v3251 = vld [vmem:[#allocation5 + $0x24] sm:$0xf]
    %v3252 = vld [vmem:[#allocation5 + $0x28] sm:$0xf]
    %v3253 = vld [vmem:[#allocation5 + $0x2c] sm:$0xf]
    %v3254 = vld [vmem:[#allocation5 + $0x30] sm:$0xf]
    %v3255 = vld [vmem:[#allocation5 + $0x34] sm:$0xf]
    %v3256 = vld [vmem:[#allocation5 + $0x38] sm:$0xf]
    %v3257 = vld [vmem:[#allocation5 + $0x3c] sm:$0xf]
    %v3258 = vld [vmem:[#allocation14] sm:$0xf]
    %v3259 = vld [vmem:[#allocation14 + $0x4] sm:$0xf]
    %v3260 = vld [vmem:[#allocation14 + $0x8] sm:$0xf]
    %v3261 = vld [vmem:[#allocation14 + $0xc] sm:$0xf]
    %v3262 = vld [vmem:[#allocation14 + $0x10] sm:$0xf]
    %v3263 = vld [vmem:[#allocation14 + $0x14] sm:$0xf]
    %v3264 = vld [vmem:[#allocation14 + $0x18] sm:$0xf]
    %v3265 = vld [vmem:[#allocation14 + $0x1c] sm:$0xf]
    %v3266 = vld [vmem:[#allocation14 + $0x20] sm:$0xf]
    %v3267 = vld [vmem:[#allocation14 + $0x24] sm:$0xf]
    %v3268 = vld [vmem:[#allocation14 + $0x28] sm:$0xf]
    %v3269 = vld [vmem:[#allocation14 + $0x2c] sm:$0xf]
    %v3270 = vld [vmem:[#allocation14 + $0x30] sm:$0xf]
    %v3271 = vld [vmem:[#allocation14 + $0x34] sm:$0xf]
    %v3272 = vld [vmem:[#allocation14 + $0x38] sm:$0xf]
    %v3273 = vld [vmem:[#allocation14 + $0x3c] sm:$0xf]
    %v3290 = vunpack.c.l.b16 %v3242
    %v3291 = vunpack.c.l.b16 %v3243
    %v3292 = vunpack.c.l.b16 %v3244
    %v3293 = vunpack.c.l.b16 %v3245
    %v3294 = vunpack.c.l.b16 %v3246
    %v3295 = vunpack.c.l.b16 %v3247
    %v3296 = vunpack.c.l.b16 %v3248
    %v3297 = vunpack.c.l.b16 %v3249
    %v3298 = vunpack.c.l.b16 %v3250
    %v3299 = vunpack.c.l.b16 %v3251
    %v3300 = vunpack.c.l.b16 %v3252
    %v3301 = vunpack.c.l.b16 %v3253
    %v3302 = vunpack.c.l.b16 %v3254
    %v3303 = vunpack.c.l.b16 %v3255
    %v3304 = vunpack.c.l.b16 %v3256
    %v3305 = vunpack.c.l.b16 %v3257
    %v3306 = vpack.c.b16 %v3291, %v3290
    %v3307 = vpack.c.b16 %v3293, %v3292
    %v3308 = vpack.c.b16 %v3295, %v3294
    %v3309 = vpack.c.b16 %v3297, %v3296
    %v3310 = vpack.c.b16 %v3299, %v3298
    %v3311 = vpack.c.b16 %v3301, %v3300
    %v3312 = vpack.c.b16 %v3303, %v3302
    %v3313 = vpack.c.b16 %v3305, %v3304
    %v3338 = vunpack.c.l.b16 %v3258
    %v3339 = vunpack.c.l.b16 %v3259
    %v3340 = vunpack.c.l.b16 %v3260
    %v3341 = vunpack.c.l.b16 %v3261
    %v3342 = vunpack.c.l.b16 %v3262
    %v3343 = vunpack.c.l.b16 %v3263
    %v3344 = vunpack.c.l.b16 %v3264
    %v3345 = vunpack.c.l.b16 %v3265
    %v3346 = vunpack.c.l.b16 %v3266
    %v3347 = vunpack.c.l.b16 %v3267
    %v3348 = vunpack.c.l.b16 %v3268
    %v3349 = vunpack.c.l.b16 %v3269
    %v3350 = vunpack.c.l.b16 %v3270
    %v3351 = vunpack.c.l.b16 %v3271
    %v3352 = vunpack.c.l.b16 %v3272
    %v3353 = vunpack.c.l.b16 %v3273
    %v3354 = vpack.c.b16 %v3339, %v3338
    %v3355 = vpack.c.b16 %v3341, %v3340
    %v3356 = vpack.c.b16 %v3343, %v3342
    %v3357 = vpack.c.b16 %v3345, %v3344
    %v3358 = vpack.c.b16 %v3347, %v3346
    %v3359 = vpack.c.b16 %v3349, %v3348
    %v3360 = vpack.c.b16 %v3351, %v3350
    %v3361 = vpack.c.b16 %v3353, %v3352
    %3370 = vmatpush.bf16.msra.mxu0 %v3361
    %3371 = vmatpush.bf16.msra.mxu0 %v3360
    %3372 = vmatpush.bf16.msra.mxu0 %v3359
    %3373 = vmatpush.bf16.msra.mxu0 %v3358
    %3374 = vmatpush.bf16.msra.mxu0 %v3357
    %3375 = vmatpush.bf16.msra.mxu0 %v3356
    %3376 = vmatpush.bf16.msra.mxu0 %v3355
    %3377 = vmatpush.bf16.msra.mxu0 %v3354
    %3378 = vmatmul.bf16.gmra.mxu0 %v3306
    %v3379 = vpop.f32.mrf.mxu0
    %v3380 = vadd.f32 0.0, %v3379
    %v3381 = vpop.f32.mrf.mxu0
    %v3382 = vadd.f32 0.0, %v3381
    %3383 = vmatmul.bf16.gmra.mxu0 %v3307
    %v3384 = vpop.f32.mrf.mxu0
    %v3385 = vadd.f32 0.0, %v3384
    %v3386 = vpop.f32.mrf.mxu0
    %v3387 = vadd.f32 0.0, %v3386
    %3388 = vmatmul.bf16.gmra.mxu0 %v3308
    %v3389 = vpop.f32.mrf.mxu0
    %v3390 = vadd.f32 0.0, %v3389
    %v3391 = vpop.f32.mrf.mxu0
    %v3392 = vadd.f32 0.0, %v3391
    %3393 = vmatmul.bf16.gmra.mxu0 %v3309
    %v3394 = vpop.f32.mrf.mxu0
    %v3395 = vadd.f32 0.0, %v3394
    %v3396 = vpop.f32.mrf.mxu0
    %v3397 = vadd.f32 0.0, %v3396
    %3398 = vmatmul.bf16.gmra.mxu0 %v3310
    %v3399 = vpop.f32.mrf.mxu0
    %v3400 = vadd.f32 0.0, %v3399
    %v3401 = vpop.f32.mrf.mxu0
    %v3402 = vadd.f32 0.0, %v3401
    %3403 = vmatmul.bf16.gmra.mxu0 %v3311
    %v3404 = vpop.f32.mrf.mxu0
    %v3405 = vadd.f32 0.0, %v3404
    %v3406 = vpop.f32.mrf.mxu0
    %v3407 = vadd.f32 0.0, %v3406
    %3408 = vmatmul.bf16.gmra.mxu0 %v3312
    %v3409 = vpop.f32.mrf.mxu0
    %v3410 = vadd.f32 0.0, %v3409
    %v3411 = vpop.f32.mrf.mxu0
    %v3412 = vadd.f32 0.0, %v3411
    %3413 = vmatmul.bf16.gmra.mxu0 %v3313
    %v3414 = vpop.f32.mrf.mxu0
    %v3415 = vadd.f32 0.0, %v3414
    %v3416 = vpop.f32.mrf.mxu0
    %v3417 = vadd.f32 0.0, %v3416
    %3418 = vdwg.mxu0
    %v3435 = vunpack.c.l.b16 %v3210
    %v3436 = vunpack.c.l.b16 %v3211
    %v3437 = vunpack.c.l.b16 %v3212
    %v3438 = vunpack.c.l.b16 %v3213
    %v3439 = vunpack.c.l.b16 %v3214
    %v3440 = vunpack.c.l.b16 %v3215
    %v3441 = vunpack.c.l.b16 %v3216
    %v3442 = vunpack.c.l.b16 %v3217
    %v3443 = vunpack.c.l.b16 %v3218
    %v3444 = vunpack.c.l.b16 %v3219
    %v3445 = vunpack.c.l.b16 %v3220
    %v3446 = vunpack.c.l.b16 %v3221
    %v3447 = vunpack.c.l.b16 %v3222
    %v3448 = vunpack.c.l.b16 %v3223
    %v3449 = vunpack.c.l.b16 %v3224
    %v3450 = vunpack.c.l.b16 %v3225
    %v3451 = vpack.c.b16 %v3436, %v3435
    %v3452 = vpack.c.b16 %v3438, %v3437
    %v3453 = vpack.c.b16 %v3440, %v3439
    %v3454 = vpack.c.b16 %v3442, %v3441
    %v3455 = vpack.c.b16 %v3444, %v3443
    %v3456 = vpack.c.b16 %v3446, %v3445
    %v3457 = vpack.c.b16 %v3448, %v3447
    %v3458 = vpack.c.b16 %v3450, %v3449
    %v3483 = vunpack.c.l.b16 %v3226
    %v3484 = vunpack.c.l.b16 %v3227
    %v3485 = vunpack.c.l.b16 %v3228
    %v3486 = vunpack.c.l.b16 %v3229
    %v3487 = vunpack.c.l.b16 %v3230
    %v3488 = vunpack.c.l.b16 %v3231
    %v3489 = vunpack.c.l.b16 %v3232
    %v3490 = vunpack.c.l.b16 %v3233
    %v3491 = vunpack.c.l.b16 %v3234
    %v3492 = vunpack.c.l.b16 %v3235
    %v3493 = vunpack.c.l.b16 %v3236
    %v3494 = vunpack.c.l.b16 %v3237
    %v3495 = vunpack.c.l.b16 %v3238
    %v3496 = vunpack.c.l.b16 %v3239
    %v3497 = vunpack.c.l.b16 %v3240
    %v3498 = vunpack.c.l.b16 %v3241
    %v3499 = vpack.c.b16 %v3484, %v3483
    %v3500 = vpack.c.b16 %v3486, %v3485
    %v3501 = vpack.c.b16 %v3488, %v3487
    %v3502 = vpack.c.b16 %v3490, %v3489
    %v3503 = vpack.c.b16 %v3492, %v3491
    %v3504 = vpack.c.b16 %v3494, %v3493
    %v3505 = vpack.c.b16 %v3496, %v3495
    %v3506 = vpack.c.b16 %v3498, %v3497
    %3515 = vmatpush.bf16.msra.mxu0 %v3506
    %3516 = vmatpush.bf16.msra.mxu0 %v3505
    %3517 = vmatpush.bf16.msra.mxu0 %v3504
    %3518 = vmatpush.bf16.msra.mxu0 %v3503
    %3519 = vmatpush.bf16.msra.mxu0 %v3502
    %3520 = vmatpush.bf16.msra.mxu0 %v3501
    %3521 = vmatpush.bf16.msra.mxu0 %v3500
    %3522 = vmatpush.bf16.msra.mxu0 %v3499
    %3523 = vmatmul.bf16.gmra.mxu0 %v3451
    %v3524 = vpop.f32.mrf.mxu0
    %v3525 = vadd.f32 %v3380, %v3524
    %v3526 = vpop.f32.mrf.mxu0
    %v3527 = vadd.f32 %v3382, %v3526
    %3528 = vmatmul.bf16.gmra.mxu0 %v3452
    %v3529 = vpop.f32.mrf.mxu0
    %v3530 = vadd.f32 %v3385, %v3529
    %v3531 = vpop.f32.mrf.mxu0
    %v3532 = vadd.f32 %v3387, %v3531
    %3533 = vmatmul.bf16.gmra.mxu0 %v3453
    %v3534 = vpop.f32.mrf.mxu0
    %v3535 = vadd.f32 %v3390, %v3534
    %v3536 = vpop.f32.mrf.mxu0
    %v3537 = vadd.f32 %v3392, %v3536
    %3538 = vmatmul.bf16.gmra.mxu0 %v3454
    %v3539 = vpop.f32.mrf.mxu0
    %v3540 = vadd.f32 %v3395, %v3539
    %v3541 = vpop.f32.mrf.mxu0
    %v3542 = vadd.f32 %v3397, %v3541
    %3543 = vmatmul.bf16.gmra.mxu0 %v3455
    %v3544 = vpop.f32.mrf.mxu0
    %v3545 = vadd.f32 %v3400, %v3544
    %v3546 = vpop.f32.mrf.mxu0
    %v3547 = vadd.f32 %v3402, %v3546
    %3548 = vmatmul.bf16.gmra.mxu0 %v3456
    %v3549 = vpop.f32.mrf.mxu0
    %v3550 = vadd.f32 %v3405, %v3549
    %v3551 = vpop.f32.mrf.mxu0
    %v3552 = vadd.f32 %v3407, %v3551
    %3553 = vmatmul.bf16.gmra.mxu0 %v3457
    %v3554 = vpop.f32.mrf.mxu0
    %v3555 = vadd.f32 %v3410, %v3554
    %v3556 = vpop.f32.mrf.mxu0
    %v3557 = vadd.f32 %v3412, %v3556
    %3558 = vmatmul.bf16.gmra.mxu0 %v3458
    %v3559 = vpop.f32.mrf.mxu0
    %v3560 = vadd.f32 %v3415, %v3559
    %v3561 = vpop.f32.mrf.mxu0
    %v3562 = vadd.f32 %v3417, %v3561
    %3563 = vdwg.mxu0
    %v3564 = vld [vmem:[%s9] sm:$0x1]
    %v3566 = vperm.slane %v3564, 0
    %v3568 = vadd.f32 %v3525, %v3566
    %v3569 = vadd.f32 %v3527, %v3566
    %v3570 = vadd.f32 %v3530, %v3566
    %v3571 = vadd.f32 %v3532, %v3566
    %v3572 = vadd.f32 %v3535, %v3566
    %v3573 = vadd.f32 %v3537, %v3566
    %v3574 = vadd.f32 %v3540, %v3566
    %v3575 = vadd.f32 %v3542, %v3566
    %v3576 = vadd.f32 %v3545, %v3566
    %v3577 = vadd.f32 %v3547, %v3566
    %v3578 = vadd.f32 %v3550, %v3566
    %v3579 = vadd.f32 %v3552, %v3566
    %v3580 = vadd.f32 %v3555, %v3566
    %v3581 = vadd.f32 %v3557, %v3566
    %v3582 = vadd.f32 %v3560, %v3566
    %v3583 = vadd.f32 %v3562, %v3566
    %3584 = vst [vmem:[#allocation15] sm:$0xff] %v3568
    %3585 = vst [vmem:[#allocation15 + $0x8] sm:$0xff] %v3569
    %3586 = vst [vmem:[#allocation15 + $0x10] sm:$0xff] %v3570
    %3587 = vst [vmem:[#allocation15 + $0x18] sm:$0xff] %v3571
    %3588 = vst [vmem:[#allocation15 + $0x20] sm:$0xff] %v3572
    %3589 = vst [vmem:[#allocation15 + $0x28] sm:$0xff] %v3573
    %3590 = vst [vmem:[#allocation15 + $0x30] sm:$0xff] %v3574
    %3591 = vst [vmem:[#allocation15 + $0x38] sm:$0xff] %v3575
    %3592 = vst [vmem:[#allocation15 + $0x40] sm:$0xff] %v3576
    %3593 = vst [vmem:[#allocation15 + $0x48] sm:$0xff] %v3577
    %3594 = vst [vmem:[#allocation15 + $0x50] sm:$0xff] %v3578
    %3595 = vst [vmem:[#allocation15 + $0x58] sm:$0xff] %v3579
    %3596 = vst [vmem:[#allocation15 + $0x60] sm:$0xff] %v3580
    %3597 = vst [vmem:[#allocation15 + $0x68] sm:$0xff] %v3581
    %3598 = vst [vmem:[#allocation15 + $0x70] sm:$0xff] %v3582
    %3599 = vst [vmem:[#allocation15 + $0x78] sm:$0xff] %v3583
    // Predicated region
    $region62: #{tpu_custom_call.1} parent=1 // pred_check
      _
    $region63: #{tpu_custom_call.1} parent=1 // pred_check_branch
      %3601 = sbr.rel (0) target = $region65
    $region64: #{tpu_custom_call.1} parent=1 // pred_region
      %3603 = vsyncadd [#allocation8], 0
      %s3604 = sshll.u32 [#allocation15], 4
      %s3605 = int_to_ptr.vmem [resolvable:$true] %s3604
      %s3606 = sshll.u32 %s10, 4
      %s3607 = int_to_ptr.hbm [resolvable:$true] %s3606
      %3612 = dma.vmem_to_hbm [thread:$0]  %s3605, 2048, %s3607, [#allocation8], 128, 128, 8
    $region65: #{tpu_custom_call.1} parent=1 // pred_fallthru
      _
    // Predicated region
    $region66: #{tpu_custom_call.1} parent=1 // pred_check
      _
    $region67: #{tpu_custom_call.1} parent=1 // pred_check_branch
      %3614 = sbr.rel (0) target = $region69
    $region68: #{tpu_custom_call.1} parent=1 // pred_region
      %3616 = dma.done [#allocation8], 2048
    $region69: #{tpu_custom_call.1} parent=1 // pred_fallthru
      _
    %3617 = vsyncpa [#allocation7], 1
    %3618 = vsyncpa [#allocation10], 1
    %3619 = vsyncpa [#allocation13], 1
    %3620 = vsyncpa [#allocation8], 1

</llo_original>
